<compile_context>
chip_gen: v6e
topology: v6e:2x2x1
jax: 0.10.0
libtpu: 0.0.40
codegen_flags: <defaults>
</compile_context>

<pallas_src>
import jax
import jax.numpy as jnp
import numpy as np
from jax.experimental import pallas as pl
from jax.experimental.pallas import tpu as pltpu

# ----- small, module-consistent sizes -----
N = 2              # batch inside one FiLM block
H = W = 8          # spatial
C_IN = 4           # in_channels
C_IMM = 16         # imm_channels
C_OUT = 32         # out_features
F_IN = 12          # in_features (FiLM conditioning vector)

HP = H + 2                     # padded height (conv padding=1)
WROW = 16                      # padded row width (>= W+2), power of two
ROWS_PER_IMG = HP * WROW       # 160 flattened padded-grid positions per image
M = N * ROWS_PER_IMG           # 320 real columns
MPAD = 3 * 128                 # 384: columns padded to a lane-dense multiple of 128
EPS = 1e-5
BN_COUNT = float(N * H * W)    # BatchNorm2d statistics count (interior only)

# conv tap offsets in flattened-column space (tap-major: kh, kw)
TAP_OFFS = [(kh - 1) * WROW + (kw - 1) for kh in range(3) for kw in range(3)]

# interior-column indicator (host-side, static)
_pos = np.arange(MPAD)
_hh = (_pos % ROWS_PER_IMG) // WROW
_ww = (_pos % ROWS_PER_IMG) % WROW
_INTERIOR = ((_pos < M) & (_hh >= 1) & (_hh <= H)
             & (_ww >= 1) & (_ww <= W)).astype(np.float32)


def film_kernel(x_ref, w1_ref, w2_ref, film_ref, mrow_ref, mcol_ref, out_ref):
    x = x_ref[0]                 # (C_IN, MPAD)   channels on sublanes, columns on lanes
    w1 = w1_ref[0]               # (9*C_IMM, C_IN)  tap-major row blocks
    w2 = w2_ref[0]               # (9*C_OUT, C_IMM)
    film = film_ref[0]           # (2*C_OUT, N)   [scale rows ; shift rows]
    mask_row = mrow_ref[...]     # (1, MPAD)      interior indicator
    mask_col = mcol_ref[...]     # (MPAD, 1)

    def bn_norm(v):
        # Train-mode BatchNorm over the N*H*W interior columns; the interior
        # mask rides the MXU stats pass (no full-tensor mask multiply).
        s = jnp.dot(v, mask_col, preferred_element_type=jnp.float32)        # (C,1)
        s2 = jnp.dot(v * v, mask_col, preferred_element_type=jnp.float32)   # (C,1)
        mean = s * (1.0 / BN_COUNT)
        inv = jax.lax.rsqrt(s2 * (1.0 / BN_COUNT) - mean * mean + EPS)
        return (v - mean) * inv

    def conv3x3(src, w_stack, c_out):
        # 3x3 "same" conv as 9 accumulating dots; each tap is a static lane
        # roll (XLU) of the (C, MPAD) slab.  Interior outputs never read
        # wrapped lanes, and padding columns between images are zero.
        acc = None
        for t, off in enumerate(TAP_OFFS):
            tap = src if off == 0 else pltpu.roll(src, (-off) % MPAD, axis=1)
            part = jnp.dot(w_stack[t * c_out:(t + 1) * c_out, :], tap,
                           preferred_element_type=jnp.float32)
            acc = part if acc is None else acc + part
        return acc

    # conv1 -> bn1 -> relu; zeroed outside the interior (= conv2's zero padding)
    h1 = jnp.maximum(bn_norm(conv3x3(x, w1, C_IMM)), 0.0) * mask_row        # (C_IMM, MPAD)

    # conv2 (its bias is folded into the FiLM shift by the wrapper)
    c2 = conv3x3(h1, w2, C_OUT)                                             # (C_OUT, MPAD)

    # FiLM: per-image scale/shift columns selected with a lane-iota compare
    col = jax.lax.broadcasted_iota(jnp.int32, (1, MPAD), 1)
    scale = jnp.broadcast_to(film[:C_OUT, 0:1], (C_OUT, MPAD))
    shift = jnp.broadcast_to(film[C_OUT:, 0:1], (C_OUT, MPAD))
    for n in range(1, N):
        sel = jnp.broadcast_to(col >= n * ROWS_PER_IMG, (C_OUT, MPAD))
        scale = jnp.where(sel, jnp.broadcast_to(film[:C_OUT, n:n + 1], (C_OUT, MPAD)), scale)
        shift = jnp.where(sel, jnp.broadcast_to(film[C_OUT:, n:n + 1], (C_OUT, MPAD)), shift)
    o = c2 * scale + shift

    # bn2 -> relu; non-interior columns carry don't-care values that the
    # wrapper's slice discards (stats only count interior columns).
    out_ref[0] = jnp.maximum(bn_norm(o), 0.0)


def _prep_single(x, y, params):
    """Per-instance glue: (C, columns) layout, tap-major weights, FiLM coeffs."""
    w1, b1, w2, b2, lw_w, lw_b, lb_w, lb_b = params
    del b1  # mathematically cancelled by the train-mode BN following conv1

    # NCHW -> zero-padded flattened-column layout (C_IN, MPAD)
    xp = jnp.pad(x, ((0, 0), (0, 0), (1, 1), (1, WROW - W - 1)))     # (N,C,HP,WROW)
    x_cols = jnp.transpose(xp, (1, 0, 2, 3)).reshape(C_IN, M)
    x_cols = jnp.pad(x_cols, ((0, 0), (0, MPAD - M)))

    # tap-major weight stacks: rows [t*C_out:(t+1)*C_out] = W[:, :, kh_t, kw_t]
    w1_stack = jnp.transpose(w1, (2, 3, 0, 1)).reshape(9 * C_IMM, C_IN)
    w2_stack = jnp.transpose(w2, (2, 3, 0, 1)).reshape(9 * C_OUT, C_IMM)

    # FiLM Linear layers on the tiny y; fold conv2's bias into the shift:
    #   (conv2_nobias + b2) * fw + fb  ==  conv2_nobias * fw + (b2*fw + fb)
    fw = y @ lw_w.T + lw_b                                            # (N, C_OUT)
    fb = y @ lb_w.T + lb_b + b2[None, :] * fw
    film_t = jnp.concatenate([fw.T, fb.T], axis=0)                    # (2*C_OUT, N)
    return x_cols, w1_stack, w2_stack, film_t


def _post_single(out_cm):
    o = out_cm[:, :M].reshape(C_OUT, N, HP, WROW)[:, :, 1:H + 1, 1:W + 1]
    return jnp.transpose(o, (1, 0, 2, 3))                             # NCHW


def expert_controller_film_batched(xs, ys, params):
    """B independent FiLM blocks behind one pallas_call with a parallel grid axis.

    xs: (B, N, C_IN, H, W), ys: (B, N, F_IN), each param has a leading B axis.
    """
    B = xs.shape[0]
    x_cols, w1s, w2s, films = jax.vmap(_prep_single)(xs, ys, params)
    mask_row = jnp.asarray(_INTERIOR[None, :])
    mask_col = jnp.asarray(_INTERIOR[:, None])

    out = pl.pallas_call(
        film_kernel,
        out_shape=jax.ShapeDtypeStruct((B, C_OUT, MPAD), jnp.float32),
        grid=(B,),
        in_specs=[
            pl.BlockSpec((1, C_IN, MPAD), lambda b: (b, 0, 0)),
            pl.BlockSpec((1, 9 * C_IMM, C_IN), lambda b: (b, 0, 0)),
            pl.BlockSpec((1, 9 * C_OUT, C_IMM), lambda b: (b, 0, 0)),
            pl.BlockSpec((1, 2 * C_OUT, N), lambda b: (b, 0, 0)),
            pl.BlockSpec((1, MPAD), lambda b: (0, 0)),
            pl.BlockSpec((MPAD, 1), lambda b: (0, 0)),
        ],
        out_specs=pl.BlockSpec((1, C_OUT, MPAD), lambda b: (b, 0, 0)),
        compiler_params=pltpu.CompilerParams(
            dimension_semantics=("parallel",)),
    )(x_cols, w1s, w2s, films, mask_row, mask_col)

    return jax.vmap(_post_single)(out)


def expert_controller_film(x, y, params):
    """Single FiLM block (the nn.Module interface)."""
    out = expert_controller_film_batched(
        x[None], y[None], tuple(p[None] for p in params))
    return out[0]


def reference(x, y, params):
    # pure-JAX reference of the PyTorch forward (train-mode BN)
    (w1, b1, w2, b2, lw_w, lw_b, lb_w, lb_b) = params

    def conv(v, w, b):
        o = jax.lax.conv_general_dilated(v, w, (1, 1), ((1, 1), (1, 1)),
                                         dimension_numbers=('NCHW', 'OIHW', 'NCHW'))
        return o + b[None, :, None, None]

    def bn(v):
        mean = jnp.mean(v, axis=(0, 2, 3), keepdims=True)
        var = jnp.mean((v - mean) ** 2, axis=(0, 2, 3), keepdims=True)
        return (v - mean) * jax.lax.rsqrt(var + EPS)

    h = jax.nn.relu(bn(conv(x, w1, b1)))
    h = conv(h, w2, b2)
    fw = y @ lw_w.T + lw_b
    fb = y @ lb_w.T + lb_b
    out = h * fw[:, :, None, None] + fb[:, :, None, None]
    return jax.nn.relu(bn(out))


if __name__ == "__main__":
    key = jax.random.PRNGKey(0)
    ks = jax.random.split(key, 8)
    B = 4   # independent FiLM blocks batched behind one pallas_call grid axis

    xs = jax.random.normal(ks[0], (B, N, C_IN, H, W), jnp.float32)
    ys = jax.random.normal(ks[1], (B, N, F_IN), jnp.float32)

    # deterministic conv params (shapes per nn.Conv2d in __init__), one set per block
    w1 = 0.2 * jax.random.normal(ks[2], (B, C_IMM, C_IN, 3, 3), jnp.float32)
    b1 = 0.1 * jax.random.normal(ks[3], (B, C_IMM), jnp.float32)
    w2 = 0.2 * jax.random.normal(ks[4], (B, C_OUT, C_IMM, 3, 3), jnp.float32)
    b2 = 0.1 * jax.random.normal(ks[5], (B, C_OUT), jnp.float32)
    # FiLM Linear layers, per initialize_parameters: N(0,1) rows L2-normalized, bias 0
    lw_w = jax.random.normal(ks[6], (B, C_OUT, F_IN), jnp.float32)
    lw_w = lw_w / jnp.sqrt(jnp.sum(lw_w ** 2, axis=-1, keepdims=True))
    lb_w = jax.random.normal(ks[7], (B, C_OUT, F_IN), jnp.float32)
    lb_w = lb_w / jnp.sqrt(jnp.sum(lb_w ** 2, axis=-1, keepdims=True))
    lw_b = jnp.zeros((B, C_OUT), jnp.float32)
    lb_b = jnp.zeros((B, C_OUT), jnp.float32)
    params = (w1, b1, w2, b2, lw_w, lw_b, lb_w, lb_b)

    outs = jax.block_until_ready(expert_controller_film_batched(xs, ys, params))
    for b in range(B):
        ref = reference(xs[b], ys[b], tuple(p[b] for p in params))
        np.testing.assert_allclose(np.asarray(outs[b]), np.asarray(ref),
                                   rtol=1e-3, atol=1e-3)

    # the plain single-module interface (B=1 grid) still works
    out0 = jax.block_until_ready(
        expert_controller_film(xs[0], ys[0], tuple(p[0] for p in params)))
    np.testing.assert_allclose(np.asarray(out0), np.asarray(outs[0]),
                               rtol=1e-3, atol=1e-3)

    print("KERNEL_OK")
</pallas_src>

<mosaic_0001>
module attributes {stable_mosaic.version = 11 : i64} {
  func.func @film_kernel(%arg0: i32, %arg1: memref<1x4x384xf32, #tpu.memory_space<vmem>>, %arg2: memref<1x144x4xf32, #tpu.memory_space<vmem>>, %arg3: memref<1x288x16xf32, #tpu.memory_space<vmem>>, %arg4: memref<1x64x2xf32, #tpu.memory_space<vmem>>, %arg5: memref<1x384xf32, #tpu.memory_space<vmem>>, %arg6: memref<384x1xf32, #tpu.memory_space<vmem>>, %arg7: memref<1x32x384xf32, #tpu.memory_space<vmem>>) attributes {dimension_semantics = [#tpu.dimension_semantics<parallel>], iteration_bounds = array<i64: 4>, scalar_prefetch = 0 : i64, scratch_operands = 0 : i64, tpu.core_type = #tpu.core_type<tc>, window_params = [{transform_indices = @transform_0, window_bounds = array<i64: 1, 4, 384>}, {transform_indices = @transform_1, window_bounds = array<i64: 1, 144, 4>}, {transform_indices = @transform_2, window_bounds = array<i64: 1, 288, 16>}, {transform_indices = @transform_3, window_bounds = array<i64: 1, 64, 2>}, {pipeline_mode = #tpu.pipeline_mode<synchronous>, transform_indices = @transform_4, window_bounds = array<i64: 1, 384>}, {pipeline_mode = #tpu.pipeline_mode<synchronous>, transform_indices = @transform_5, window_bounds = array<i64: 384, 1>}, {transform_indices = @transform_6, window_bounds = array<i64: 1, 32, 384>}]} {
    %c0 = arith.constant 0 : index
    %c0_0 = arith.constant 0 : index
    %c0_1 = arith.constant 0 : index
    %0 = vector.load %arg1[%c0, %c0_0, %c0_1] : memref<1x4x384xf32, #tpu.memory_space<vmem>>, vector<1x4x384xf32>
    %1 = vector.shape_cast %0 : vector<1x4x384xf32> to vector<4x384xf32>
    %c0_2 = arith.constant 0 : index
    %c0_3 = arith.constant 0 : index
    %c0_4 = arith.constant 0 : index
    %2 = vector.load %arg2[%c0_2, %c0_3, %c0_4] : memref<1x144x4xf32, #tpu.memory_space<vmem>>, vector<1x144x4xf32>
    %3 = vector.shape_cast %2 : vector<1x144x4xf32> to vector<144x4xf32>
    %c0_5 = arith.constant 0 : index
    %c0_6 = arith.constant 0 : index
    %c0_7 = arith.constant 0 : index
    %4 = vector.load %arg3[%c0_5, %c0_6, %c0_7] : memref<1x288x16xf32, #tpu.memory_space<vmem>>, vector<1x288x16xf32>
    %5 = vector.shape_cast %4 : vector<1x288x16xf32> to vector<288x16xf32>
    %c0_8 = arith.constant 0 : index
    %c0_9 = arith.constant 0 : index
    %c0_10 = arith.constant 0 : index
    %6 = vector.load %arg4[%c0_8, %c0_9, %c0_10] : memref<1x64x2xf32, #tpu.memory_space<vmem>>, vector<1x64x2xf32>
    %7 = vector.shape_cast %6 : vector<1x64x2xf32> to vector<64x2xf32>
    %c0_11 = arith.constant 0 : index
    %c0_12 = arith.constant 0 : index
    %8 = vector.load %arg5[%c0_11, %c0_12] : memref<1x384xf32, #tpu.memory_space<vmem>>, vector<1x384xf32>
    %c0_13 = arith.constant 0 : index
    %c0_14 = arith.constant 0 : index
    %9 = vector.load %arg6[%c0_13, %c0_14] : memref<384x1xf32, #tpu.memory_space<vmem>>, vector<384x1xf32>
    %c17_i32 = arith.constant 17 : i32
    %10 = tpu.dynamic_rotate %1 by %c17_i32 dim 1 : vector<4x384xf32>, i32 -> vector<4x384xf32>
    %11 = vector.extract_strided_slice %3 {offsets = [0, 0], sizes = [16, 4], strides = [1, 1]} : vector<144x4xf32> to vector<16x4xf32>
    %cst = arith.constant dense<0.000000e+00> : vector<16x384xf32>
    %12 = tpu.matmul %11, %10, %cst {dimension_numbers = #tpu.dot_dimension_numbers<[1], [0], [0], [1], [0, 0, 1, 1], [], []>} : vector<16x4xf32>, vector<4x384xf32>, vector<16x384xf32> -> vector<16x384xf32>
    %c16_i32 = arith.constant 16 : i32
    %13 = tpu.dynamic_rotate %1 by %c16_i32 dim 1 : vector<4x384xf32>, i32 -> vector<4x384xf32>
    %14 = vector.extract_strided_slice %3 {offsets = [16, 0], sizes = [16, 4], strides = [1, 1]} : vector<144x4xf32> to vector<16x4xf32>
    %cst_15 = arith.constant dense<0.000000e+00> : vector<16x384xf32>
    %15 = tpu.matmul %14, %13, %cst_15 {dimension_numbers = #tpu.dot_dimension_numbers<[1], [0], [0], [1], [0, 0, 1, 1], [], []>} : vector<16x4xf32>, vector<4x384xf32>, vector<16x384xf32> -> vector<16x384xf32>
    %16 = arith.addf %12, %15 : vector<16x384xf32>
    %c15_i32 = arith.constant 15 : i32
    %17 = tpu.dynamic_rotate %1 by %c15_i32 dim 1 : vector<4x384xf32>, i32 -> vector<4x384xf32>
    %18 = vector.extract_strided_slice %3 {offsets = [32, 0], sizes = [16, 4], strides = [1, 1]} : vector<144x4xf32> to vector<16x4xf32>
    %cst_16 = arith.constant dense<0.000000e+00> : vector<16x384xf32>
    %19 = tpu.matmul %18, %17, %cst_16 {dimension_numbers = #tpu.dot_dimension_numbers<[1], [0], [0], [1], [0, 0, 1, 1], [], []>} : vector<16x4xf32>, vector<4x384xf32>, vector<16x384xf32> -> vector<16x384xf32>
    %20 = arith.addf %16, %19 : vector<16x384xf32>
    %c1_i32 = arith.constant 1 : i32
    %21 = tpu.dynamic_rotate %1 by %c1_i32 dim 1 : vector<4x384xf32>, i32 -> vector<4x384xf32>
    %22 = vector.extract_strided_slice %3 {offsets = [48, 0], sizes = [16, 4], strides = [1, 1]} : vector<144x4xf32> to vector<16x4xf32>
    %cst_17 = arith.constant dense<0.000000e+00> : vector<16x384xf32>
    %23 = tpu.matmul %22, %21, %cst_17 {dimension_numbers = #tpu.dot_dimension_numbers<[1], [0], [0], [1], [0, 0, 1, 1], [], []>} : vector<16x4xf32>, vector<4x384xf32>, vector<16x384xf32> -> vector<16x384xf32>
    %24 = arith.addf %20, %23 : vector<16x384xf32>
    %25 = vector.extract_strided_slice %3 {offsets = [64, 0], sizes = [16, 4], strides = [1, 1]} : vector<144x4xf32> to vector<16x4xf32>
    %cst_18 = arith.constant dense<0.000000e+00> : vector<16x384xf32>
    %26 = tpu.matmul %25, %1, %cst_18 {dimension_numbers = #tpu.dot_dimension_numbers<[1], [0], [0], [1], [0, 0, 1, 1], [], []>} : vector<16x4xf32>, vector<4x384xf32>, vector<16x384xf32> -> vector<16x384xf32>
    %27 = arith.addf %24, %26 : vector<16x384xf32>
    %c383_i32 = arith.constant 383 : i32
    %28 = tpu.dynamic_rotate %1 by %c383_i32 dim 1 : vector<4x384xf32>, i32 -> vector<4x384xf32>
    %29 = vector.extract_strided_slice %3 {offsets = [80, 0], sizes = [16, 4], strides = [1, 1]} : vector<144x4xf32> to vector<16x4xf32>
    %cst_19 = arith.constant dense<0.000000e+00> : vector<16x384xf32>
    %30 = tpu.matmul %29, %28, %cst_19 {dimension_numbers = #tpu.dot_dimension_numbers<[1], [0], [0], [1], [0, 0, 1, 1], [], []>} : vector<16x4xf32>, vector<4x384xf32>, vector<16x384xf32> -> vector<16x384xf32>
    %31 = arith.addf %27, %30 : vector<16x384xf32>
    %c369_i32 = arith.constant 369 : i32
    %32 = tpu.dynamic_rotate %1 by %c369_i32 dim 1 : vector<4x384xf32>, i32 -> vector<4x384xf32>
    %33 = vector.extract_strided_slice %3 {offsets = [96, 0], sizes = [16, 4], strides = [1, 1]} : vector<144x4xf32> to vector<16x4xf32>
    %cst_20 = arith.constant dense<0.000000e+00> : vector<16x384xf32>
    %34 = tpu.matmul %33, %32, %cst_20 {dimension_numbers = #tpu.dot_dimension_numbers<[1], [0], [0], [1], [0, 0, 1, 1], [], []>} : vector<16x4xf32>, vector<4x384xf32>, vector<16x384xf32> -> vector<16x384xf32>
    %35 = arith.addf %31, %34 : vector<16x384xf32>
    %c368_i32 = arith.constant 368 : i32
    %36 = tpu.dynamic_rotate %1 by %c368_i32 dim 1 : vector<4x384xf32>, i32 -> vector<4x384xf32>
    %37 = vector.extract_strided_slice %3 {offsets = [112, 0], sizes = [16, 4], strides = [1, 1]} : vector<144x4xf32> to vector<16x4xf32>
    %cst_21 = arith.constant dense<0.000000e+00> : vector<16x384xf32>
    %38 = tpu.matmul %37, %36, %cst_21 {dimension_numbers = #tpu.dot_dimension_numbers<[1], [0], [0], [1], [0, 0, 1, 1], [], []>} : vector<16x4xf32>, vector<4x384xf32>, vector<16x384xf32> -> vector<16x384xf32>
    %39 = arith.addf %35, %38 : vector<16x384xf32>
    %c367_i32 = arith.constant 367 : i32
    %40 = tpu.dynamic_rotate %1 by %c367_i32 dim 1 : vector<4x384xf32>, i32 -> vector<4x384xf32>
    %41 = vector.extract_strided_slice %3 {offsets = [128, 0], sizes = [16, 4], strides = [1, 1]} : vector<144x4xf32> to vector<16x4xf32>
    %cst_22 = arith.constant dense<0.000000e+00> : vector<16x384xf32>
    %42 = tpu.matmul %41, %40, %cst_22 {dimension_numbers = #tpu.dot_dimension_numbers<[1], [0], [0], [1], [0, 0, 1, 1], [], []>} : vector<16x4xf32>, vector<4x384xf32>, vector<16x384xf32> -> vector<16x384xf32>
    %43 = arith.addf %39, %42 : vector<16x384xf32>
    %cst_23 = arith.constant dense<0.000000e+00> : vector<16x1xf32>
    %44 = tpu.matmul %43, %9, %cst_23 {dimension_numbers = #tpu.dot_dimension_numbers<[1], [0], [0], [1], [0, 0, 1, 1], [], []>} : vector<16x384xf32>, vector<384x1xf32>, vector<16x1xf32> -> vector<16x1xf32>
    %45 = arith.mulf %43, %43 : vector<16x384xf32>
    %cst_24 = arith.constant dense<0.000000e+00> : vector<16x1xf32>
    %46 = tpu.matmul %45, %9, %cst_24 {dimension_numbers = #tpu.dot_dimension_numbers<[1], [0], [0], [1], [0, 0, 1, 1], [], []>} : vector<16x384xf32>, vector<384x1xf32>, vector<16x1xf32> -> vector<16x1xf32>
    %cst_25 = arith.constant 7.812500e-03 : f32
    %47 = vector.broadcast %cst_25 : f32 to vector<16x1xf32>
    %48 = arith.mulf %44, %47 : vector<16x1xf32>
    %cst_26 = arith.constant 7.812500e-03 : f32
    %49 = vector.broadcast %cst_26 : f32 to vector<16x1xf32>
    %50 = arith.mulf %46, %49 : vector<16x1xf32>
    %51 = arith.mulf %48, %48 : vector<16x1xf32>
    %52 = arith.subf %50, %51 : vector<16x1xf32>
    %cst_27 = arith.constant 9.99999974E-6 : f32
    %53 = vector.broadcast %cst_27 : f32 to vector<16x1xf32>
    %54 = arith.addf %52, %53 : vector<16x1xf32>
    %55 = math.rsqrt %54 : vector<16x1xf32>
    %56 = vector.broadcast %48 : vector<16x1xf32> to vector<16x384xf32>
    %57 = arith.subf %43, %56 : vector<16x384xf32>
    %58 = vector.broadcast %55 : vector<16x1xf32> to vector<16x384xf32>
    %59 = arith.mulf %57, %58 : vector<16x384xf32>
    %cst_28 = arith.constant 0.000000e+00 : f32
    %60 = vector.broadcast %cst_28 : f32 to vector<16x384xf32>
    %61 = arith.maximumf %59, %60 : vector<16x384xf32>
    %62 = vector.broadcast %8 : vector<1x384xf32> to vector<16x384xf32>
    %63 = arith.mulf %61, %62 : vector<16x384xf32>
    %c17_i32_29 = arith.constant 17 : i32
    %64 = tpu.dynamic_rotate %63 by %c17_i32_29 dim 1 : vector<16x384xf32>, i32 -> vector<16x384xf32>
    %65 = vector.extract_strided_slice %5 {offsets = [0, 0], sizes = [32, 16], strides = [1, 1]} : vector<288x16xf32> to vector<32x16xf32>
    %cst_30 = arith.constant dense<0.000000e+00> : vector<32x384xf32>
    %66 = tpu.matmul %65, %64, %cst_30 {dimension_numbers = #tpu.dot_dimension_numbers<[1], [0], [0], [1], [0, 0, 1, 1], [], []>} : vector<32x16xf32>, vector<16x384xf32>, vector<32x384xf32> -> vector<32x384xf32>
    %c16_i32_31 = arith.constant 16 : i32
    %67 = tpu.dynamic_rotate %63 by %c16_i32_31 dim 1 : vector<16x384xf32>, i32 -> vector<16x384xf32>
    %68 = vector.extract_strided_slice %5 {offsets = [32, 0], sizes = [32, 16], strides = [1, 1]} : vector<288x16xf32> to vector<32x16xf32>
    %cst_32 = arith.constant dense<0.000000e+00> : vector<32x384xf32>
    %69 = tpu.matmul %68, %67, %cst_32 {dimension_numbers = #tpu.dot_dimension_numbers<[1], [0], [0], [1], [0, 0, 1, 1], [], []>} : vector<32x16xf32>, vector<16x384xf32>, vector<32x384xf32> -> vector<32x384xf32>
    %70 = arith.addf %66, %69 : vector<32x384xf32>
    %c15_i32_33 = arith.constant 15 : i32
    %71 = tpu.dynamic_rotate %63 by %c15_i32_33 dim 1 : vector<16x384xf32>, i32 -> vector<16x384xf32>
    %72 = vector.extract_strided_slice %5 {offsets = [64, 0], sizes = [32, 16], strides = [1, 1]} : vector<288x16xf32> to vector<32x16xf32>
    %cst_34 = arith.constant dense<0.000000e+00> : vector<32x384xf32>
    %73 = tpu.matmul %72, %71, %cst_34 {dimension_numbers = #tpu.dot_dimension_numbers<[1], [0], [0], [1], [0, 0, 1, 1], [], []>} : vector<32x16xf32>, vector<16x384xf32>, vector<32x384xf32> -> vector<32x384xf32>
    %74 = arith.addf %70, %73 : vector<32x384xf32>
    %c1_i32_35 = arith.constant 1 : i32
    %75 = tpu.dynamic_rotate %63 by %c1_i32_35 dim 1 : vector<16x384xf32>, i32 -> vector<16x384xf32>
    %76 = vector.extract_strided_slice %5 {offsets = [96, 0], sizes = [32, 16], strides = [1, 1]} : vector<288x16xf32> to vector<32x16xf32>
    %cst_36 = arith.constant dense<0.000000e+00> : vector<32x384xf32>
    %77 = tpu.matmul %76, %75, %cst_36 {dimension_numbers = #tpu.dot_dimension_numbers<[1], [0], [0], [1], [0, 0, 1, 1], [], []>} : vector<32x16xf32>, vector<16x384xf32>, vector<32x384xf32> -> vector<32x384xf32>
    %78 = arith.addf %74, %77 : vector<32x384xf32>
    %79 = vector.extract_strided_slice %5 {offsets = [128, 0], sizes = [32, 16], strides = [1, 1]} : vector<288x16xf32> to vector<32x16xf32>
    %cst_37 = arith.constant dense<0.000000e+00> : vector<32x384xf32>
    %80 = tpu.matmul %79, %63, %cst_37 {dimension_numbers = #tpu.dot_dimension_numbers<[1], [0], [0], [1], [0, 0, 1, 1], [], []>} : vector<32x16xf32>, vector<16x384xf32>, vector<32x384xf32> -> vector<32x384xf32>
    %81 = arith.addf %78, %80 : vector<32x384xf32>
    %c383_i32_38 = arith.constant 383 : i32
    %82 = tpu.dynamic_rotate %63 by %c383_i32_38 dim 1 : vector<16x384xf32>, i32 -> vector<16x384xf32>
    %83 = vector.extract_strided_slice %5 {offsets = [160, 0], sizes = [32, 16], strides = [1, 1]} : vector<288x16xf32> to vector<32x16xf32>
    %cst_39 = arith.constant dense<0.000000e+00> : vector<32x384xf32>
    %84 = tpu.matmul %83, %82, %cst_39 {dimension_numbers = #tpu.dot_dimension_numbers<[1], [0], [0], [1], [0, 0, 1, 1], [], []>} : vector<32x16xf32>, vector<16x384xf32>, vector<32x384xf32> -> vector<32x384xf32>
    %85 = arith.addf %81, %84 : vector<32x384xf32>
    %c369_i32_40 = arith.constant 369 : i32
    %86 = tpu.dynamic_rotate %63 by %c369_i32_40 dim 1 : vector<16x384xf32>, i32 -> vector<16x384xf32>
    %87 = vector.extract_strided_slice %5 {offsets = [192, 0], sizes = [32, 16], strides = [1, 1]} : vector<288x16xf32> to vector<32x16xf32>
    %cst_41 = arith.constant dense<0.000000e+00> : vector<32x384xf32>
    %88 = tpu.matmul %87, %86, %cst_41 {dimension_numbers = #tpu.dot_dimension_numbers<[1], [0], [0], [1], [0, 0, 1, 1], [], []>} : vector<32x16xf32>, vector<16x384xf32>, vector<32x384xf32> -> vector<32x384xf32>
    %89 = arith.addf %85, %88 : vector<32x384xf32>
    %c368_i32_42 = arith.constant 368 : i32
    %90 = tpu.dynamic_rotate %63 by %c368_i32_42 dim 1 : vector<16x384xf32>, i32 -> vector<16x384xf32>
    %91 = vector.extract_strided_slice %5 {offsets = [224, 0], sizes = [32, 16], strides = [1, 1]} : vector<288x16xf32> to vector<32x16xf32>
    %cst_43 = arith.constant dense<0.000000e+00> : vector<32x384xf32>
    %92 = tpu.matmul %91, %90, %cst_43 {dimension_numbers = #tpu.dot_dimension_numbers<[1], [0], [0], [1], [0, 0, 1, 1], [], []>} : vector<32x16xf32>, vector<16x384xf32>, vector<32x384xf32> -> vector<32x384xf32>
    %93 = arith.addf %89, %92 : vector<32x384xf32>
    %c367_i32_44 = arith.constant 367 : i32
    %94 = tpu.dynamic_rotate %63 by %c367_i32_44 dim 1 : vector<16x384xf32>, i32 -> vector<16x384xf32>
    %95 = vector.extract_strided_slice %5 {offsets = [256, 0], sizes = [32, 16], strides = [1, 1]} : vector<288x16xf32> to vector<32x16xf32>
    %cst_45 = arith.constant dense<0.000000e+00> : vector<32x384xf32>
    %96 = tpu.matmul %95, %94, %cst_45 {dimension_numbers = #tpu.dot_dimension_numbers<[1], [0], [0], [1], [0, 0, 1, 1], [], []>} : vector<32x16xf32>, vector<16x384xf32>, vector<32x384xf32> -> vector<32x384xf32>
    %97 = arith.addf %93, %96 : vector<32x384xf32>
    %98 = tpu.iota {dimensions = array<i32: 1>} : vector<1x384xi32>
    %99 = vector.extract_strided_slice %7 {offsets = [0, 0], sizes = [32, 1], strides = [1, 1]} : vector<64x2xf32> to vector<32x1xf32>
    %100 = vector.shape_cast %99 : vector<32x1xf32> to vector<32x1xf32>
    %101 = vector.broadcast %100 : vector<32x1xf32> to vector<32x384xf32>
    %102 = vector.extract_strided_slice %7 {offsets = [32, 0], sizes = [32, 1], strides = [1, 1]} : vector<64x2xf32> to vector<32x1xf32>
    %103 = vector.shape_cast %102 : vector<32x1xf32> to vector<32x1xf32>
    %104 = vector.broadcast %103 : vector<32x1xf32> to vector<32x384xf32>
    %c160_i32 = arith.constant 160 : i32
    %105 = vector.broadcast %c160_i32 : i32 to vector<1x384xi32>
    %106 = arith.cmpi sge, %98, %105 : vector<1x384xi32>
    %107 = vector.shape_cast %106 : vector<1x384xi1> to vector<1x384xi1>
    %108 = vector.broadcast %107 : vector<1x384xi1> to vector<32x384xi1>
    %109 = vector.extract_strided_slice %7 {offsets = [0, 1], sizes = [32, 1], strides = [1, 1]} : vector<64x2xf32> to vector<32x1xf32>
    %110 = vector.shape_cast %109 : vector<32x1xf32> to vector<32x1xf32>
    %111 = vector.broadcast %110 : vector<32x1xf32> to vector<32x384xf32>
    %112 = arith.select %108, %111, %101 : vector<32x384xi1>, vector<32x384xf32>
    %113 = vector.extract_strided_slice %7 {offsets = [32, 1], sizes = [32, 1], strides = [1, 1]} : vector<64x2xf32> to vector<32x1xf32>
    %114 = vector.shape_cast %113 : vector<32x1xf32> to vector<32x1xf32>
    %115 = vector.broadcast %114 : vector<32x1xf32> to vector<32x384xf32>
    %116 = arith.select %108, %115, %104 : vector<32x384xi1>, vector<32x384xf32>
    %117 = arith.mulf %97, %112 : vector<32x384xf32>
    %118 = arith.addf %117, %116 : vector<32x384xf32>
    %cst_46 = arith.constant dense<0.000000e+00> : vector<32x1xf32>
    %119 = tpu.matmul %118, %9, %cst_46 {dimension_numbers = #tpu.dot_dimension_numbers<[1], [0], [0], [1], [0, 0, 1, 1], [], []>} : vector<32x384xf32>, vector<384x1xf32>, vector<32x1xf32> -> vector<32x1xf32>
    %120 = arith.mulf %118, %118 : vector<32x384xf32>
    %cst_47 = arith.constant dense<0.000000e+00> : vector<32x1xf32>
    %121 = tpu.matmul %120, %9, %cst_47 {dimension_numbers = #tpu.dot_dimension_numbers<[1], [0], [0], [1], [0, 0, 1, 1], [], []>} : vector<32x384xf32>, vector<384x1xf32>, vector<32x1xf32> -> vector<32x1xf32>
    %cst_48 = arith.constant 7.812500e-03 : f32
    %122 = vector.broadcast %cst_48 : f32 to vector<32x1xf32>
    %123 = arith.mulf %119, %122 : vector<32x1xf32>
    %cst_49 = arith.constant 7.812500e-03 : f32
    %124 = vector.broadcast %cst_49 : f32 to vector<32x1xf32>
    %125 = arith.mulf %121, %124 : vector<32x1xf32>
    %126 = arith.mulf %123, %123 : vector<32x1xf32>
    %127 = arith.subf %125, %126 : vector<32x1xf32>
    %cst_50 = arith.constant 9.99999974E-6 : f32
    %128 = vector.broadcast %cst_50 : f32 to vector<32x1xf32>
    %129 = arith.addf %127, %128 : vector<32x1xf32>
    %130 = math.rsqrt %129 : vector<32x1xf32>
    %131 = vector.broadcast %123 : vector<32x1xf32> to vector<32x384xf32>
    %132 = arith.subf %118, %131 : vector<32x384xf32>
    %133 = vector.broadcast %130 : vector<32x1xf32> to vector<32x384xf32>
    %134 = arith.mulf %132, %133 : vector<32x384xf32>
    %cst_51 = arith.constant 0.000000e+00 : f32
    %135 = vector.broadcast %cst_51 : f32 to vector<32x384xf32>
    %136 = arith.maximumf %134, %135 : vector<32x384xf32>
    %c0_52 = arith.constant 0 : index
    %c0_53 = arith.constant 0 : index
    %c0_54 = arith.constant 0 : index
    %137 = vector.load %arg7[%c0_52, %c0_53, %c0_54] : memref<1x32x384xf32, #tpu.memory_space<vmem>>, vector<1x32x384xf32>
    %138 = vector.shape_cast %137 : vector<1x32x384xf32> to vector<32x384xf32>
    %139 = vector.shape_cast %136 : vector<32x384xf32> to vector<1x32x384xf32>
    tpu.vector_store %arg7[%c0_52, %c0_53, %c0_54], %139 {strides = array<i32>} : memref<1x32x384xf32, #tpu.memory_space<vmem>>, vector<1x32x384xf32>,
    return
  }
  func.func @transform_0(%arg0: i32) -> (i32, i32, i32) {
    %c0_i32 = arith.constant 0 : i32
    %c0_i32_0 = arith.constant 0 : i32
    %c0_i32_1 = arith.constant 0 : i32
    return %arg0, %c0_i32, %c0_i32_0 : i32, i32, i32
  }
  func.func @transform_1(%arg0: i32) -> (i32, i32, i32) {
    %c0_i32 = arith.constant 0 : i32
    %c0_i32_0 = arith.constant 0 : i32
    %c0_i32_1 = arith.constant 0 : i32
    return %arg0, %c0_i32, %c0_i32_0 : i32, i32, i32
  }
  func.func @transform_2(%arg0: i32) -> (i32, i32, i32) {
    %c0_i32 = arith.constant 0 : i32
    %c0_i32_0 = arith.constant 0 : i32
    %c0_i32_1 = arith.constant 0 : i32
    return %arg0, %c0_i32, %c0_i32_0 : i32, i32, i32
  }
  func.func @transform_3(%arg0: i32) -> (i32, i32, i32) {
    %c0_i32 = arith.constant 0 : i32
    %c0_i32_0 = arith.constant 0 : i32
    %c0_i32_1 = arith.constant 0 : i32
    return %arg0, %c0_i32, %c0_i32_0 : i32, i32, i32
  }
  func.func @transform_4(%arg0: i32) -> (i32, i32) {
    %c0_i32 = arith.constant 0 : i32
    %c0_i32_0 = arith.constant 0 : i32
    %c0_i32_1 = arith.constant 0 : i32
    return %c0_i32, %c0_i32_0 : i32, i32
  }
  func.func @transform_5(%arg0: i32) -> (i32, i32) {
    %c0_i32 = arith.constant 0 : i32
    %c0_i32_0 = arith.constant 0 : i32
    %c0_i32_1 = arith.constant 0 : i32
    return %c0_i32, %c0_i32_0 : i32, i32
  }
  func.func @transform_6(%arg0: i32) -> (i32, i32, i32) {
    %c0_i32 = arith.constant 0 : i32
    %c0_i32_0 = arith.constant 0 : i32
    %c0_i32_1 = arith.constant 0 : i32
    return %arg0, %c0_i32, %c0_i32_0 : i32, i32, i32
  }
}

</mosaic_0001>

<llo_original>
// kernel: tpu_custom_call.1
$region0: #{tpu_custom_call.1}
  #allocation0 [shape = 'u32[]', space=smem, size = 0x4, offset = 0x4, fixed_abs, tag = 'smem constant byte address 0x4 - core index']
  #allocation1 [shape = 'u32[144,128]{1,0:T(1,128)}', space=vmem, size = 0x12000, scoped, tag = 'internal scratch']
  %s0 = inlined_call_operand.vmem [shape: f32[4,4,384], index: 0, kind: input, shape index: {}]
  %s1 = inlined_call_operand.vmem [shape: f32[4,144,4], index: 1, kind: input, shape index: {}]
  %s2 = inlined_call_operand.vmem [shape: f32[4,288,16], index: 2, kind: input, shape index: {}]
  %s3 = inlined_call_operand.vmem [shape: f32[4,64,2], index: 3, kind: input, shape index: {}]
  %s4 = inlined_call_operand.vmem [shape: f32[1,384], index: 4, kind: input, shape index: {}]
  %s5 = inlined_call_operand.vmem [shape: f32[384,1], index: 5, kind: input, shape index: {}]
  %s6 = inlined_call_operand.hbm [shape: f32[4,32,384], index: 6, kind: output, shape index: {}]
  %s7 = sld [smem:[#allocation0]]
  $region57: #{tpu_custom_call.1} parent=0
    _
  %s9 = ssub.s32 1, %s7
  %s10 = scalar_select 0, %s9, %s7
  $region1: #{tpu_custom_call.1} parent=0
    #allocation2 [shape = 'u8[98304]{0}', space=vmem, size = 0x18000, scoped, tag = 'output window, operand 0']
    #allocation3 [shape = 's32[2]{0}', space=sflag, size = 0x8, scoped, tag = 'scoped memory for tpu_custom_call.1']
    %11 = vsyncpa [#allocation3], 0
    %s12 = scalar_lea.sflag [#allocation3], 1
    %13 = vsyncpa %s12, 0
    loop: start=0, step=1, limit=6
    $region2: #{tpu_custom_call.1} parent=1 // loop_pre_header
      _
    $region3: #{tpu_custom_call.1} parent=1 // loop_header
      %s15 = sphi 0, %s19
      %p16 = scmp.ge.s32.totalorder %s15, 6
      %s25 = sphi 0, %s27
      %s28 = sphi 0, %s25
      %s29 = sphi 0, %s28
      %s45 = sphi 0, %s29
      %s51 = sphi 0, %s53
      %s54 = sphi 0, %s51
      %s55 = sphi 0, %s54
      %s71 = sphi 0, %s55
      %s77 = sphi 0, %s79
      %s80 = sphi 0, %s77
      %s81 = sphi 0, %s80
      %s97 = sphi 0, %s81
      %s103 = sphi 0, %s105
      %s106 = sphi 0, %s103
      %s107 = sphi 0, %s106
      %s123 = sphi 0, %s107
      %s127 = sphi 0, %s127
      %s129 = sphi 0, %s127
      %s130 = sphi 0, %s129
      %s144 = sphi 0, %s130
      %s148 = sphi 0, %s148
      %s150 = sphi 0, %s148
      %s151 = sphi 0, %s150
      %s165 = sphi 0, %s151
      %s171 = sphi 0, %s173
      %s174 = sphi 0, %s171
      %s175 = sphi 0, %s174
      %s191 = sphi 0, %s175
    $region4: #{tpu_custom_call.1} parent=1 // loop_header_branch
      %18 = sbr.rel (%p16) target = $region8
    $region5: #{tpu_custom_call.1} parent=1 // loop_body
      %s20 = ssub.s32 %s15, 1
      %s21 = ssub.s32 %s15, 2
      %s22 = sadd.s32 %s15, 1
      %s23 = ssub.s32 %s15, %s22
      %p24 = scmp.eq.s32.totalorder %s23, 0
      %s26 = sadd.s32 %s25, 1
      %s27 = scalar_select %p24, %s25, %s26
      %p30 = pneg %p24
      %p31 = scmp.eq.s32.totalorder %s15, 3
      %p32 = por %p30, %p31
      %p33 = scmp.ne.s32.totalorder %s25, %s28
      %p34 = scmp.eq.s32.totalorder %s15, 0
      %p35 = por %p33, %p34
      %p36 = scmp.ne.s32.totalorder %s25, %s28
      %p37 = scmp.eq.s32.totalorder %s20, 3
      %p38 = por %p36, %p37
      %p39 = scmp.ne.s32.totalorder %s28, %s29
      %p40 = scmp.eq.s32.totalorder %s20, 0
      %p41 = por %p39, %p40
      %p42 = scmp.ne.s32.totalorder %s28, %s29
      %p43 = scmp.eq.s32.totalorder %s21, 3
      %p44 = por %p42, %p43
      %p46 = scmp.ne.s32.totalorder %s29, %s45
      %p47 = scmp.eq.s32.totalorder %s21, 0
      %p48 = por %p46, %p47
      %s49 = ssub.s32 %s15, %s22
      %p50 = scmp.eq.s32.totalorder %s49, 0
      %s52 = sadd.s32 %s51, 1
      %s53 = scalar_select %p50, %s51, %s52
      %p56 = pneg %p50
      %p57 = scmp.eq.s32.totalorder %s15, 3
      %p58 = por %p56, %p57
      %p59 = scmp.ne.s32.totalorder %s51, %s54
      %p60 = scmp.eq.s32.totalorder %s15, 0
      %p61 = por %p59, %p60
      %p62 = scmp.ne.s32.totalorder %s51, %s54
      %p63 = scmp.eq.s32.totalorder %s20, 3
      %p64 = por %p62, %p63
      %p65 = scmp.ne.s32.totalorder %s54, %s55
      %p66 = scmp.eq.s32.totalorder %s20, 0
      %p67 = por %p65, %p66
      %p68 = scmp.ne.s32.totalorder %s54, %s55
      %p69 = scmp.eq.s32.totalorder %s21, 3
      %p70 = por %p68, %p69
      %p72 = scmp.ne.s32.totalorder %s55, %s71
      %p73 = scmp.eq.s32.totalorder %s21, 0
      %p74 = por %p72, %p73
      %s75 = ssub.s32 %s15, %s22
      %p76 = scmp.eq.s32.totalorder %s75, 0
      %s78 = sadd.s32 %s77, 1
      %s79 = scalar_select %p76, %s77, %s78
      %p82 = pneg %p76
      %p83 = scmp.eq.s32.totalorder %s15, 3
      %p84 = por %p82, %p83
      %p85 = scmp.ne.s32.totalorder %s77, %s80
      %p86 = scmp.eq.s32.totalorder %s15, 0
      %p87 = por %p85, %p86
      %p88 = scmp.ne.s32.totalorder %s77, %s80
      %p89 = scmp.eq.s32.totalorder %s20, 3
      %p90 = por %p88, %p89
      %p91 = scmp.ne.s32.totalorder %s80, %s81
      %p92 = scmp.eq.s32.totalorder %s20, 0
      %p93 = por %p91, %p92
      %p94 = scmp.ne.s32.totalorder %s80, %s81
      %p95 = scmp.eq.s32.totalorder %s21, 3
      %p96 = por %p94, %p95
      %p98 = scmp.ne.s32.totalorder %s81, %s97
      %p99 = scmp.eq.s32.totalorder %s21, 0
      %p100 = por %p98, %p99
      %s101 = ssub.s32 %s15, %s22
      %p102 = scmp.eq.s32.totalorder %s101, 0
      %s104 = sadd.s32 %s103, 1
      %s105 = scalar_select %p102, %s103, %s104
      %p108 = pneg %p102
      %p109 = scmp.eq.s32.totalorder %s15, 3
      %p110 = por %p108, %p109
      %p111 = scmp.ne.s32.totalorder %s103, %s106
      %p112 = scmp.eq.s32.totalorder %s15, 0
      %p113 = por %p111, %p112
      %p114 = scmp.ne.s32.totalorder %s103, %s106
      %p115 = scmp.eq.s32.totalorder %s20, 3
      %p116 = por %p114, %p115
      %p117 = scmp.ne.s32.totalorder %s106, %s107
      %p118 = scmp.eq.s32.totalorder %s20, 0
      %p119 = por %p117, %p118
      %p120 = scmp.ne.s32.totalorder %s106, %s107
      %p121 = scmp.eq.s32.totalorder %s21, 3
      %p122 = por %p120, %p121
      %p124 = scmp.ne.s32.totalorder %s107, %s123
      %p125 = scmp.eq.s32.totalorder %s21, 0
      %p126 = por %p124, %p125
      %s128 = sadd.s32 %s127, 1
      %p131 = scmp.eq.s32.totalorder %s15, 3
      %p132 = scmp.ne.s32.totalorder %s127, %s129
      %p133 = scmp.eq.s32.totalorder %s15, 0
      %p134 = por %p132, %p133
      %p135 = scmp.ne.s32.totalorder %s127, %s129
      %p136 = scmp.eq.s32.totalorder %s20, 3
      %p137 = por %p135, %p136
      %p138 = scmp.ne.s32.totalorder %s129, %s130
      %p139 = scmp.eq.s32.totalorder %s20, 0
      %p140 = por %p138, %p139
      %p141 = scmp.ne.s32.totalorder %s129, %s130
      %p142 = scmp.eq.s32.totalorder %s21, 3
      %p143 = por %p141, %p142
      %p145 = scmp.ne.s32.totalorder %s130, %s144
      %p146 = scmp.eq.s32.totalorder %s21, 0
      %p147 = por %p145, %p146
      %s149 = sadd.s32 %s148, 1
      %p152 = scmp.eq.s32.totalorder %s15, 3
      %p153 = scmp.ne.s32.totalorder %s148, %s150
      %p154 = scmp.eq.s32.totalorder %s15, 0
      %p155 = por %p153, %p154
      %p156 = scmp.ne.s32.totalorder %s148, %s150
      %p157 = scmp.eq.s32.totalorder %s20, 3
      %p158 = por %p156, %p157
      %p159 = scmp.ne.s32.totalorder %s150, %s151
      %p160 = scmp.eq.s32.totalorder %s20, 0
      %p161 = por %p159, %p160
      %p162 = scmp.ne.s32.totalorder %s150, %s151
      %p163 = scmp.eq.s32.totalorder %s21, 3
      %p164 = por %p162, %p163
      %p166 = scmp.ne.s32.totalorder %s151, %s165
      %p167 = scmp.eq.s32.totalorder %s21, 0
      %p168 = por %p166, %p167
      %s169 = ssub.s32 %s15, %s22
      %p170 = scmp.eq.s32.totalorder %s169, 0
      %s172 = sadd.s32 %s171, 1
      %s173 = scalar_select %p170, %s171, %s172
      %p176 = pneg %p170
      %p177 = scmp.eq.s32.totalorder %s15, 3
      %p178 = por %p176, %p177
      %p179 = scmp.ne.s32.totalorder %s171, %s174
      %p180 = scmp.eq.s32.totalorder %s15, 0
      %p181 = por %p179, %p180
      %p182 = scmp.ne.s32.totalorder %s171, %s174
      %p183 = scmp.eq.s32.totalorder %s20, 3
      %p184 = por %p182, %p183
      %p185 = scmp.ne.s32.totalorder %s174, %s175
      %p186 = scmp.eq.s32.totalorder %s20, 0
      %p187 = por %p185, %p186
      %p188 = scmp.ne.s32.totalorder %s174, %s175
      %p189 = scmp.eq.s32.totalorder %s21, 3
      %p190 = por %p188, %p189
      %p192 = scmp.ne.s32.totalorder %s175, %s191
      %p193 = scmp.eq.s32.totalorder %s21, 0
      %p194 = por %p192, %p193
      %p195 = scmp.le.s32.totalorder 1, %s15
      %p196 = scmp.lt.s32.totalorder %s15, 5
      %p197 = pnand %p195, %p196
      %p198 = pneg %p197
      // Predicated region
      $region9: #{tpu_custom_call.1} parent=5 // pred_check
        _
      $region10: #{tpu_custom_call.1} parent=5 // pred_check_branch
        %200 = sbr.rel (%p197) target = $region12
      $region11: #{tpu_custom_call.1} parent=5 // pred_region
        %s201 = ssub.s32 %s15, 1
        // Predicated region
        $region13: #{tpu_custom_call.1} parent=11 // pred_check
          %p202 = pneg %p140
        $region14: #{tpu_custom_call.1} parent=11 // pred_check_branch
          %204 = sbr.rel (%p202) target = $region16
        $region15: #{tpu_custom_call.1} parent=11 // pred_region
          _
        $region16: #{tpu_custom_call.1} parent=11 // pred_fallthru
          _
        // Predicated region
        $region17: #{tpu_custom_call.1} parent=11 // pred_check
          %p205 = pneg %p161
        $region18: #{tpu_custom_call.1} parent=11 // pred_check_branch
          %207 = sbr.rel (%p205) target = $region20
        $region19: #{tpu_custom_call.1} parent=11 // pred_region
          _
        $region20: #{tpu_custom_call.1} parent=11 // pred_fallthru
          _
      $region12: #{tpu_custom_call.1} parent=5 // pred_fallthru
        _
      %p208 = scmp.lt.s32.totalorder %s15, 4
      // Predicated region
      $region21: #{tpu_custom_call.1} parent=5 // pred_check
        %p209 = pneg %p208
      $region22: #{tpu_custom_call.1} parent=5 // pred_check_branch
        %211 = sbr.rel (%p209) target = $region24
      $region23: #{tpu_custom_call.1} parent=5 // pred_region
        // Predicated region
        $region25: #{tpu_custom_call.1} parent=23 // pred_check
          %p212 = pneg %p35
        $region26: #{tpu_custom_call.1} parent=23 // pred_check_branch
          %214 = sbr.rel (%p212) target = $region28
        $region27: #{tpu_custom_call.1} parent=23 // pred_region
          %p215 = scmp.lt.s32.totalorder %s15, 3
          %s216 = scalar_select %p215, %s15, 3
          %s217 = smul.addr %s216, 3
          %s218 = smul.addr %s217, 4
          %s219 = scalar_lea.vmem %s0, %s218
        $region28: #{tpu_custom_call.1} parent=23 // pred_fallthru
          _
        // Predicated region
        $region29: #{tpu_custom_call.1} parent=23 // pred_check
          %p220 = pneg %p61
        $region30: #{tpu_custom_call.1} parent=23 // pred_check_branch
          %222 = sbr.rel (%p220) target = $region32
        $region31: #{tpu_custom_call.1} parent=23 // pred_region
          %p223 = scmp.lt.s32.totalorder %s15, 3
          %s224 = scalar_select %p223, %s15, 3
          %s225 = smul.addr %s224, 18
          %s226 = smul.addr %s225, 8
          %s227 = scalar_lea.vmem %s1, %s226
        $region32: #{tpu_custom_call.1} parent=23 // pred_fallthru
          _
        // Predicated region
        $region33: #{tpu_custom_call.1} parent=23 // pred_check
          %p228 = pneg %p87
        $region34: #{tpu_custom_call.1} parent=23 // pred_check_branch
          %230 = sbr.rel (%p228) target = $region36
        $region35: #{tpu_custom_call.1} parent=23 // pred_region
          %p231 = scmp.lt.s32.totalorder %s15, 3
          %s232 = scalar_select %p231, %s15, 3
          %s233 = smul.addr %s232, 36
          %s234 = smul.addr %s233, 8
          %s235 = scalar_lea.vmem %s2, %s234
        $region36: #{tpu_custom_call.1} parent=23 // pred_fallthru
          _
        // Predicated region
        $region37: #{tpu_custom_call.1} parent=23 // pred_check
          %p236 = pneg %p113
        $region38: #{tpu_custom_call.1} parent=23 // pred_check_branch
          %238 = sbr.rel (%p236) target = $region40
        $region39: #{tpu_custom_call.1} parent=23 // pred_region
          %p239 = scmp.lt.s32.totalorder %s15, 3
          %s240 = scalar_select %p239, %s15, 3
          %s241 = smul.addr %s240, 8
          %s242 = smul.addr %s241, 8
          %s243 = scalar_lea.vmem %s3, %s242
        $region40: #{tpu_custom_call.1} parent=23 // pred_fallthru
          _
      $region24: #{tpu_custom_call.1} parent=5 // pred_fallthru
        _
      %p244 = scmp.le.s32.totalorder 1, %s15
      %p245 = scmp.lt.s32.totalorder %s15, 5
      %p246 = pnand %p244, %p245
      %p247 = pneg %p246
      // Predicated region
      $region41: #{tpu_custom_call.1} parent=5 // pred_check
        _
      $region42: #{tpu_custom_call.1} parent=5 // pred_check_branch
        %249 = sbr.rel (%p246) target = $region44
      $region43: #{tpu_custom_call.1} parent=5 // pred_region
        %s250 = ssub.s32 %s15, 1
        %p251 = scmp.lt.s32.totalorder %s20, 3
        %s252 = scalar_select %p251, %s20, 3
        %s253 = smul.addr %s252, 3
        %s254 = smul.addr %s253, 4
        %s255 = scalar_lea.vmem %s0, %s254
        %p256 = pneg %p41
        %p257 = pneg %p38
        %p258 = scmp.lt.s32.totalorder %s20, 3
        %s259 = scalar_select %p258, %s20, 3
        %s260 = smul.addr %s259, 18
        %s261 = smul.addr %s260, 8
        %s262 = scalar_lea.vmem %s1, %s261
        %p263 = pneg %p67
        %p264 = pneg %p64
        %p265 = scmp.lt.s32.totalorder %s20, 3
        %s266 = scalar_select %p265, %s20, 3
        %s267 = smul.addr %s266, 36
        %s268 = smul.addr %s267, 8
        %s269 = scalar_lea.vmem %s2, %s268
        %p270 = pneg %p93
        %p271 = pneg %p90
        %p272 = scmp.lt.s32.totalorder %s20, 3
        %s273 = scalar_select %p272, %s20, 3
        %s274 = smul.addr %s273, 8
        %s275 = smul.addr %s274, 8
        %s276 = scalar_lea.vmem %s3, %s275
        %p277 = pneg %p119
        %p278 = pneg %p116
        %p279 = pneg %p140
        %p280 = pneg %p137
        %p281 = pneg %p161
        %p282 = pneg %p158
        %p283 = pneg %p187
        %p284 = pneg %p184
        %s285 = sand.u32 %s174, 1
        %s286 = scalar_lea.sflag [#allocation3], %s285
        %s287 = sand.u32 %s174, 1
        %s288 = smul.addr %s287, 96
        %s289 = scalar_lea.vmem [#allocation2], %s288
        %p290 = scmp.lt.s32.totalorder %s20, 3
        %s291 = scalar_select %p290, %s20, 3
        %s292 = smul.addr %s291, 3
        %s293 = smul.addr %s292, 4
        %s294 = scalar_lea.vmem %s0, %s293
        %p295 = scmp.lt.s32.totalorder %s20, 3
        %s296 = scalar_select %p295, %s20, 3
        %s297 = smul.addr %s296, 18
        %s298 = smul.addr %s297, 8
        %s299 = scalar_lea.vmem %s1, %s298
        %p300 = scmp.lt.s32.totalorder %s20, 3
        %s301 = scalar_select %p300, %s20, 3
        %s302 = smul.addr %s301, 36
        %s303 = smul.addr %s302, 8
        %s304 = scalar_lea.vmem %s2, %s303
        %p305 = scmp.lt.s32.totalorder %s20, 3
        %s306 = scalar_select %p305, %s20, 3
        %s307 = smul.addr %s306, 8
        %s308 = smul.addr %s307, 8
        %s309 = scalar_lea.vmem %s3, %s308
        %v310 = vld [vmem:[%s294] sm:$0xff]
        %v311 = vld [vmem:[%s294 + $0x8] sm:$0xf]
        %v312 = vld [vmem:[%s299] sm:$0xff]
        %v313 = vld [vmem:[%s299 + $0x8] sm:$0xff]
        %v314 = vld [vmem:[%s299 + $0x10] sm:$0xff]
        %v315 = vld [vmem:[%s299 + $0x18] sm:$0xff]
        %v316 = vld [vmem:[%s299 + $0x20] sm:$0xff]
        %v317 = vld [vmem:[%s299 + $0x28] sm:$0xff]
        %v318 = vld [vmem:[%s299 + $0x30] sm:$0xff]
        %v319 = vld [vmem:[%s299 + $0x38] sm:$0xff]
        %v320 = vld [vmem:[%s299 + $0x40] sm:$0xff]
        %v321 = vld [vmem:[%s299 + $0x48] sm:$0xff]
        %v322 = vld [vmem:[%s299 + $0x50] sm:$0xff]
        %v323 = vld [vmem:[%s299 + $0x58] sm:$0xff]
        %v324 = vld [vmem:[%s299 + $0x60] sm:$0xff]
        %v325 = vld [vmem:[%s299 + $0x68] sm:$0xff]
        %v326 = vld [vmem:[%s299 + $0x70] sm:$0xff]
        %v327 = vld [vmem:[%s299 + $0x78] sm:$0xff]
        %v328 = vld [vmem:[%s299 + $0x80] sm:$0xff]
        %v329 = vld [vmem:[%s299 + $0x88] sm:$0xff]
        %v330 = vld [vmem:[%s304] sm:$0xff]
        %v331 = vld [vmem:[%s304 + $0x8] sm:$0xff]
        %v332 = vld [vmem:[%s304 + $0x10] sm:$0xff]
        %v333 = vld [vmem:[%s304 + $0x18] sm:$0xff]
        %v334 = vld [vmem:[%s304 + $0x20] sm:$0xff]
        %v335 = vld [vmem:[%s304 + $0x28] sm:$0xff]
        %v336 = vld [vmem:[%s304 + $0x30] sm:$0xff]
        %v337 = vld [vmem:[%s304 + $0x38] sm:$0xff]
        %v338 = vld [vmem:[%s304 + $0x40] sm:$0xff]
        %v339 = vld [vmem:[%s304 + $0x48] sm:$0xff]
        %v340 = vld [vmem:[%s304 + $0x50] sm:$0xff]
        %v341 = vld [vmem:[%s304 + $0x58] sm:$0xff]
        %v342 = vld [vmem:[%s304 + $0x60] sm:$0xff]
        %v343 = vld [vmem:[%s304 + $0x68] sm:$0xff]
        %v344 = vld [vmem:[%s304 + $0x70] sm:$0xff]
        %v345 = vld [vmem:[%s304 + $0x78] sm:$0xff]
        %v346 = vld [vmem:[%s304 + $0x80] sm:$0xff]
        %v347 = vld [vmem:[%s304 + $0x88] sm:$0xff]
        %v348 = vld [vmem:[%s304 + $0x90] sm:$0xff]
        %v349 = vld [vmem:[%s304 + $0x98] sm:$0xff]
        %v350 = vld [vmem:[%s304 + $0xa0] sm:$0xff]
        %v351 = vld [vmem:[%s304 + $0xa8] sm:$0xff]
        %v352 = vld [vmem:[%s304 + $0xb0] sm:$0xff]
        %v353 = vld [vmem:[%s304 + $0xb8] sm:$0xff]
        %v354 = vld [vmem:[%s304 + $0xc0] sm:$0xff]
        %v355 = vld [vmem:[%s304 + $0xc8] sm:$0xff]
        %v356 = vld [vmem:[%s304 + $0xd0] sm:$0xff]
        %v357 = vld [vmem:[%s304 + $0xd8] sm:$0xff]
        %v358 = vld [vmem:[%s304 + $0xe0] sm:$0xff]
        %v359 = vld [vmem:[%s304 + $0xe8] sm:$0xff]
        %v360 = vld [vmem:[%s304 + $0xf0] sm:$0xff]
        %v361 = vld [vmem:[%s304 + $0xf8] sm:$0xff]
        %v362 = vld [vmem:[%s304 + $0x100] sm:$0xff]
        %v363 = vld [vmem:[%s304 + $0x108] sm:$0xff]
        %v364 = vld [vmem:[%s304 + $0x110] sm:$0xff]
        %v365 = vld [vmem:[%s304 + $0x118] sm:$0xff]
        %v366 = vld [vmem:[%s309] sm:$0xff]
        %v367 = vld [vmem:[%s309 + $0x8] sm:$0xff]
        %v368 = vld [vmem:[%s309 + $0x10] sm:$0xff]
        %v369 = vld [vmem:[%s309 + $0x18] sm:$0xff]
        %v370 = vld [vmem:[%s309 + $0x20] sm:$0xff]
        %v371 = vld [vmem:[%s309 + $0x28] sm:$0xff]
        %v372 = vld [vmem:[%s309 + $0x30] sm:$0xff]
        %v373 = vld [vmem:[%s309 + $0x38] sm:$0xff]
        %v374 = vld [vmem:[%s4] sm:$0x7]
        %v375 = vld [vmem:[%s5] sm:$0xff]
        %v376 = vld [vmem:[%s5 + $0x8] sm:$0xff]
        %v377 = vld [vmem:[%s5 + $0x10] sm:$0xff]
        %v378 = vld [vmem:[%s5 + $0x18] sm:$0xff]
        %v379 = vld [vmem:[%s5 + $0x20] sm:$0xff]
        %v380 = vld [vmem:[%s5 + $0x28] sm:$0xff]
        %v381 = vld [vmem:[%s5 + $0x30] sm:$0xff]
        %v382 = vld [vmem:[%s5 + $0x38] sm:$0xff]
        %v383 = vld [vmem:[%s5 + $0x40] sm:$0xff]
        %v384 = vld [vmem:[%s5 + $0x48] sm:$0xff]
        %v385 = vld [vmem:[%s5 + $0x50] sm:$0xff]
        %v386 = vld [vmem:[%s5 + $0x58] sm:$0xff]
        %v387 = vld [vmem:[%s5 + $0x60] sm:$0xff]
        %v388 = vld [vmem:[%s5 + $0x68] sm:$0xff]
        %v389 = vld [vmem:[%s5 + $0x70] sm:$0xff]
        %v390 = vld [vmem:[%s5 + $0x78] sm:$0xff]
        %v391 = vld [vmem:[%s5 + $0x80] sm:$0xff]
        %v392 = vld [vmem:[%s5 + $0x88] sm:$0xff]
        %v393 = vld [vmem:[%s5 + $0x90] sm:$0xff]
        %v394 = vld [vmem:[%s5 + $0x98] sm:$0xff]
        %v395 = vld [vmem:[%s5 + $0xa0] sm:$0xff]
        %v396 = vld [vmem:[%s5 + $0xa8] sm:$0xff]
        %v397 = vld [vmem:[%s5 + $0xb0] sm:$0xff]
        %v398 = vld [vmem:[%s5 + $0xb8] sm:$0xff]
        %v399 = vld [vmem:[%s5 + $0xc0] sm:$0xff]
        %v400 = vld [vmem:[%s5 + $0xc8] sm:$0xff]
        %v401 = vld [vmem:[%s5 + $0xd0] sm:$0xff]
        %v402 = vld [vmem:[%s5 + $0xd8] sm:$0xff]
        %v403 = vld [vmem:[%s5 + $0xe0] sm:$0xff]
        %v404 = vld [vmem:[%s5 + $0xe8] sm:$0xff]
        %v405 = vld [vmem:[%s5 + $0xf0] sm:$0xff]
        %v406 = vld [vmem:[%s5 + $0xf8] sm:$0xff]
        %v407 = vld [vmem:[%s5 + $0x100] sm:$0xff]
        %v408 = vld [vmem:[%s5 + $0x108] sm:$0xff]
        %v409 = vld [vmem:[%s5 + $0x110] sm:$0xff]
        %v410 = vld [vmem:[%s5 + $0x118] sm:$0xff]
        %v411 = vld [vmem:[%s5 + $0x120] sm:$0xff]
        %v412 = vld [vmem:[%s5 + $0x128] sm:$0xff]
        %v413 = vld [vmem:[%s5 + $0x130] sm:$0xff]
        %v414 = vld [vmem:[%s5 + $0x138] sm:$0xff]
        %v415 = vld [vmem:[%s5 + $0x140] sm:$0xff]
        %v416 = vld [vmem:[%s5 + $0x148] sm:$0xff]
        %v417 = vld [vmem:[%s5 + $0x150] sm:$0xff]
        %v418 = vld [vmem:[%s5 + $0x158] sm:$0xff]
        %v419 = vld [vmem:[%s5 + $0x160] sm:$0xff]
        %v420 = vld [vmem:[%s5 + $0x168] sm:$0xff]
        %v421 = vld [vmem:[%s5 + $0x170] sm:$0xff]
        %v422 = vld [vmem:[%s5 + $0x178] sm:$0xff]
        %v425 = vcombine.high %v310, %v310
        %427 = vrot.lane.b32.xlu0 %v310, 17
        %v428 = vpop.permute.xlu0 %427
        %429 = vrot.lane.b32.xlu0 %v425, 17
        %v430 = vpop.permute.xlu0 %429
        %431 = vrot.lane.b32.xlu0 %v311, 17
        %v432 = vpop.permute.xlu0 %431
        %v433 = vlaneseq
        %v434 = vand.u32 %v433, 127
        %vm435 = vcmp.lt.s32.totalorder %v434, 17
        %v436 = vsel %vm435, %v430, %v432
        %v437 = vsel %vm435, %v428, %v430
        %v438 = vsel %vm435, %v432, %v428
        %439 = vrot.lane.b32.xlu0 %v310, 16
        %v440 = vpop.permute.xlu0 %439
        %441 = vrot.lane.b32.xlu0 %v425, 16
        %v442 = vpop.permute.xlu0 %441
        %443 = vrot.lane.b32.xlu0 %v311, 16
        %v444 = vpop.permute.xlu0 %443
        %vm445 = vcmp.lt.s32.totalorder %v434, 16
        %v446 = vsel %vm445, %v442, %v444
        %v447 = vsel %vm445, %v440, %v442
        %v448 = vsel %vm445, %v444, %v440
        %vm449 = vcmask 31744
        %v451 = vsel %vm449, %v314, 0
        %v454 = vsel %vm449, %v315, 0
        %vm456 = vcmask 1043456
        %v458 = vsel %vm456, %v448, 0
        %v461 = vsel %vm456, %v447, 0
        %v464 = vsel %vm456, %v446, 0
        %466 = vmatprep.subr.mxu0 0.0
        %467 = vmatpush1.msra.mxu0 0.0
        %468 = vmatprep.subr.mxu0 0.0
        %469 = vmatpush1.msra.mxu0 0.0
        %470 = vmatprep.subr.mxu0 0.0
        %471 = vmatpush1.msra.mxu0 0.0
        %472 = vmatprep.subr.mxu0 0.0
        %473 = vmatpush1.msra.mxu0 0.0
        %474 = vmatprep.subr.mxu0 0.0
        %475 = vmatpush1.msra.mxu0 0.0
        %476 = vmatprep.subr.mxu0 0.0
        %477 = vmatpush1.msra.mxu0 0.0
        %478 = vmatprep.subr.mxu0 0.0
        %479 = vmatpush1.msra.mxu0 0.0
        %480 = vmatprep.subr.mxu0 0.0
        %481 = vmatpush1.msra.mxu0 0.0
        %482 = vmatprep.subr.mxu0 0.0
        %483 = vmatpush1.msra.mxu0 0.0
        %484 = vmatprep.subr.mxu0 0.0
        %485 = vmatpush1.msra.mxu0 0.0
        %486 = vmatprep.subr.mxu0 0.0
        %487 = vmatpush1.msra.mxu0 0.0
        %488 = vmatprep.subr.mxu0 0.0
        %489 = vmatpush1.msra.mxu0 0.0
        %490 = vmatprep.subr.mxu0 0.0
        %491 = vmatpush1.msra.mxu0 0.0
        %492 = vmatprep.subr.mxu0 0.0
        %493 = vmatpush1.msra.mxu0 0.0
        %494 = vmatprep.subr.mxu0 0.0
        %495 = vmatpush1.msra.mxu0 0.0
        %496 = vmatprep.subr.mxu0 %v461
        %497 = vmatpush1.msra.mxu0 %v458
        %498 = vmatprep.subr.mxu0 0.0
        %499 = vmatpush2.msra.mxu0 0.0
        %500 = vmatprep.subr.mxu0 0.0
        %501 = vmatpush2.msra.mxu0 0.0
        %502 = vmatprep.subr.mxu0 0.0
        %503 = vmatpush2.msra.mxu0 0.0
        %504 = vmatprep.subr.mxu0 0.0
        %505 = vmatpush2.msra.mxu0 0.0
        %506 = vmatprep.subr.mxu0 0.0
        %507 = vmatpush2.msra.mxu0 0.0
        %508 = vmatprep.subr.mxu0 0.0
        %509 = vmatpush2.msra.mxu0 0.0
        %510 = vmatprep.subr.mxu0 0.0
        %511 = vmatpush2.msra.mxu0 0.0
        %512 = vmatprep.subr.mxu0 0.0
        %513 = vmatpush2.msra.mxu0 0.0
        %514 = vmatprep.subr.mxu0 0.0
        %515 = vmatpush2.msra.mxu0 0.0
        %516 = vmatprep.subr.mxu0 0.0
        %517 = vmatpush2.msra.mxu0 0.0
        %518 = vmatprep.subr.mxu0 0.0
        %519 = vmatpush2.msra.mxu0 0.0
        %520 = vmatprep.subr.mxu0 0.0
        %521 = vmatpush2.msra.mxu0 0.0
        %522 = vmatprep.subr.mxu0 0.0
        %523 = vmatpush2.msra.mxu0 0.0
        %524 = vmatprep.subr.mxu0 0.0
        %525 = vmatpush2.msra.mxu0 0.0
        %526 = vmatprep.subr.mxu0 0.0
        %527 = vmatpush2.msra.mxu0 0.0
        %528 = vmatprep.subr.mxu0 0.0
        %529 = vmatpush2.msra.mxu0 0.0
        %530 = vmatprep.mubr.f32.mxu0 0.0
        %531 = vmatmul.mubr.f32.gmra.mxu0 %v451
        %v532 = vpop.f32.mrf.mxu0
        %v533 = vadd.f32 0.0, %v532
        %v534 = vpop.f32.mrf.mxu0
        %v535 = vadd.f32 0.0, %v534
        %536 = vmatprep.mubr.f32.mxu0 0.0
        %537 = vmatmul.mubr.f32.gmra.mxu0 %v454
        %v538 = vpop.f32.mrf.mxu0
        %v539 = vadd.f32 0.0, %v538
        %v540 = vpop.f32.mrf.mxu0
        %v541 = vadd.f32 0.0, %v540
        %542 = vdwg.mxu0
        %543 = vmatprep.subr.mxu0 0.0
        %544 = vmatpush1.msra.mxu0 0.0
        %545 = vmatprep.subr.mxu0 0.0
        %546 = vmatpush1.msra.mxu0 0.0
        %547 = vmatprep.subr.mxu0 0.0
        %548 = vmatpush1.msra.mxu0 0.0
        %549 = vmatprep.subr.mxu0 0.0
        %550 = vmatpush1.msra.mxu0 0.0
        %551 = vmatprep.subr.mxu0 0.0
        %552 = vmatpush1.msra.mxu0 0.0
        %553 = vmatprep.subr.mxu0 0.0
        %554 = vmatpush1.msra.mxu0 0.0
        %555 = vmatprep.subr.mxu0 0.0
        %556 = vmatpush1.msra.mxu0 0.0
        %557 = vmatprep.subr.mxu0 0.0
        %558 = vmatpush1.msra.mxu0 0.0
        %559 = vmatprep.subr.mxu0 0.0
        %560 = vmatpush1.msra.mxu0 0.0
        %561 = vmatprep.subr.mxu0 0.0
        %562 = vmatpush1.msra.mxu0 0.0
        %563 = vmatprep.subr.mxu0 0.0
        %564 = vmatpush1.msra.mxu0 0.0
        %565 = vmatprep.subr.mxu0 0.0
        %566 = vmatpush1.msra.mxu0 0.0
        %567 = vmatprep.subr.mxu0 0.0
        %568 = vmatpush1.msra.mxu0 0.0
        %569 = vmatprep.subr.mxu0 0.0
        %570 = vmatpush1.msra.mxu0 0.0
        %571 = vmatprep.subr.mxu0 0.0
        %572 = vmatpush1.msra.mxu0 0.0
        %573 = vmatprep.subr.mxu0 0.0
        %574 = vmatpush1.msra.mxu0 %v464
        %575 = vmatprep.subr.mxu0 0.0
        %576 = vmatpush2.msra.mxu0 0.0
        %577 = vmatprep.subr.mxu0 0.0
        %578 = vmatpush2.msra.mxu0 0.0
        %579 = vmatprep.subr.mxu0 0.0
        %580 = vmatpush2.msra.mxu0 0.0
        %581 = vmatprep.subr.mxu0 0.0
        %582 = vmatpush2.msra.mxu0 0.0
        %583 = vmatprep.subr.mxu0 0.0
        %584 = vmatpush2.msra.mxu0 0.0
        %585 = vmatprep.subr.mxu0 0.0
        %586 = vmatpush2.msra.mxu0 0.0
        %587 = vmatprep.subr.mxu0 0.0
        %588 = vmatpush2.msra.mxu0 0.0
        %589 = vmatprep.subr.mxu0 0.0
        %590 = vmatpush2.msra.mxu0 0.0
        %591 = vmatprep.subr.mxu0 0.0
        %592 = vmatpush2.msra.mxu0 0.0
        %593 = vmatprep.subr.mxu0 0.0
        %594 = vmatpush2.msra.mxu0 0.0
        %595 = vmatprep.subr.mxu0 0.0
        %596 = vmatpush2.msra.mxu0 0.0
        %597 = vmatprep.subr.mxu0 0.0
        %598 = vmatpush2.msra.mxu0 0.0
        %599 = vmatprep.subr.mxu0 0.0
        %600 = vmatpush2.msra.mxu0 0.0
        %601 = vmatprep.subr.mxu0 0.0
        %602 = vmatpush2.msra.mxu0 0.0
        %603 = vmatprep.subr.mxu0 0.0
        %604 = vmatpush2.msra.mxu0 0.0
        %605 = vmatprep.subr.mxu0 0.0
        %606 = vmatpush2.msra.mxu0 0.0
        %607 = vmatprep.mubr.f32.mxu0 0.0
        %608 = vmatmul.mubr.f32.gmra.mxu0 %v451
        %v609 = vpop.f32.mrf.mxu0
        %v610 = vadd.f32 0.0, %v609
        %v611 = vpop.f32.mrf.mxu0
        %612 = vmatprep.mubr.f32.mxu0 0.0
        %613 = vmatmul.mubr.f32.gmra.mxu0 %v454
        %v614 = vpop.f32.mrf.mxu0
        %v615 = vadd.f32 0.0, %v614
        %v616 = vpop.f32.mrf.mxu0
        %617 = vdwg.mxu0
        %v619 = vsel %vm449, %v312, 0
        %v622 = vsel %vm449, %v313, 0
        %v625 = vsel %vm456, %v438, 0
        %v628 = vsel %vm456, %v437, 0
        %v631 = vsel %vm456, %v436, 0
        %633 = vmatprep.subr.mxu0 0.0
        %634 = vmatpush1.msra.mxu0 0.0
        %635 = vmatprep.subr.mxu0 0.0
        %636 = vmatpush1.msra.mxu0 0.0
        %637 = vmatprep.subr.mxu0 0.0
        %638 = vmatpush1.msra.mxu0 0.0
        %639 = vmatprep.subr.mxu0 0.0
        %640 = vmatpush1.msra.mxu0 0.0
        %641 = vmatprep.subr.mxu0 0.0
        %642 = vmatpush1.msra.mxu0 0.0
        %643 = vmatprep.subr.mxu0 0.0
        %644 = vmatpush1.msra.mxu0 0.0
        %645 = vmatprep.subr.mxu0 0.0
        %646 = vmatpush1.msra.mxu0 0.0
        %647 = vmatprep.subr.mxu0 0.0
        %648 = vmatpush1.msra.mxu0 0.0
        %649 = vmatprep.subr.mxu0 0.0
        %650 = vmatpush1.msra.mxu0 0.0
        %651 = vmatprep.subr.mxu0 0.0
        %652 = vmatpush1.msra.mxu0 0.0
        %653 = vmatprep.subr.mxu0 0.0
        %654 = vmatpush1.msra.mxu0 0.0
        %655 = vmatprep.subr.mxu0 0.0
        %656 = vmatpush1.msra.mxu0 0.0
        %657 = vmatprep.subr.mxu0 0.0
        %658 = vmatpush1.msra.mxu0 0.0
        %659 = vmatprep.subr.mxu0 0.0
        %660 = vmatpush1.msra.mxu0 0.0
        %661 = vmatprep.subr.mxu0 0.0
        %662 = vmatpush1.msra.mxu0 0.0
        %663 = vmatprep.subr.mxu0 %v628
        %664 = vmatpush1.msra.mxu0 %v625
        %665 = vmatprep.subr.mxu0 0.0
        %666 = vmatpush2.msra.mxu0 0.0
        %667 = vmatprep.subr.mxu0 0.0
        %668 = vmatpush2.msra.mxu0 0.0
        %669 = vmatprep.subr.mxu0 0.0
        %670 = vmatpush2.msra.mxu0 0.0
        %671 = vmatprep.subr.mxu0 0.0
        %672 = vmatpush2.msra.mxu0 0.0
        %673 = vmatprep.subr.mxu0 0.0
        %674 = vmatpush2.msra.mxu0 0.0
        %675 = vmatprep.subr.mxu0 0.0
        %676 = vmatpush2.msra.mxu0 0.0
        %677 = vmatprep.subr.mxu0 0.0
        %678 = vmatpush2.msra.mxu0 0.0
        %679 = vmatprep.subr.mxu0 0.0
        %680 = vmatpush2.msra.mxu0 0.0
        %681 = vmatprep.subr.mxu0 0.0
        %682 = vmatpush2.msra.mxu0 0.0
        %683 = vmatprep.subr.mxu0 0.0
        %684 = vmatpush2.msra.mxu0 0.0
        %685 = vmatprep.subr.mxu0 0.0
        %686 = vmatpush2.msra.mxu0 0.0
        %687 = vmatprep.subr.mxu0 0.0
        %688 = vmatpush2.msra.mxu0 0.0
        %689 = vmatprep.subr.mxu0 0.0
        %690 = vmatpush2.msra.mxu0 0.0
        %691 = vmatprep.subr.mxu0 0.0
        %692 = vmatpush2.msra.mxu0 0.0
        %693 = vmatprep.subr.mxu0 0.0
        %694 = vmatpush2.msra.mxu0 0.0
        %695 = vmatprep.subr.mxu0 0.0
        %696 = vmatpush2.msra.mxu0 0.0
        %697 = vmatprep.mubr.f32.mxu0 0.0
        %698 = vmatmul.mubr.f32.gmra.mxu0 %v619
        %v699 = vpop.f32.mrf.mxu0
        %v700 = vadd.f32 %v533, %v699
        %v701 = vpop.f32.mrf.mxu0
        %v702 = vadd.f32 %v535, %v701
        %703 = vmatprep.mubr.f32.mxu0 0.0
        %704 = vmatmul.mubr.f32.gmra.mxu0 %v622
        %v705 = vpop.f32.mrf.mxu0
        %v706 = vadd.f32 %v539, %v705
        %v707 = vpop.f32.mrf.mxu0
        %v708 = vadd.f32 %v541, %v707
        %709 = vdwg.mxu0
        %710 = vmatprep.subr.mxu0 0.0
        %711 = vmatpush1.msra.mxu0 0.0
        %712 = vmatprep.subr.mxu0 0.0
        %713 = vmatpush1.msra.mxu0 0.0
        %714 = vmatprep.subr.mxu0 0.0
        %715 = vmatpush1.msra.mxu0 0.0
        %716 = vmatprep.subr.mxu0 0.0
        %717 = vmatpush1.msra.mxu0 0.0
        %718 = vmatprep.subr.mxu0 0.0
        %719 = vmatpush1.msra.mxu0 0.0
        %720 = vmatprep.subr.mxu0 0.0
        %721 = vmatpush1.msra.mxu0 0.0
        %722 = vmatprep.subr.mxu0 0.0
        %723 = vmatpush1.msra.mxu0 0.0
        %724 = vmatprep.subr.mxu0 0.0
        %725 = vmatpush1.msra.mxu0 0.0
        %726 = vmatprep.subr.mxu0 0.0
        %727 = vmatpush1.msra.mxu0 0.0
        %728 = vmatprep.subr.mxu0 0.0
        %729 = vmatpush1.msra.mxu0 0.0
        %730 = vmatprep.subr.mxu0 0.0
        %731 = vmatpush1.msra.mxu0 0.0
        %732 = vmatprep.subr.mxu0 0.0
        %733 = vmatpush1.msra.mxu0 0.0
        %734 = vmatprep.subr.mxu0 0.0
        %735 = vmatpush1.msra.mxu0 0.0
        %736 = vmatprep.subr.mxu0 0.0
        %737 = vmatpush1.msra.mxu0 0.0
        %738 = vmatprep.subr.mxu0 0.0
        %739 = vmatpush1.msra.mxu0 0.0
        %740 = vmatprep.subr.mxu0 0.0
        %741 = vmatpush1.msra.mxu0 %v631
        %742 = vmatprep.subr.mxu0 0.0
        %743 = vmatpush2.msra.mxu0 0.0
        %744 = vmatprep.subr.mxu0 0.0
        %745 = vmatpush2.msra.mxu0 0.0
        %746 = vmatprep.subr.mxu0 0.0
        %747 = vmatpush2.msra.mxu0 0.0
        %748 = vmatprep.subr.mxu0 0.0
        %749 = vmatpush2.msra.mxu0 0.0
        %750 = vmatprep.subr.mxu0 0.0
        %751 = vmatpush2.msra.mxu0 0.0
        %752 = vmatprep.subr.mxu0 0.0
        %753 = vmatpush2.msra.mxu0 0.0
        %754 = vmatprep.subr.mxu0 0.0
        %755 = vmatpush2.msra.mxu0 0.0
        %756 = vmatprep.subr.mxu0 0.0
        %757 = vmatpush2.msra.mxu0 0.0
        %758 = vmatprep.subr.mxu0 0.0
        %759 = vmatpush2.msra.mxu0 0.0
        %760 = vmatprep.subr.mxu0 0.0
        %761 = vmatpush2.msra.mxu0 0.0
        %762 = vmatprep.subr.mxu0 0.0
        %763 = vmatpush2.msra.mxu0 0.0
        %764 = vmatprep.subr.mxu0 0.0
        %765 = vmatpush2.msra.mxu0 0.0
        %766 = vmatprep.subr.mxu0 0.0
        %767 = vmatpush2.msra.mxu0 0.0
        %768 = vmatprep.subr.mxu0 0.0
        %769 = vmatpush2.msra.mxu0 0.0
        %770 = vmatprep.subr.mxu0 0.0
        %771 = vmatpush2.msra.mxu0 0.0
        %772 = vmatprep.subr.mxu0 0.0
        %773 = vmatpush2.msra.mxu0 0.0
        %774 = vmatprep.mubr.f32.mxu0 0.0
        %775 = vmatmul.mubr.f32.gmra.mxu0 %v619
        %v776 = vpop.f32.mrf.mxu0
        %v777 = vadd.f32 %v610, %v776
        %v778 = vpop.f32.mrf.mxu0
        %779 = vmatprep.mubr.f32.mxu0 0.0
        %780 = vmatmul.mubr.f32.gmra.mxu0 %v622
        %v781 = vpop.f32.mrf.mxu0
        %v782 = vadd.f32 %v615, %v781
        %v783 = vpop.f32.mrf.mxu0
        %784 = vdwg.mxu0
        %785 = vrot.lane.b32.xlu0 %v310, 15
        %v786 = vpop.permute.xlu0 %785
        %787 = vrot.lane.b32.xlu0 %v425, 15
        %v788 = vpop.permute.xlu0 %787
        %789 = vrot.lane.b32.xlu0 %v311, 15
        %v790 = vpop.permute.xlu0 %789
        %vm791 = vcmp.lt.s32.totalorder %v434, 15
        %v792 = vsel %vm791, %v788, %v790
        %v793 = vsel %vm791, %v786, %v788
        %v794 = vsel %vm791, %v790, %v786
        %v796 = vsel %vm449, %v316, 0
        %v799 = vsel %vm449, %v317, 0
        %v802 = vsel %vm456, %v794, 0
        %v805 = vsel %vm456, %v793, 0
        %v808 = vsel %vm456, %v792, 0
        %810 = vmatprep.subr.mxu0 0.0
        %811 = vmatpush1.msra.mxu0 0.0
        %812 = vmatprep.subr.mxu0 0.0
        %813 = vmatpush1.msra.mxu0 0.0
        %814 = vmatprep.subr.mxu0 0.0
        %815 = vmatpush1.msra.mxu0 0.0
        %816 = vmatprep.subr.mxu0 0.0
        %817 = vmatpush1.msra.mxu0 0.0
        %818 = vmatprep.subr.mxu0 0.0
        %819 = vmatpush1.msra.mxu0 0.0
        %820 = vmatprep.subr.mxu0 0.0
        %821 = vmatpush1.msra.mxu0 0.0
        %822 = vmatprep.subr.mxu0 0.0
        %823 = vmatpush1.msra.mxu0 0.0
        %824 = vmatprep.subr.mxu0 0.0
        %825 = vmatpush1.msra.mxu0 0.0
        %826 = vmatprep.subr.mxu0 0.0
        %827 = vmatpush1.msra.mxu0 0.0
        %828 = vmatprep.subr.mxu0 0.0
        %829 = vmatpush1.msra.mxu0 0.0
        %830 = vmatprep.subr.mxu0 0.0
        %831 = vmatpush1.msra.mxu0 0.0
        %832 = vmatprep.subr.mxu0 0.0
        %833 = vmatpush1.msra.mxu0 0.0
        %834 = vmatprep.subr.mxu0 0.0
        %835 = vmatpush1.msra.mxu0 0.0
        %836 = vmatprep.subr.mxu0 0.0
        %837 = vmatpush1.msra.mxu0 0.0
        %838 = vmatprep.subr.mxu0 0.0
        %839 = vmatpush1.msra.mxu0 0.0
        %840 = vmatprep.subr.mxu0 %v805
        %841 = vmatpush1.msra.mxu0 %v802
        %842 = vmatprep.subr.mxu0 0.0
        %843 = vmatpush2.msra.mxu0 0.0
        %844 = vmatprep.subr.mxu0 0.0
        %845 = vmatpush2.msra.mxu0 0.0
        %846 = vmatprep.subr.mxu0 0.0
        %847 = vmatpush2.msra.mxu0 0.0
        %848 = vmatprep.subr.mxu0 0.0
        %849 = vmatpush2.msra.mxu0 0.0
        %850 = vmatprep.subr.mxu0 0.0
        %851 = vmatpush2.msra.mxu0 0.0
        %852 = vmatprep.subr.mxu0 0.0
        %853 = vmatpush2.msra.mxu0 0.0
        %854 = vmatprep.subr.mxu0 0.0
        %855 = vmatpush2.msra.mxu0 0.0
        %856 = vmatprep.subr.mxu0 0.0
        %857 = vmatpush2.msra.mxu0 0.0
        %858 = vmatprep.subr.mxu0 0.0
        %859 = vmatpush2.msra.mxu0 0.0
        %860 = vmatprep.subr.mxu0 0.0
        %861 = vmatpush2.msra.mxu0 0.0
        %862 = vmatprep.subr.mxu0 0.0
        %863 = vmatpush2.msra.mxu0 0.0
        %864 = vmatprep.subr.mxu0 0.0
        %865 = vmatpush2.msra.mxu0 0.0
        %866 = vmatprep.subr.mxu0 0.0
        %867 = vmatpush2.msra.mxu0 0.0
        %868 = vmatprep.subr.mxu0 0.0
        %869 = vmatpush2.msra.mxu0 0.0
        %870 = vmatprep.subr.mxu0 0.0
        %871 = vmatpush2.msra.mxu0 0.0
        %872 = vmatprep.subr.mxu0 0.0
        %873 = vmatpush2.msra.mxu0 0.0
        %874 = vmatprep.mubr.f32.mxu0 0.0
        %875 = vmatmul.mubr.f32.gmra.mxu0 %v796
        %v876 = vpop.f32.mrf.mxu0
        %v877 = vadd.f32 0.0, %v876
        %v878 = vpop.f32.mrf.mxu0
        %v879 = vadd.f32 0.0, %v878
        %880 = vmatprep.mubr.f32.mxu0 0.0
        %881 = vmatmul.mubr.f32.gmra.mxu0 %v799
        %v882 = vpop.f32.mrf.mxu0
        %v883 = vadd.f32 0.0, %v882
        %v884 = vpop.f32.mrf.mxu0
        %v885 = vadd.f32 0.0, %v884
        %886 = vdwg.mxu0
        %887 = vmatprep.subr.mxu0 0.0
        %888 = vmatpush1.msra.mxu0 0.0
        %889 = vmatprep.subr.mxu0 0.0
        %890 = vmatpush1.msra.mxu0 0.0
        %891 = vmatprep.subr.mxu0 0.0
        %892 = vmatpush1.msra.mxu0 0.0
        %893 = vmatprep.subr.mxu0 0.0
        %894 = vmatpush1.msra.mxu0 0.0
        %895 = vmatprep.subr.mxu0 0.0
        %896 = vmatpush1.msra.mxu0 0.0
        %897 = vmatprep.subr.mxu0 0.0
        %898 = vmatpush1.msra.mxu0 0.0
        %899 = vmatprep.subr.mxu0 0.0
        %900 = vmatpush1.msra.mxu0 0.0
        %901 = vmatprep.subr.mxu0 0.0
        %902 = vmatpush1.msra.mxu0 0.0
        %903 = vmatprep.subr.mxu0 0.0
        %904 = vmatpush1.msra.mxu0 0.0
        %905 = vmatprep.subr.mxu0 0.0
        %906 = vmatpush1.msra.mxu0 0.0
        %907 = vmatprep.subr.mxu0 0.0
        %908 = vmatpush1.msra.mxu0 0.0
        %909 = vmatprep.subr.mxu0 0.0
        %910 = vmatpush1.msra.mxu0 0.0
        %911 = vmatprep.subr.mxu0 0.0
        %912 = vmatpush1.msra.mxu0 0.0
        %913 = vmatprep.subr.mxu0 0.0
        %914 = vmatpush1.msra.mxu0 0.0
        %915 = vmatprep.subr.mxu0 0.0
        %916 = vmatpush1.msra.mxu0 0.0
        %917 = vmatprep.subr.mxu0 0.0
        %918 = vmatpush1.msra.mxu0 %v808
        %919 = vmatprep.subr.mxu0 0.0
        %920 = vmatpush2.msra.mxu0 0.0
        %921 = vmatprep.subr.mxu0 0.0
        %922 = vmatpush2.msra.mxu0 0.0
        %923 = vmatprep.subr.mxu0 0.0
        %924 = vmatpush2.msra.mxu0 0.0
        %925 = vmatprep.subr.mxu0 0.0
        %926 = vmatpush2.msra.mxu0 0.0
        %927 = vmatprep.subr.mxu0 0.0
        %928 = vmatpush2.msra.mxu0 0.0
        %929 = vmatprep.subr.mxu0 0.0
        %930 = vmatpush2.msra.mxu0 0.0
        %931 = vmatprep.subr.mxu0 0.0
        %932 = vmatpush2.msra.mxu0 0.0
        %933 = vmatprep.subr.mxu0 0.0
        %934 = vmatpush2.msra.mxu0 0.0
        %935 = vmatprep.subr.mxu0 0.0
        %936 = vmatpush2.msra.mxu0 0.0
        %937 = vmatprep.subr.mxu0 0.0
        %938 = vmatpush2.msra.mxu0 0.0
        %939 = vmatprep.subr.mxu0 0.0
        %940 = vmatpush2.msra.mxu0 0.0
        %941 = vmatprep.subr.mxu0 0.0
        %942 = vmatpush2.msra.mxu0 0.0
        %943 = vmatprep.subr.mxu0 0.0
        %944 = vmatpush2.msra.mxu0 0.0
        %945 = vmatprep.subr.mxu0 0.0
        %946 = vmatpush2.msra.mxu0 0.0
        %947 = vmatprep.subr.mxu0 0.0
        %948 = vmatpush2.msra.mxu0 0.0
        %949 = vmatprep.subr.mxu0 0.0
        %950 = vmatpush2.msra.mxu0 0.0
        %951 = vmatprep.mubr.f32.mxu0 0.0
        %952 = vmatmul.mubr.f32.gmra.mxu0 %v796
        %v953 = vpop.f32.mrf.mxu0
        %v954 = vadd.f32 0.0, %v953
        %v955 = vpop.f32.mrf.mxu0
        %956 = vmatprep.mubr.f32.mxu0 0.0
        %957 = vmatmul.mubr.f32.gmra.mxu0 %v799
        %v958 = vpop.f32.mrf.mxu0
        %v959 = vadd.f32 0.0, %v958
        %v960 = vpop.f32.mrf.mxu0
        %961 = vdwg.mxu0
        %v962 = vadd.f32 %v700, %v877
        %v963 = vadd.f32 %v702, %v879
        %v964 = vadd.f32 %v777, %v954
        %v965 = vadd.f32 %v706, %v883
        %v966 = vadd.f32 %v708, %v885
        %v967 = vadd.f32 %v782, %v959
        %968 = vrot.lane.b32.xlu0 %v310, 1
        %v969 = vpop.permute.xlu0 %968
        %970 = vrot.lane.b32.xlu0 %v425, 1
        %v971 = vpop.permute.xlu0 %970
        %972 = vrot.lane.b32.xlu0 %v311, 1
        %v973 = vpop.permute.xlu0 %972
        %vm974 = vcmp.lt.s32.totalorder %v434, 1
        %v975 = vsel %vm974, %v971, %v973
        %v976 = vsel %vm974, %v969, %v971
        %v977 = vsel %vm974, %v973, %v969
        %v979 = vsel %vm449, %v318, 0
        %v982 = vsel %vm449, %v319, 0
        %v985 = vsel %vm456, %v977, 0
        %v988 = vsel %vm456, %v976, 0
        %v991 = vsel %vm456, %v975, 0
        %993 = vmatprep.subr.mxu0 0.0
        %994 = vmatpush1.msra.mxu0 0.0
        %995 = vmatprep.subr.mxu0 0.0
        %996 = vmatpush1.msra.mxu0 0.0
        %997 = vmatprep.subr.mxu0 0.0
        %998 = vmatpush1.msra.mxu0 0.0
        %999 = vmatprep.subr.mxu0 0.0
        %1000 = vmatpush1.msra.mxu0 0.0
        %1001 = vmatprep.subr.mxu0 0.0
        %1002 = vmatpush1.msra.mxu0 0.0
        %1003 = vmatprep.subr.mxu0 0.0
        %1004 = vmatpush1.msra.mxu0 0.0
        %1005 = vmatprep.subr.mxu0 0.0
        %1006 = vmatpush1.msra.mxu0 0.0
        %1007 = vmatprep.subr.mxu0 0.0
        %1008 = vmatpush1.msra.mxu0 0.0
        %1009 = vmatprep.subr.mxu0 0.0
        %1010 = vmatpush1.msra.mxu0 0.0
        %1011 = vmatprep.subr.mxu0 0.0
        %1012 = vmatpush1.msra.mxu0 0.0
        %1013 = vmatprep.subr.mxu0 0.0
        %1014 = vmatpush1.msra.mxu0 0.0
        %1015 = vmatprep.subr.mxu0 0.0
        %1016 = vmatpush1.msra.mxu0 0.0
        %1017 = vmatprep.subr.mxu0 0.0
        %1018 = vmatpush1.msra.mxu0 0.0
        %1019 = vmatprep.subr.mxu0 0.0
        %1020 = vmatpush1.msra.mxu0 0.0
        %1021 = vmatprep.subr.mxu0 0.0
        %1022 = vmatpush1.msra.mxu0 0.0
        %1023 = vmatprep.subr.mxu0 %v988
        %1024 = vmatpush1.msra.mxu0 %v985
        %1025 = vmatprep.subr.mxu0 0.0
        %1026 = vmatpush2.msra.mxu0 0.0
        %1027 = vmatprep.subr.mxu0 0.0
        %1028 = vmatpush2.msra.mxu0 0.0
        %1029 = vmatprep.subr.mxu0 0.0
        %1030 = vmatpush2.msra.mxu0 0.0
        %1031 = vmatprep.subr.mxu0 0.0
        %1032 = vmatpush2.msra.mxu0 0.0
        %1033 = vmatprep.subr.mxu0 0.0
        %1034 = vmatpush2.msra.mxu0 0.0
        %1035 = vmatprep.subr.mxu0 0.0
        %1036 = vmatpush2.msra.mxu0 0.0
        %1037 = vmatprep.subr.mxu0 0.0
        %1038 = vmatpush2.msra.mxu0 0.0
        %1039 = vmatprep.subr.mxu0 0.0
        %1040 = vmatpush2.msra.mxu0 0.0
        %1041 = vmatprep.subr.mxu0 0.0
        %1042 = vmatpush2.msra.mxu0 0.0
        %1043 = vmatprep.subr.mxu0 0.0
        %1044 = vmatpush2.msra.mxu0 0.0
        %1045 = vmatprep.subr.mxu0 0.0
        %1046 = vmatpush2.msra.mxu0 0.0
        %1047 = vmatprep.subr.mxu0 0.0
        %1048 = vmatpush2.msra.mxu0 0.0
        %1049 = vmatprep.subr.mxu0 0.0
        %1050 = vmatpush2.msra.mxu0 0.0
        %1051 = vmatprep.subr.mxu0 0.0
        %1052 = vmatpush2.msra.mxu0 0.0
        %1053 = vmatprep.subr.mxu0 0.0
        %1054 = vmatpush2.msra.mxu0 0.0
        %1055 = vmatprep.subr.mxu0 0.0
        %1056 = vmatpush2.msra.mxu0 0.0
        %1057 = vmatprep.mubr.f32.mxu0 0.0
        %1058 = vmatmul.mubr.f32.gmra.mxu0 %v979
        %v1059 = vpop.f32.mrf.mxu0
        %v1060 = vadd.f32 0.0, %v1059
        %v1061 = vpop.f32.mrf.mxu0
        %v1062 = vadd.f32 0.0, %v1061
        %1063 = vmatprep.mubr.f32.mxu0 0.0
        %1064 = vmatmul.mubr.f32.gmra.mxu0 %v982
        %v1065 = vpop.f32.mrf.mxu0
        %v1066 = vadd.f32 0.0, %v1065
        %v1067 = vpop.f32.mrf.mxu0
        %v1068 = vadd.f32 0.0, %v1067
        %1069 = vdwg.mxu0
        %1070 = vmatprep.subr.mxu0 0.0
        %1071 = vmatpush1.msra.mxu0 0.0
        %1072 = vmatprep.subr.mxu0 0.0
        %1073 = vmatpush1.msra.mxu0 0.0
        %1074 = vmatprep.subr.mxu0 0.0
        %1075 = vmatpush1.msra.mxu0 0.0
        %1076 = vmatprep.subr.mxu0 0.0
        %1077 = vmatpush1.msra.mxu0 0.0
        %1078 = vmatprep.subr.mxu0 0.0
        %1079 = vmatpush1.msra.mxu0 0.0
        %1080 = vmatprep.subr.mxu0 0.0
        %1081 = vmatpush1.msra.mxu0 0.0
        %1082 = vmatprep.subr.mxu0 0.0
        %1083 = vmatpush1.msra.mxu0 0.0
        %1084 = vmatprep.subr.mxu0 0.0
        %1085 = vmatpush1.msra.mxu0 0.0
        %1086 = vmatprep.subr.mxu0 0.0
        %1087 = vmatpush1.msra.mxu0 0.0
        %1088 = vmatprep.subr.mxu0 0.0
        %1089 = vmatpush1.msra.mxu0 0.0
        %1090 = vmatprep.subr.mxu0 0.0
        %1091 = vmatpush1.msra.mxu0 0.0
        %1092 = vmatprep.subr.mxu0 0.0
        %1093 = vmatpush1.msra.mxu0 0.0
        %1094 = vmatprep.subr.mxu0 0.0
        %1095 = vmatpush1.msra.mxu0 0.0
        %1096 = vmatprep.subr.mxu0 0.0
        %1097 = vmatpush1.msra.mxu0 0.0
        %1098 = vmatprep.subr.mxu0 0.0
        %1099 = vmatpush1.msra.mxu0 0.0
        %1100 = vmatprep.subr.mxu0 0.0
        %1101 = vmatpush1.msra.mxu0 %v991
        %1102 = vmatprep.subr.mxu0 0.0
        %1103 = vmatpush2.msra.mxu0 0.0
        %1104 = vmatprep.subr.mxu0 0.0
        %1105 = vmatpush2.msra.mxu0 0.0
        %1106 = vmatprep.subr.mxu0 0.0
        %1107 = vmatpush2.msra.mxu0 0.0
        %1108 = vmatprep.subr.mxu0 0.0
        %1109 = vmatpush2.msra.mxu0 0.0
        %1110 = vmatprep.subr.mxu0 0.0
        %1111 = vmatpush2.msra.mxu0 0.0
        %1112 = vmatprep.subr.mxu0 0.0
        %1113 = vmatpush2.msra.mxu0 0.0
        %1114 = vmatprep.subr.mxu0 0.0
        %1115 = vmatpush2.msra.mxu0 0.0
        %1116 = vmatprep.subr.mxu0 0.0
        %1117 = vmatpush2.msra.mxu0 0.0
        %1118 = vmatprep.subr.mxu0 0.0
        %1119 = vmatpush2.msra.mxu0 0.0
        %1120 = vmatprep.subr.mxu0 0.0
        %1121 = vmatpush2.msra.mxu0 0.0
        %1122 = vmatprep.subr.mxu0 0.0
        %1123 = vmatpush2.msra.mxu0 0.0
        %1124 = vmatprep.subr.mxu0 0.0
        %1125 = vmatpush2.msra.mxu0 0.0
        %1126 = vmatprep.subr.mxu0 0.0
        %1127 = vmatpush2.msra.mxu0 0.0
        %1128 = vmatprep.subr.mxu0 0.0
        %1129 = vmatpush2.msra.mxu0 0.0
        %1130 = vmatprep.subr.mxu0 0.0
        %1131 = vmatpush2.msra.mxu0 0.0
        %1132 = vmatprep.subr.mxu0 0.0
        %1133 = vmatpush2.msra.mxu0 0.0
        %1134 = vmatprep.mubr.f32.mxu0 0.0
        %1135 = vmatmul.mubr.f32.gmra.mxu0 %v979
        %v1136 = vpop.f32.mrf.mxu0
        %v1137 = vadd.f32 0.0, %v1136
        %v1138 = vpop.f32.mrf.mxu0
        %1139 = vmatprep.mubr.f32.mxu0 0.0
        %1140 = vmatmul.mubr.f32.gmra.mxu0 %v982
        %v1141 = vpop.f32.mrf.mxu0
        %v1142 = vadd.f32 0.0, %v1141
        %v1143 = vpop.f32.mrf.mxu0
        %1144 = vdwg.mxu0
        %v1145 = vadd.f32 %v962, %v1060
        %v1146 = vadd.f32 %v963, %v1062
        %v1147 = vadd.f32 %v964, %v1137
        %v1148 = vadd.f32 %v965, %v1066
        %v1149 = vadd.f32 %v966, %v1068
        %v1150 = vadd.f32 %v967, %v1142
        %v1152 = vsel %vm449, %v320, 0
        %v1155 = vsel %vm449, %v321, 0
        %v1157 = vsel %vm456, %v310, 0
        %v1159 = vsel %vm456, %v425, 0
        %v1161 = vsel %vm456, %v311, 0
        %1163 = vmatprep.subr.mxu0 0.0
        %1164 = vmatpush1.msra.mxu0 0.0
        %1165 = vmatprep.subr.mxu0 0.0
        %1166 = vmatpush1.msra.mxu0 0.0
        %1167 = vmatprep.subr.mxu0 0.0
        %1168 = vmatpush1.msra.mxu0 0.0
        %1169 = vmatprep.subr.mxu0 0.0
        %1170 = vmatpush1.msra.mxu0 0.0
        %1171 = vmatprep.subr.mxu0 0.0
        %1172 = vmatpush1.msra.mxu0 0.0
        %1173 = vmatprep.subr.mxu0 0.0
        %1174 = vmatpush1.msra.mxu0 0.0
        %1175 = vmatprep.subr.mxu0 0.0
        %1176 = vmatpush1.msra.mxu0 0.0
        %1177 = vmatprep.subr.mxu0 0.0
        %1178 = vmatpush1.msra.mxu0 0.0
        %1179 = vmatprep.subr.mxu0 0.0
        %1180 = vmatpush1.msra.mxu0 0.0
        %1181 = vmatprep.subr.mxu0 0.0
        %1182 = vmatpush1.msra.mxu0 0.0
        %1183 = vmatprep.subr.mxu0 0.0
        %1184 = vmatpush1.msra.mxu0 0.0
        %1185 = vmatprep.subr.mxu0 0.0
        %1186 = vmatpush1.msra.mxu0 0.0
        %1187 = vmatprep.subr.mxu0 0.0
        %1188 = vmatpush1.msra.mxu0 0.0
        %1189 = vmatprep.subr.mxu0 0.0
        %1190 = vmatpush1.msra.mxu0 0.0
        %1191 = vmatprep.subr.mxu0 0.0
        %1192 = vmatpush1.msra.mxu0 0.0
        %1193 = vmatprep.subr.mxu0 %v1159
        %1194 = vmatpush1.msra.mxu0 %v1157
        %1195 = vmatprep.subr.mxu0 0.0
        %1196 = vmatpush2.msra.mxu0 0.0
        %1197 = vmatprep.subr.mxu0 0.0
        %1198 = vmatpush2.msra.mxu0 0.0
        %1199 = vmatprep.subr.mxu0 0.0
        %1200 = vmatpush2.msra.mxu0 0.0
        %1201 = vmatprep.subr.mxu0 0.0
        %1202 = vmatpush2.msra.mxu0 0.0
        %1203 = vmatprep.subr.mxu0 0.0
        %1204 = vmatpush2.msra.mxu0 0.0
        %1205 = vmatprep.subr.mxu0 0.0
        %1206 = vmatpush2.msra.mxu0 0.0
        %1207 = vmatprep.subr.mxu0 0.0
        %1208 = vmatpush2.msra.mxu0 0.0
        %1209 = vmatprep.subr.mxu0 0.0
        %1210 = vmatpush2.msra.mxu0 0.0
        %1211 = vmatprep.subr.mxu0 0.0
        %1212 = vmatpush2.msra.mxu0 0.0
        %1213 = vmatprep.subr.mxu0 0.0
        %1214 = vmatpush2.msra.mxu0 0.0
        %1215 = vmatprep.subr.mxu0 0.0
        %1216 = vmatpush2.msra.mxu0 0.0
        %1217 = vmatprep.subr.mxu0 0.0
        %1218 = vmatpush2.msra.mxu0 0.0
        %1219 = vmatprep.subr.mxu0 0.0
        %1220 = vmatpush2.msra.mxu0 0.0
        %1221 = vmatprep.subr.mxu0 0.0
        %1222 = vmatpush2.msra.mxu0 0.0
        %1223 = vmatprep.subr.mxu0 0.0
        %1224 = vmatpush2.msra.mxu0 0.0
        %1225 = vmatprep.subr.mxu0 0.0
        %1226 = vmatpush2.msra.mxu0 0.0
        %1227 = vmatprep.mubr.f32.mxu0 0.0
        %1228 = vmatmul.mubr.f32.gmra.mxu0 %v1152
        %v1229 = vpop.f32.mrf.mxu0
        %v1230 = vadd.f32 0.0, %v1229
        %v1231 = vpop.f32.mrf.mxu0
        %v1232 = vadd.f32 0.0, %v1231
        %1233 = vmatprep.mubr.f32.mxu0 0.0
        %1234 = vmatmul.mubr.f32.gmra.mxu0 %v1155
        %v1235 = vpop.f32.mrf.mxu0
        %v1236 = vadd.f32 0.0, %v1235
        %v1237 = vpop.f32.mrf.mxu0
        %v1238 = vadd.f32 0.0, %v1237
        %1239 = vdwg.mxu0
        %1240 = vmatprep.subr.mxu0 0.0
        %1241 = vmatpush1.msra.mxu0 0.0
        %1242 = vmatprep.subr.mxu0 0.0
        %1243 = vmatpush1.msra.mxu0 0.0
        %1244 = vmatprep.subr.mxu0 0.0
        %1245 = vmatpush1.msra.mxu0 0.0
        %1246 = vmatprep.subr.mxu0 0.0
        %1247 = vmatpush1.msra.mxu0 0.0
        %1248 = vmatprep.subr.mxu0 0.0
        %1249 = vmatpush1.msra.mxu0 0.0
        %1250 = vmatprep.subr.mxu0 0.0
        %1251 = vmatpush1.msra.mxu0 0.0
        %1252 = vmatprep.subr.mxu0 0.0
        %1253 = vmatpush1.msra.mxu0 0.0
        %1254 = vmatprep.subr.mxu0 0.0
        %1255 = vmatpush1.msra.mxu0 0.0
        %1256 = vmatprep.subr.mxu0 0.0
        %1257 = vmatpush1.msra.mxu0 0.0
        %1258 = vmatprep.subr.mxu0 0.0
        %1259 = vmatpush1.msra.mxu0 0.0
        %1260 = vmatprep.subr.mxu0 0.0
        %1261 = vmatpush1.msra.mxu0 0.0
        %1262 = vmatprep.subr.mxu0 0.0
        %1263 = vmatpush1.msra.mxu0 0.0
        %1264 = vmatprep.subr.mxu0 0.0
        %1265 = vmatpush1.msra.mxu0 0.0
        %1266 = vmatprep.subr.mxu0 0.0
        %1267 = vmatpush1.msra.mxu0 0.0
        %1268 = vmatprep.subr.mxu0 0.0
        %1269 = vmatpush1.msra.mxu0 0.0
        %1270 = vmatprep.subr.mxu0 0.0
        %1271 = vmatpush1.msra.mxu0 %v1161
        %1272 = vmatprep.subr.mxu0 0.0
        %1273 = vmatpush2.msra.mxu0 0.0
        %1274 = vmatprep.subr.mxu0 0.0
        %1275 = vmatpush2.msra.mxu0 0.0
        %1276 = vmatprep.subr.mxu0 0.0
        %1277 = vmatpush2.msra.mxu0 0.0
        %1278 = vmatprep.subr.mxu0 0.0
        %1279 = vmatpush2.msra.mxu0 0.0
        %1280 = vmatprep.subr.mxu0 0.0
        %1281 = vmatpush2.msra.mxu0 0.0
        %1282 = vmatprep.subr.mxu0 0.0
        %1283 = vmatpush2.msra.mxu0 0.0
        %1284 = vmatprep.subr.mxu0 0.0
        %1285 = vmatpush2.msra.mxu0 0.0
        %1286 = vmatprep.subr.mxu0 0.0
        %1287 = vmatpush2.msra.mxu0 0.0
        %1288 = vmatprep.subr.mxu0 0.0
        %1289 = vmatpush2.msra.mxu0 0.0
        %1290 = vmatprep.subr.mxu0 0.0
        %1291 = vmatpush2.msra.mxu0 0.0
        %1292 = vmatprep.subr.mxu0 0.0
        %1293 = vmatpush2.msra.mxu0 0.0
        %1294 = vmatprep.subr.mxu0 0.0
        %1295 = vmatpush2.msra.mxu0 0.0
        %1296 = vmatprep.subr.mxu0 0.0
        %1297 = vmatpush2.msra.mxu0 0.0
        %1298 = vmatprep.subr.mxu0 0.0
        %1299 = vmatpush2.msra.mxu0 0.0
        %1300 = vmatprep.subr.mxu0 0.0
        %1301 = vmatpush2.msra.mxu0 0.0
        %1302 = vmatprep.subr.mxu0 0.0
        %1303 = vmatpush2.msra.mxu0 0.0
        %1304 = vmatprep.mubr.f32.mxu0 0.0
        %1305 = vmatmul.mubr.f32.gmra.mxu0 %v1152
        %v1306 = vpop.f32.mrf.mxu0
        %v1307 = vadd.f32 0.0, %v1306
        %v1308 = vpop.f32.mrf.mxu0
        %1309 = vmatprep.mubr.f32.mxu0 0.0
        %1310 = vmatmul.mubr.f32.gmra.mxu0 %v1155
        %v1311 = vpop.f32.mrf.mxu0
        %v1312 = vadd.f32 0.0, %v1311
        %v1313 = vpop.f32.mrf.mxu0
        %1314 = vdwg.mxu0
        %v1315 = vadd.f32 %v1145, %v1230
        %v1316 = vadd.f32 %v1146, %v1232
        %v1317 = vadd.f32 %v1147, %v1307
        %v1318 = vadd.f32 %v1148, %v1236
        %v1319 = vadd.f32 %v1149, %v1238
        %v1320 = vadd.f32 %v1150, %v1312
        %1321 = vrot.lane.b32.xlu0 %v310, 127
        %v1322 = vpop.permute.xlu0 %1321
        %1323 = vrot.lane.b32.xlu0 %v425, 127
        %v1324 = vpop.permute.xlu0 %1323
        %1325 = vrot.lane.b32.xlu0 %v311, 127
        %v1326 = vpop.permute.xlu0 %1325
        %vm1327 = vcmp.lt.s32.totalorder %v434, 127
        %v1328 = vsel %vm1327, %v1324, %v1326
        %v1329 = vsel %vm1327, %v1322, %v1324
        %v1330 = vsel %vm1327, %v1326, %v1322
        %v1332 = vsel %vm449, %v322, 0
        %v1335 = vsel %vm449, %v323, 0
        %v1338 = vsel %vm456, %v1329, 0
        %v1341 = vsel %vm456, %v1328, 0
        %v1344 = vsel %vm456, %v1330, 0
        %1346 = vmatprep.subr.mxu0 0.0
        %1347 = vmatpush1.msra.mxu0 0.0
        %1348 = vmatprep.subr.mxu0 0.0
        %1349 = vmatpush1.msra.mxu0 0.0
        %1350 = vmatprep.subr.mxu0 0.0
        %1351 = vmatpush1.msra.mxu0 0.0
        %1352 = vmatprep.subr.mxu0 0.0
        %1353 = vmatpush1.msra.mxu0 0.0
        %1354 = vmatprep.subr.mxu0 0.0
        %1355 = vmatpush1.msra.mxu0 0.0
        %1356 = vmatprep.subr.mxu0 0.0
        %1357 = vmatpush1.msra.mxu0 0.0
        %1358 = vmatprep.subr.mxu0 0.0
        %1359 = vmatpush1.msra.mxu0 0.0
        %1360 = vmatprep.subr.mxu0 0.0
        %1361 = vmatpush1.msra.mxu0 0.0
        %1362 = vmatprep.subr.mxu0 0.0
        %1363 = vmatpush1.msra.mxu0 0.0
        %1364 = vmatprep.subr.mxu0 0.0
        %1365 = vmatpush1.msra.mxu0 0.0
        %1366 = vmatprep.subr.mxu0 0.0
        %1367 = vmatpush1.msra.mxu0 0.0
        %1368 = vmatprep.subr.mxu0 0.0
        %1369 = vmatpush1.msra.mxu0 0.0
        %1370 = vmatprep.subr.mxu0 0.0
        %1371 = vmatpush1.msra.mxu0 0.0
        %1372 = vmatprep.subr.mxu0 0.0
        %1373 = vmatpush1.msra.mxu0 0.0
        %1374 = vmatprep.subr.mxu0 0.0
        %1375 = vmatpush1.msra.mxu0 0.0
        %1376 = vmatprep.subr.mxu0 %v1341
        %1377 = vmatpush1.msra.mxu0 %v1338
        %1378 = vmatprep.subr.mxu0 0.0
        %1379 = vmatpush2.msra.mxu0 0.0
        %1380 = vmatprep.subr.mxu0 0.0
        %1381 = vmatpush2.msra.mxu0 0.0
        %1382 = vmatprep.subr.mxu0 0.0
        %1383 = vmatpush2.msra.mxu0 0.0
        %1384 = vmatprep.subr.mxu0 0.0
        %1385 = vmatpush2.msra.mxu0 0.0
        %1386 = vmatprep.subr.mxu0 0.0
        %1387 = vmatpush2.msra.mxu0 0.0
        %1388 = vmatprep.subr.mxu0 0.0
        %1389 = vmatpush2.msra.mxu0 0.0
        %1390 = vmatprep.subr.mxu0 0.0
        %1391 = vmatpush2.msra.mxu0 0.0
        %1392 = vmatprep.subr.mxu0 0.0
        %1393 = vmatpush2.msra.mxu0 0.0
        %1394 = vmatprep.subr.mxu0 0.0
        %1395 = vmatpush2.msra.mxu0 0.0
        %1396 = vmatprep.subr.mxu0 0.0
        %1397 = vmatpush2.msra.mxu0 0.0
        %1398 = vmatprep.subr.mxu0 0.0
        %1399 = vmatpush2.msra.mxu0 0.0
        %1400 = vmatprep.subr.mxu0 0.0
        %1401 = vmatpush2.msra.mxu0 0.0
        %1402 = vmatprep.subr.mxu0 0.0
        %1403 = vmatpush2.msra.mxu0 0.0
        %1404 = vmatprep.subr.mxu0 0.0
        %1405 = vmatpush2.msra.mxu0 0.0
        %1406 = vmatprep.subr.mxu0 0.0
        %1407 = vmatpush2.msra.mxu0 0.0
        %1408 = vmatprep.subr.mxu0 0.0
        %1409 = vmatpush2.msra.mxu0 0.0
        %1410 = vmatprep.mubr.f32.mxu0 0.0
        %1411 = vmatmul.mubr.f32.gmra.mxu0 %v1332
        %v1412 = vpop.f32.mrf.mxu0
        %v1413 = vadd.f32 0.0, %v1412
        %v1414 = vpop.f32.mrf.mxu0
        %v1415 = vadd.f32 0.0, %v1414
        %1416 = vmatprep.mubr.f32.mxu0 0.0
        %1417 = vmatmul.mubr.f32.gmra.mxu0 %v1335
        %v1418 = vpop.f32.mrf.mxu0
        %v1419 = vadd.f32 0.0, %v1418
        %v1420 = vpop.f32.mrf.mxu0
        %v1421 = vadd.f32 0.0, %v1420
        %1422 = vdwg.mxu0
        %1423 = vmatprep.subr.mxu0 0.0
        %1424 = vmatpush1.msra.mxu0 0.0
        %1425 = vmatprep.subr.mxu0 0.0
        %1426 = vmatpush1.msra.mxu0 0.0
        %1427 = vmatprep.subr.mxu0 0.0
        %1428 = vmatpush1.msra.mxu0 0.0
        %1429 = vmatprep.subr.mxu0 0.0
        %1430 = vmatpush1.msra.mxu0 0.0
        %1431 = vmatprep.subr.mxu0 0.0
        %1432 = vmatpush1.msra.mxu0 0.0
        %1433 = vmatprep.subr.mxu0 0.0
        %1434 = vmatpush1.msra.mxu0 0.0
        %1435 = vmatprep.subr.mxu0 0.0
        %1436 = vmatpush1.msra.mxu0 0.0
        %1437 = vmatprep.subr.mxu0 0.0
        %1438 = vmatpush1.msra.mxu0 0.0
        %1439 = vmatprep.subr.mxu0 0.0
        %1440 = vmatpush1.msra.mxu0 0.0
        %1441 = vmatprep.subr.mxu0 0.0
        %1442 = vmatpush1.msra.mxu0 0.0
        %1443 = vmatprep.subr.mxu0 0.0
        %1444 = vmatpush1.msra.mxu0 0.0
        %1445 = vmatprep.subr.mxu0 0.0
        %1446 = vmatpush1.msra.mxu0 0.0
        %1447 = vmatprep.subr.mxu0 0.0
        %1448 = vmatpush1.msra.mxu0 0.0
        %1449 = vmatprep.subr.mxu0 0.0
        %1450 = vmatpush1.msra.mxu0 0.0
        %1451 = vmatprep.subr.mxu0 0.0
        %1452 = vmatpush1.msra.mxu0 0.0
        %1453 = vmatprep.subr.mxu0 0.0
        %1454 = vmatpush1.msra.mxu0 %v1344
        %1455 = vmatprep.subr.mxu0 0.0
        %1456 = vmatpush2.msra.mxu0 0.0
        %1457 = vmatprep.subr.mxu0 0.0
        %1458 = vmatpush2.msra.mxu0 0.0
        %1459 = vmatprep.subr.mxu0 0.0
        %1460 = vmatpush2.msra.mxu0 0.0
        %1461 = vmatprep.subr.mxu0 0.0
        %1462 = vmatpush2.msra.mxu0 0.0
        %1463 = vmatprep.subr.mxu0 0.0
        %1464 = vmatpush2.msra.mxu0 0.0
        %1465 = vmatprep.subr.mxu0 0.0
        %1466 = vmatpush2.msra.mxu0 0.0
        %1467 = vmatprep.subr.mxu0 0.0
        %1468 = vmatpush2.msra.mxu0 0.0
        %1469 = vmatprep.subr.mxu0 0.0
        %1470 = vmatpush2.msra.mxu0 0.0
        %1471 = vmatprep.subr.mxu0 0.0
        %1472 = vmatpush2.msra.mxu0 0.0
        %1473 = vmatprep.subr.mxu0 0.0
        %1474 = vmatpush2.msra.mxu0 0.0
        %1475 = vmatprep.subr.mxu0 0.0
        %1476 = vmatpush2.msra.mxu0 0.0
        %1477 = vmatprep.subr.mxu0 0.0
        %1478 = vmatpush2.msra.mxu0 0.0
        %1479 = vmatprep.subr.mxu0 0.0
        %1480 = vmatpush2.msra.mxu0 0.0
        %1481 = vmatprep.subr.mxu0 0.0
        %1482 = vmatpush2.msra.mxu0 0.0
        %1483 = vmatprep.subr.mxu0 0.0
        %1484 = vmatpush2.msra.mxu0 0.0
        %1485 = vmatprep.subr.mxu0 0.0
        %1486 = vmatpush2.msra.mxu0 0.0
        %1487 = vmatprep.mubr.f32.mxu0 0.0
        %1488 = vmatmul.mubr.f32.gmra.mxu0 %v1332
        %v1489 = vpop.f32.mrf.mxu0
        %v1490 = vadd.f32 0.0, %v1489
        %v1491 = vpop.f32.mrf.mxu0
        %1492 = vmatprep.mubr.f32.mxu0 0.0
        %1493 = vmatmul.mubr.f32.gmra.mxu0 %v1335
        %v1494 = vpop.f32.mrf.mxu0
        %v1495 = vadd.f32 0.0, %v1494
        %v1496 = vpop.f32.mrf.mxu0
        %1497 = vdwg.mxu0
        %v1498 = vadd.f32 %v1315, %v1413
        %v1499 = vadd.f32 %v1316, %v1415
        %v1500 = vadd.f32 %v1317, %v1490
        %v1501 = vadd.f32 %v1318, %v1419
        %v1502 = vadd.f32 %v1319, %v1421
        %v1503 = vadd.f32 %v1320, %v1495
        %1504 = vrot.lane.b32.xlu0 %v310, 113
        %v1505 = vpop.permute.xlu0 %1504
        %1506 = vrot.lane.b32.xlu0 %v425, 113
        %v1507 = vpop.permute.xlu0 %1506
        %1508 = vrot.lane.b32.xlu0 %v311, 113
        %v1509 = vpop.permute.xlu0 %1508
        %vm1510 = vcmp.lt.s32.totalorder %v434, 113
        %v1511 = vsel %vm1510, %v1507, %v1509
        %v1512 = vsel %vm1510, %v1505, %v1507
        %v1513 = vsel %vm1510, %v1509, %v1505
        %v1515 = vsel %vm449, %v324, 0
        %v1518 = vsel %vm449, %v325, 0
        %v1521 = vsel %vm456, %v1512, 0
        %v1524 = vsel %vm456, %v1511, 0
        %v1527 = vsel %vm456, %v1513, 0
        %1529 = vmatprep.subr.mxu0 0.0
        %1530 = vmatpush1.msra.mxu0 0.0
        %1531 = vmatprep.subr.mxu0 0.0
        %1532 = vmatpush1.msra.mxu0 0.0
        %1533 = vmatprep.subr.mxu0 0.0
        %1534 = vmatpush1.msra.mxu0 0.0
        %1535 = vmatprep.subr.mxu0 0.0
        %1536 = vmatpush1.msra.mxu0 0.0
        %1537 = vmatprep.subr.mxu0 0.0
        %1538 = vmatpush1.msra.mxu0 0.0
        %1539 = vmatprep.subr.mxu0 0.0
        %1540 = vmatpush1.msra.mxu0 0.0
        %1541 = vmatprep.subr.mxu0 0.0
        %1542 = vmatpush1.msra.mxu0 0.0
        %1543 = vmatprep.subr.mxu0 0.0
        %1544 = vmatpush1.msra.mxu0 0.0
        %1545 = vmatprep.subr.mxu0 0.0
        %1546 = vmatpush1.msra.mxu0 0.0
        %1547 = vmatprep.subr.mxu0 0.0
        %1548 = vmatpush1.msra.mxu0 0.0
        %1549 = vmatprep.subr.mxu0 0.0
        %1550 = vmatpush1.msra.mxu0 0.0
        %1551 = vmatprep.subr.mxu0 0.0
        %1552 = vmatpush1.msra.mxu0 0.0
        %1553 = vmatprep.subr.mxu0 0.0
        %1554 = vmatpush1.msra.mxu0 0.0
        %1555 = vmatprep.subr.mxu0 0.0
        %1556 = vmatpush1.msra.mxu0 0.0
        %1557 = vmatprep.subr.mxu0 0.0
        %1558 = vmatpush1.msra.mxu0 0.0
        %1559 = vmatprep.subr.mxu0 %v1524
        %1560 = vmatpush1.msra.mxu0 %v1521
        %1561 = vmatprep.subr.mxu0 0.0
        %1562 = vmatpush2.msra.mxu0 0.0
        %1563 = vmatprep.subr.mxu0 0.0
        %1564 = vmatpush2.msra.mxu0 0.0
        %1565 = vmatprep.subr.mxu0 0.0
        %1566 = vmatpush2.msra.mxu0 0.0
        %1567 = vmatprep.subr.mxu0 0.0
        %1568 = vmatpush2.msra.mxu0 0.0
        %1569 = vmatprep.subr.mxu0 0.0
        %1570 = vmatpush2.msra.mxu0 0.0
        %1571 = vmatprep.subr.mxu0 0.0
        %1572 = vmatpush2.msra.mxu0 0.0
        %1573 = vmatprep.subr.mxu0 0.0
        %1574 = vmatpush2.msra.mxu0 0.0
        %1575 = vmatprep.subr.mxu0 0.0
        %1576 = vmatpush2.msra.mxu0 0.0
        %1577 = vmatprep.subr.mxu0 0.0
        %1578 = vmatpush2.msra.mxu0 0.0
        %1579 = vmatprep.subr.mxu0 0.0
        %1580 = vmatpush2.msra.mxu0 0.0
        %1581 = vmatprep.subr.mxu0 0.0
        %1582 = vmatpush2.msra.mxu0 0.0
        %1583 = vmatprep.subr.mxu0 0.0
        %1584 = vmatpush2.msra.mxu0 0.0
        %1585 = vmatprep.subr.mxu0 0.0
        %1586 = vmatpush2.msra.mxu0 0.0
        %1587 = vmatprep.subr.mxu0 0.0
        %1588 = vmatpush2.msra.mxu0 0.0
        %1589 = vmatprep.subr.mxu0 0.0
        %1590 = vmatpush2.msra.mxu0 0.0
        %1591 = vmatprep.subr.mxu0 0.0
        %1592 = vmatpush2.msra.mxu0 0.0
        %1593 = vmatprep.mubr.f32.mxu0 0.0
        %1594 = vmatmul.mubr.f32.gmra.mxu0 %v1515
        %v1595 = vpop.f32.mrf.mxu0
        %v1596 = vadd.f32 0.0, %v1595
        %v1597 = vpop.f32.mrf.mxu0
        %v1598 = vadd.f32 0.0, %v1597
        %1599 = vmatprep.mubr.f32.mxu0 0.0
        %1600 = vmatmul.mubr.f32.gmra.mxu0 %v1518
        %v1601 = vpop.f32.mrf.mxu0
        %v1602 = vadd.f32 0.0, %v1601
        %v1603 = vpop.f32.mrf.mxu0
        %v1604 = vadd.f32 0.0, %v1603
        %1605 = vdwg.mxu0
        %1606 = vmatprep.subr.mxu0 0.0
        %1607 = vmatpush1.msra.mxu0 0.0
        %1608 = vmatprep.subr.mxu0 0.0
        %1609 = vmatpush1.msra.mxu0 0.0
        %1610 = vmatprep.subr.mxu0 0.0
        %1611 = vmatpush1.msra.mxu0 0.0
        %1612 = vmatprep.subr.mxu0 0.0
        %1613 = vmatpush1.msra.mxu0 0.0
        %1614 = vmatprep.subr.mxu0 0.0
        %1615 = vmatpush1.msra.mxu0 0.0
        %1616 = vmatprep.subr.mxu0 0.0
        %1617 = vmatpush1.msra.mxu0 0.0
        %1618 = vmatprep.subr.mxu0 0.0
        %1619 = vmatpush1.msra.mxu0 0.0
        %1620 = vmatprep.subr.mxu0 0.0
        %1621 = vmatpush1.msra.mxu0 0.0
        %1622 = vmatprep.subr.mxu0 0.0
        %1623 = vmatpush1.msra.mxu0 0.0
        %1624 = vmatprep.subr.mxu0 0.0
        %1625 = vmatpush1.msra.mxu0 0.0
        %1626 = vmatprep.subr.mxu0 0.0
        %1627 = vmatpush1.msra.mxu0 0.0
        %1628 = vmatprep.subr.mxu0 0.0
        %1629 = vmatpush1.msra.mxu0 0.0
        %1630 = vmatprep.subr.mxu0 0.0
        %1631 = vmatpush1.msra.mxu0 0.0
        %1632 = vmatprep.subr.mxu0 0.0
        %1633 = vmatpush1.msra.mxu0 0.0
        %1634 = vmatprep.subr.mxu0 0.0
        %1635 = vmatpush1.msra.mxu0 0.0
        %1636 = vmatprep.subr.mxu0 0.0
        %1637 = vmatpush1.msra.mxu0 %v1527
        %1638 = vmatprep.subr.mxu0 0.0
        %1639 = vmatpush2.msra.mxu0 0.0
        %1640 = vmatprep.subr.mxu0 0.0
        %1641 = vmatpush2.msra.mxu0 0.0
        %1642 = vmatprep.subr.mxu0 0.0
        %1643 = vmatpush2.msra.mxu0 0.0
        %1644 = vmatprep.subr.mxu0 0.0
        %1645 = vmatpush2.msra.mxu0 0.0
        %1646 = vmatprep.subr.mxu0 0.0
        %1647 = vmatpush2.msra.mxu0 0.0
        %1648 = vmatprep.subr.mxu0 0.0
        %1649 = vmatpush2.msra.mxu0 0.0
        %1650 = vmatprep.subr.mxu0 0.0
        %1651 = vmatpush2.msra.mxu0 0.0
        %1652 = vmatprep.subr.mxu0 0.0
        %1653 = vmatpush2.msra.mxu0 0.0
        %1654 = vmatprep.subr.mxu0 0.0
        %1655 = vmatpush2.msra.mxu0 0.0
        %1656 = vmatprep.subr.mxu0 0.0
        %1657 = vmatpush2.msra.mxu0 0.0
        %1658 = vmatprep.subr.mxu0 0.0
        %1659 = vmatpush2.msra.mxu0 0.0
        %1660 = vmatprep.subr.mxu0 0.0
        %1661 = vmatpush2.msra.mxu0 0.0
        %1662 = vmatprep.subr.mxu0 0.0
        %1663 = vmatpush2.msra.mxu0 0.0
        %1664 = vmatprep.subr.mxu0 0.0
        %1665 = vmatpush2.msra.mxu0 0.0
        %1666 = vmatprep.subr.mxu0 0.0
        %1667 = vmatpush2.msra.mxu0 0.0
        %1668 = vmatprep.subr.mxu0 0.0
        %1669 = vmatpush2.msra.mxu0 0.0
        %1670 = vmatprep.mubr.f32.mxu0 0.0
        %1671 = vmatmul.mubr.f32.gmra.mxu0 %v1515
        %v1672 = vpop.f32.mrf.mxu0
        %v1673 = vadd.f32 0.0, %v1672
        %v1674 = vpop.f32.mrf.mxu0
        %1675 = vmatprep.mubr.f32.mxu0 0.0
        %1676 = vmatmul.mubr.f32.gmra.mxu0 %v1518
        %v1677 = vpop.f32.mrf.mxu0
        %v1678 = vadd.f32 0.0, %v1677
        %v1679 = vpop.f32.mrf.mxu0
        %1680 = vdwg.mxu0
        %v1681 = vadd.f32 %v1498, %v1596
        %v1682 = vadd.f32 %v1499, %v1598
        %v1683 = vadd.f32 %v1500, %v1673
        %v1684 = vadd.f32 %v1501, %v1602
        %v1685 = vadd.f32 %v1502, %v1604
        %v1686 = vadd.f32 %v1503, %v1678
        %1687 = vrot.lane.b32.xlu0 %v310, 112
        %v1688 = vpop.permute.xlu0 %1687
        %1689 = vrot.lane.b32.xlu0 %v425, 112
        %v1690 = vpop.permute.xlu0 %1689
        %1691 = vrot.lane.b32.xlu0 %v311, 112
        %v1692 = vpop.permute.xlu0 %1691
        %vm1693 = vcmp.lt.s32.totalorder %v434, 112
        %v1694 = vsel %vm1693, %v1690, %v1692
        %v1695 = vsel %vm1693, %v1688, %v1690
        %v1696 = vsel %vm1693, %v1692, %v1688
        %v1698 = vsel %vm449, %v326, 0
        %v1701 = vsel %vm449, %v327, 0
        %v1704 = vsel %vm456, %v1695, 0
        %v1707 = vsel %vm456, %v1694, 0
        %v1710 = vsel %vm456, %v1696, 0
        %1712 = vmatprep.subr.mxu0 0.0
        %1713 = vmatpush1.msra.mxu0 0.0
        %1714 = vmatprep.subr.mxu0 0.0
        %1715 = vmatpush1.msra.mxu0 0.0
        %1716 = vmatprep.subr.mxu0 0.0
        %1717 = vmatpush1.msra.mxu0 0.0
        %1718 = vmatprep.subr.mxu0 0.0
        %1719 = vmatpush1.msra.mxu0 0.0
        %1720 = vmatprep.subr.mxu0 0.0
        %1721 = vmatpush1.msra.mxu0 0.0
        %1722 = vmatprep.subr.mxu0 0.0
        %1723 = vmatpush1.msra.mxu0 0.0
        %1724 = vmatprep.subr.mxu0 0.0
        %1725 = vmatpush1.msra.mxu0 0.0
        %1726 = vmatprep.subr.mxu0 0.0
        %1727 = vmatpush1.msra.mxu0 0.0
        %1728 = vmatprep.subr.mxu0 0.0
        %1729 = vmatpush1.msra.mxu0 0.0
        %1730 = vmatprep.subr.mxu0 0.0
        %1731 = vmatpush1.msra.mxu0 0.0
        %1732 = vmatprep.subr.mxu0 0.0
        %1733 = vmatpush1.msra.mxu0 0.0
        %1734 = vmatprep.subr.mxu0 0.0
        %1735 = vmatpush1.msra.mxu0 0.0
        %1736 = vmatprep.subr.mxu0 0.0
        %1737 = vmatpush1.msra.mxu0 0.0
        %1738 = vmatprep.subr.mxu0 0.0
        %1739 = vmatpush1.msra.mxu0 0.0
        %1740 = vmatprep.subr.mxu0 0.0
        %1741 = vmatpush1.msra.mxu0 0.0
        %1742 = vmatprep.subr.mxu0 %v1707
        %1743 = vmatpush1.msra.mxu0 %v1704
        %1744 = vmatprep.subr.mxu0 0.0
        %1745 = vmatpush2.msra.mxu0 0.0
        %1746 = vmatprep.subr.mxu0 0.0
        %1747 = vmatpush2.msra.mxu0 0.0
        %1748 = vmatprep.subr.mxu0 0.0
        %1749 = vmatpush2.msra.mxu0 0.0
        %1750 = vmatprep.subr.mxu0 0.0
        %1751 = vmatpush2.msra.mxu0 0.0
        %1752 = vmatprep.subr.mxu0 0.0
        %1753 = vmatpush2.msra.mxu0 0.0
        %1754 = vmatprep.subr.mxu0 0.0
        %1755 = vmatpush2.msra.mxu0 0.0
        %1756 = vmatprep.subr.mxu0 0.0
        %1757 = vmatpush2.msra.mxu0 0.0
        %1758 = vmatprep.subr.mxu0 0.0
        %1759 = vmatpush2.msra.mxu0 0.0
        %1760 = vmatprep.subr.mxu0 0.0
        %1761 = vmatpush2.msra.mxu0 0.0
        %1762 = vmatprep.subr.mxu0 0.0
        %1763 = vmatpush2.msra.mxu0 0.0
        %1764 = vmatprep.subr.mxu0 0.0
        %1765 = vmatpush2.msra.mxu0 0.0
        %1766 = vmatprep.subr.mxu0 0.0
        %1767 = vmatpush2.msra.mxu0 0.0
        %1768 = vmatprep.subr.mxu0 0.0
        %1769 = vmatpush2.msra.mxu0 0.0
        %1770 = vmatprep.subr.mxu0 0.0
        %1771 = vmatpush2.msra.mxu0 0.0
        %1772 = vmatprep.subr.mxu0 0.0
        %1773 = vmatpush2.msra.mxu0 0.0
        %1774 = vmatprep.subr.mxu0 0.0
        %1775 = vmatpush2.msra.mxu0 0.0
        %1776 = vmatprep.mubr.f32.mxu0 0.0
        %1777 = vmatmul.mubr.f32.gmra.mxu0 %v1698
        %v1778 = vpop.f32.mrf.mxu0
        %v1779 = vadd.f32 0.0, %v1778
        %v1780 = vpop.f32.mrf.mxu0
        %v1781 = vadd.f32 0.0, %v1780
        %1782 = vmatprep.mubr.f32.mxu0 0.0
        %1783 = vmatmul.mubr.f32.gmra.mxu0 %v1701
        %v1784 = vpop.f32.mrf.mxu0
        %v1785 = vadd.f32 0.0, %v1784
        %v1786 = vpop.f32.mrf.mxu0
        %v1787 = vadd.f32 0.0, %v1786
        %1788 = vdwg.mxu0
        %1789 = vmatprep.subr.mxu0 0.0
        %1790 = vmatpush1.msra.mxu0 0.0
        %1791 = vmatprep.subr.mxu0 0.0
        %1792 = vmatpush1.msra.mxu0 0.0
        %1793 = vmatprep.subr.mxu0 0.0
        %1794 = vmatpush1.msra.mxu0 0.0
        %1795 = vmatprep.subr.mxu0 0.0
        %1796 = vmatpush1.msra.mxu0 0.0
        %1797 = vmatprep.subr.mxu0 0.0
        %1798 = vmatpush1.msra.mxu0 0.0
        %1799 = vmatprep.subr.mxu0 0.0
        %1800 = vmatpush1.msra.mxu0 0.0
        %1801 = vmatprep.subr.mxu0 0.0
        %1802 = vmatpush1.msra.mxu0 0.0
        %1803 = vmatprep.subr.mxu0 0.0
        %1804 = vmatpush1.msra.mxu0 0.0
        %1805 = vmatprep.subr.mxu0 0.0
        %1806 = vmatpush1.msra.mxu0 0.0
        %1807 = vmatprep.subr.mxu0 0.0
        %1808 = vmatpush1.msra.mxu0 0.0
        %1809 = vmatprep.subr.mxu0 0.0
        %1810 = vmatpush1.msra.mxu0 0.0
        %1811 = vmatprep.subr.mxu0 0.0
        %1812 = vmatpush1.msra.mxu0 0.0
        %1813 = vmatprep.subr.mxu0 0.0
        %1814 = vmatpush1.msra.mxu0 0.0
        %1815 = vmatprep.subr.mxu0 0.0
        %1816 = vmatpush1.msra.mxu0 0.0
        %1817 = vmatprep.subr.mxu0 0.0
        %1818 = vmatpush1.msra.mxu0 0.0
        %1819 = vmatprep.subr.mxu0 0.0
        %1820 = vmatpush1.msra.mxu0 %v1710
        %1821 = vmatprep.subr.mxu0 0.0
        %1822 = vmatpush2.msra.mxu0 0.0
        %1823 = vmatprep.subr.mxu0 0.0
        %1824 = vmatpush2.msra.mxu0 0.0
        %1825 = vmatprep.subr.mxu0 0.0
        %1826 = vmatpush2.msra.mxu0 0.0
        %1827 = vmatprep.subr.mxu0 0.0
        %1828 = vmatpush2.msra.mxu0 0.0
        %1829 = vmatprep.subr.mxu0 0.0
        %1830 = vmatpush2.msra.mxu0 0.0
        %1831 = vmatprep.subr.mxu0 0.0
        %1832 = vmatpush2.msra.mxu0 0.0
        %1833 = vmatprep.subr.mxu0 0.0
        %1834 = vmatpush2.msra.mxu0 0.0
        %1835 = vmatprep.subr.mxu0 0.0
        %1836 = vmatpush2.msra.mxu0 0.0
        %1837 = vmatprep.subr.mxu0 0.0
        %1838 = vmatpush2.msra.mxu0 0.0
        %1839 = vmatprep.subr.mxu0 0.0
        %1840 = vmatpush2.msra.mxu0 0.0
        %1841 = vmatprep.subr.mxu0 0.0
        %1842 = vmatpush2.msra.mxu0 0.0
        %1843 = vmatprep.subr.mxu0 0.0
        %1844 = vmatpush2.msra.mxu0 0.0
        %1845 = vmatprep.subr.mxu0 0.0
        %1846 = vmatpush2.msra.mxu0 0.0
        %1847 = vmatprep.subr.mxu0 0.0
        %1848 = vmatpush2.msra.mxu0 0.0
        %1849 = vmatprep.subr.mxu0 0.0
        %1850 = vmatpush2.msra.mxu0 0.0
        %1851 = vmatprep.subr.mxu0 0.0
        %1852 = vmatpush2.msra.mxu0 0.0
        %1853 = vmatprep.mubr.f32.mxu0 0.0
        %1854 = vmatmul.mubr.f32.gmra.mxu0 %v1698
        %v1855 = vpop.f32.mrf.mxu0
        %v1856 = vadd.f32 0.0, %v1855
        %v1857 = vpop.f32.mrf.mxu0
        %1858 = vmatprep.mubr.f32.mxu0 0.0
        %1859 = vmatmul.mubr.f32.gmra.mxu0 %v1701
        %v1860 = vpop.f32.mrf.mxu0
        %v1861 = vadd.f32 0.0, %v1860
        %v1862 = vpop.f32.mrf.mxu0
        %1863 = vdwg.mxu0
        %v1864 = vadd.f32 %v1681, %v1779
        %v1865 = vadd.f32 %v1682, %v1781
        %v1866 = vadd.f32 %v1683, %v1856
        %v1867 = vadd.f32 %v1684, %v1785
        %v1868 = vadd.f32 %v1685, %v1787
        %v1869 = vadd.f32 %v1686, %v1861
        %1870 = vrot.lane.b32.xlu0 %v310, 111
        %v1871 = vpop.permute.xlu0 %1870
        %1872 = vrot.lane.b32.xlu0 %v425, 111
        %v1873 = vpop.permute.xlu0 %1872
        %1874 = vrot.lane.b32.xlu0 %v311, 111
        %v1875 = vpop.permute.xlu0 %1874
        %vm1876 = vcmp.lt.s32.totalorder %v434, 111
        %v1877 = vsel %vm1876, %v1873, %v1875
        %v1878 = vsel %vm1876, %v1871, %v1873
        %v1879 = vsel %vm1876, %v1875, %v1871
        %v1881 = vsel %vm449, %v328, 0
        %v1884 = vsel %vm449, %v329, 0
        %v1887 = vsel %vm456, %v1878, 0
        %v1890 = vsel %vm456, %v1877, 0
        %v1893 = vsel %vm456, %v1879, 0
        %1895 = vmatprep.subr.mxu0 0.0
        %1896 = vmatpush1.msra.mxu0 0.0
        %1897 = vmatprep.subr.mxu0 0.0
        %1898 = vmatpush1.msra.mxu0 0.0
        %1899 = vmatprep.subr.mxu0 0.0
        %1900 = vmatpush1.msra.mxu0 0.0
        %1901 = vmatprep.subr.mxu0 0.0
        %1902 = vmatpush1.msra.mxu0 0.0
        %1903 = vmatprep.subr.mxu0 0.0
        %1904 = vmatpush1.msra.mxu0 0.0
        %1905 = vmatprep.subr.mxu0 0.0
        %1906 = vmatpush1.msra.mxu0 0.0
        %1907 = vmatprep.subr.mxu0 0.0
        %1908 = vmatpush1.msra.mxu0 0.0
        %1909 = vmatprep.subr.mxu0 0.0
        %1910 = vmatpush1.msra.mxu0 0.0
        %1911 = vmatprep.subr.mxu0 0.0
        %1912 = vmatpush1.msra.mxu0 0.0
        %1913 = vmatprep.subr.mxu0 0.0
        %1914 = vmatpush1.msra.mxu0 0.0
        %1915 = vmatprep.subr.mxu0 0.0
        %1916 = vmatpush1.msra.mxu0 0.0
        %1917 = vmatprep.subr.mxu0 0.0
        %1918 = vmatpush1.msra.mxu0 0.0
        %1919 = vmatprep.subr.mxu0 0.0
        %1920 = vmatpush1.msra.mxu0 0.0
        %1921 = vmatprep.subr.mxu0 0.0
        %1922 = vmatpush1.msra.mxu0 0.0
        %1923 = vmatprep.subr.mxu0 0.0
        %1924 = vmatpush1.msra.mxu0 0.0
        %1925 = vmatprep.subr.mxu0 %v1890
        %1926 = vmatpush1.msra.mxu0 %v1887
        %1927 = vmatprep.subr.mxu0 0.0
        %1928 = vmatpush2.msra.mxu0 0.0
        %1929 = vmatprep.subr.mxu0 0.0
        %1930 = vmatpush2.msra.mxu0 0.0
        %1931 = vmatprep.subr.mxu0 0.0
        %1932 = vmatpush2.msra.mxu0 0.0
        %1933 = vmatprep.subr.mxu0 0.0
        %1934 = vmatpush2.msra.mxu0 0.0
        %1935 = vmatprep.subr.mxu0 0.0
        %1936 = vmatpush2.msra.mxu0 0.0
        %1937 = vmatprep.subr.mxu0 0.0
        %1938 = vmatpush2.msra.mxu0 0.0
        %1939 = vmatprep.subr.mxu0 0.0
        %1940 = vmatpush2.msra.mxu0 0.0
        %1941 = vmatprep.subr.mxu0 0.0
        %1942 = vmatpush2.msra.mxu0 0.0
        %1943 = vmatprep.subr.mxu0 0.0
        %1944 = vmatpush2.msra.mxu0 0.0
        %1945 = vmatprep.subr.mxu0 0.0
        %1946 = vmatpush2.msra.mxu0 0.0
        %1947 = vmatprep.subr.mxu0 0.0
        %1948 = vmatpush2.msra.mxu0 0.0
        %1949 = vmatprep.subr.mxu0 0.0
        %1950 = vmatpush2.msra.mxu0 0.0
        %1951 = vmatprep.subr.mxu0 0.0
        %1952 = vmatpush2.msra.mxu0 0.0
        %1953 = vmatprep.subr.mxu0 0.0
        %1954 = vmatpush2.msra.mxu0 0.0
        %1955 = vmatprep.subr.mxu0 0.0
        %1956 = vmatpush2.msra.mxu0 0.0
        %1957 = vmatprep.subr.mxu0 0.0
        %1958 = vmatpush2.msra.mxu0 0.0
        %1959 = vmatprep.mubr.f32.mxu0 0.0
        %1960 = vmatmul.mubr.f32.gmra.mxu0 %v1881
        %v1961 = vpop.f32.mrf.mxu0
        %v1962 = vadd.f32 0.0, %v1961
        %v1963 = vpop.f32.mrf.mxu0
        %v1964 = vadd.f32 0.0, %v1963
        %1965 = vmatprep.mubr.f32.mxu0 0.0
        %1966 = vmatmul.mubr.f32.gmra.mxu0 %v1884
        %v1967 = vpop.f32.mrf.mxu0
        %v1968 = vadd.f32 0.0, %v1967
        %v1969 = vpop.f32.mrf.mxu0
        %v1970 = vadd.f32 0.0, %v1969
        %1971 = vdwg.mxu0
        %1972 = vmatprep.subr.mxu0 0.0
        %1973 = vmatpush1.msra.mxu0 0.0
        %1974 = vmatprep.subr.mxu0 0.0
        %1975 = vmatpush1.msra.mxu0 0.0
        %1976 = vmatprep.subr.mxu0 0.0
        %1977 = vmatpush1.msra.mxu0 0.0
        %1978 = vmatprep.subr.mxu0 0.0
        %1979 = vmatpush1.msra.mxu0 0.0
        %1980 = vmatprep.subr.mxu0 0.0
        %1981 = vmatpush1.msra.mxu0 0.0
        %1982 = vmatprep.subr.mxu0 0.0
        %1983 = vmatpush1.msra.mxu0 0.0
        %1984 = vmatprep.subr.mxu0 0.0
        %1985 = vmatpush1.msra.mxu0 0.0
        %1986 = vmatprep.subr.mxu0 0.0
        %1987 = vmatpush1.msra.mxu0 0.0
        %1988 = vmatprep.subr.mxu0 0.0
        %1989 = vmatpush1.msra.mxu0 0.0
        %1990 = vmatprep.subr.mxu0 0.0
        %1991 = vmatpush1.msra.mxu0 0.0
        %1992 = vmatprep.subr.mxu0 0.0
        %1993 = vmatpush1.msra.mxu0 0.0
        %1994 = vmatprep.subr.mxu0 0.0
        %1995 = vmatpush1.msra.mxu0 0.0
        %1996 = vmatprep.subr.mxu0 0.0
        %1997 = vmatpush1.msra.mxu0 0.0
        %1998 = vmatprep.subr.mxu0 0.0
        %1999 = vmatpush1.msra.mxu0 0.0
        %2000 = vmatprep.subr.mxu0 0.0
        %2001 = vmatpush1.msra.mxu0 0.0
        %2002 = vmatprep.subr.mxu0 0.0
        %2003 = vmatpush1.msra.mxu0 %v1893
        %2004 = vmatprep.subr.mxu0 0.0
        %2005 = vmatpush2.msra.mxu0 0.0
        %2006 = vmatprep.subr.mxu0 0.0
        %2007 = vmatpush2.msra.mxu0 0.0
        %2008 = vmatprep.subr.mxu0 0.0
        %2009 = vmatpush2.msra.mxu0 0.0
        %2010 = vmatprep.subr.mxu0 0.0
        %2011 = vmatpush2.msra.mxu0 0.0
        %2012 = vmatprep.subr.mxu0 0.0
        %2013 = vmatpush2.msra.mxu0 0.0
        %2014 = vmatprep.subr.mxu0 0.0
        %2015 = vmatpush2.msra.mxu0 0.0
        %2016 = vmatprep.subr.mxu0 0.0
        %2017 = vmatpush2.msra.mxu0 0.0
        %2018 = vmatprep.subr.mxu0 0.0
        %2019 = vmatpush2.msra.mxu0 0.0
        %2020 = vmatprep.subr.mxu0 0.0
        %2021 = vmatpush2.msra.mxu0 0.0
        %2022 = vmatprep.subr.mxu0 0.0
        %2023 = vmatpush2.msra.mxu0 0.0
        %2024 = vmatprep.subr.mxu0 0.0
        %2025 = vmatpush2.msra.mxu0 0.0
        %2026 = vmatprep.subr.mxu0 0.0
        %2027 = vmatpush2.msra.mxu0 0.0
        %2028 = vmatprep.subr.mxu0 0.0
        %2029 = vmatpush2.msra.mxu0 0.0
        %2030 = vmatprep.subr.mxu0 0.0
        %2031 = vmatpush2.msra.mxu0 0.0
        %2032 = vmatprep.subr.mxu0 0.0
        %2033 = vmatpush2.msra.mxu0 0.0
        %2034 = vmatprep.subr.mxu0 0.0
        %2035 = vmatpush2.msra.mxu0 0.0
        %2036 = vmatprep.mubr.f32.mxu0 0.0
        %2037 = vmatmul.mubr.f32.gmra.mxu0 %v1881
        %v2038 = vpop.f32.mrf.mxu0
        %v2039 = vadd.f32 0.0, %v2038
        %v2040 = vpop.f32.mrf.mxu0
        %2041 = vmatprep.mubr.f32.mxu0 0.0
        %2042 = vmatmul.mubr.f32.gmra.mxu0 %v1884
        %v2043 = vpop.f32.mrf.mxu0
        %v2044 = vadd.f32 0.0, %v2043
        %v2045 = vpop.f32.mrf.mxu0
        %2046 = vdwg.mxu0
        %v2047 = vadd.f32 %v1864, %v1962
        %v2048 = vadd.f32 %v1865, %v1964
        %v2049 = vadd.f32 %v1866, %v2039
        %v2050 = vadd.f32 %v1867, %v1968
        %v2051 = vadd.f32 %v1868, %v1970
        %v2052 = vadd.f32 %v1869, %v2044
        %2053 = vmatprep.subr.mxu0 0.0
        %2054 = vmatpush1.msra.mxu0 %v390
        %2055 = vmatprep.subr.mxu0 0.0
        %2056 = vmatpush1.msra.mxu0 %v389
        %2057 = vmatprep.subr.mxu0 0.0
        %2058 = vmatpush1.msra.mxu0 %v388
        %2059 = vmatprep.subr.mxu0 0.0
        %2060 = vmatpush1.msra.mxu0 %v387
        %2061 = vmatprep.subr.mxu0 0.0
        %2062 = vmatpush1.msra.mxu0 %v386
        %2063 = vmatprep.subr.mxu0 0.0
        %2064 = vmatpush1.msra.mxu0 %v385
        %2065 = vmatprep.subr.mxu0 0.0
        %2066 = vmatpush1.msra.mxu0 %v384
        %2067 = vmatprep.subr.mxu0 0.0
        %2068 = vmatpush1.msra.mxu0 %v383
        %2069 = vmatprep.subr.mxu0 0.0
        %2070 = vmatpush1.msra.mxu0 %v382
        %2071 = vmatprep.subr.mxu0 0.0
        %2072 = vmatpush1.msra.mxu0 %v381
        %2073 = vmatprep.subr.mxu0 0.0
        %2074 = vmatpush1.msra.mxu0 %v380
        %2075 = vmatprep.subr.mxu0 0.0
        %2076 = vmatpush1.msra.mxu0 %v379
        %2077 = vmatprep.subr.mxu0 0.0
        %2078 = vmatpush1.msra.mxu0 %v378
        %2079 = vmatprep.subr.mxu0 0.0
        %2080 = vmatpush1.msra.mxu0 %v377
        %2081 = vmatprep.subr.mxu0 0.0
        %2082 = vmatpush1.msra.mxu0 %v376
        %2083 = vmatprep.subr.mxu0 0.0
        %2084 = vmatpush1.msra.mxu0 %v375
        %2085 = vmatprep.subr.mxu0 0.0
        %2086 = vmatpush2.msra.mxu0 %v406
        %2087 = vmatprep.subr.mxu0 0.0
        %2088 = vmatpush2.msra.mxu0 %v405
        %2089 = vmatprep.subr.mxu0 0.0
        %2090 = vmatpush2.msra.mxu0 %v404
        %2091 = vmatprep.subr.mxu0 0.0
        %2092 = vmatpush2.msra.mxu0 %v403
        %2093 = vmatprep.subr.mxu0 0.0
        %2094 = vmatpush2.msra.mxu0 %v402
        %2095 = vmatprep.subr.mxu0 0.0
        %2096 = vmatpush2.msra.mxu0 %v401
        %2097 = vmatprep.subr.mxu0 0.0
        %2098 = vmatpush2.msra.mxu0 %v400
        %2099 = vmatprep.subr.mxu0 0.0
        %2100 = vmatpush2.msra.mxu0 %v399
        %2101 = vmatprep.subr.mxu0 0.0
        %2102 = vmatpush2.msra.mxu0 %v398
        %2103 = vmatprep.subr.mxu0 0.0
        %2104 = vmatpush2.msra.mxu0 %v397
        %2105 = vmatprep.subr.mxu0 0.0
        %2106 = vmatpush2.msra.mxu0 %v396
        %2107 = vmatprep.subr.mxu0 0.0
        %2108 = vmatpush2.msra.mxu0 %v395
        %2109 = vmatprep.subr.mxu0 0.0
        %2110 = vmatpush2.msra.mxu0 %v394
        %2111 = vmatprep.subr.mxu0 0.0
        %2112 = vmatpush2.msra.mxu0 %v393
        %2113 = vmatprep.subr.mxu0 0.0
        %2114 = vmatpush2.msra.mxu0 %v392
        %2115 = vmatprep.subr.mxu0 0.0
        %2116 = vmatpush2.msra.mxu0 %v391
        %2117 = vmatprep.mubr.f32.mxu0 %v2048
        %2118 = vmatmul.mubr.f32.gmra.mxu0 %v2047
        %v2119 = vpop.f32.mrf.mxu0
        %v2120 = vadd.f32 0.0, %v2119
        %v2121 = vpop.f32.mrf.mxu0
        %2122 = vmatprep.mubr.f32.mxu0 %v2051
        %2123 = vmatmul.mubr.f32.gmra.mxu0 %v2050
        %v2124 = vpop.f32.mrf.mxu0
        %v2125 = vadd.f32 0.0, %v2124
        %v2126 = vpop.f32.mrf.mxu0
        %2127 = vdwg.mxu0
        %2128 = vmatprep.subr.mxu0 0.0
        %2129 = vmatpush1.msra.mxu0 %v422
        %2130 = vmatprep.subr.mxu0 0.0
        %2131 = vmatpush1.msra.mxu0 %v421
        %2132 = vmatprep.subr.mxu0 0.0
        %2133 = vmatpush1.msra.mxu0 %v420
        %2134 = vmatprep.subr.mxu0 0.0
        %2135 = vmatpush1.msra.mxu0 %v419
        %2136 = vmatprep.subr.mxu0 0.0
        %2137 = vmatpush1.msra.mxu0 %v418
        %2138 = vmatprep.subr.mxu0 0.0
        %2139 = vmatpush1.msra.mxu0 %v417
        %2140 = vmatprep.subr.mxu0 0.0
        %2141 = vmatpush1.msra.mxu0 %v416
        %2142 = vmatprep.subr.mxu0 0.0
        %2143 = vmatpush1.msra.mxu0 %v415
        %2144 = vmatprep.subr.mxu0 0.0
        %2145 = vmatpush1.msra.mxu0 %v414
        %2146 = vmatprep.subr.mxu0 0.0
        %2147 = vmatpush1.msra.mxu0 %v413
        %2148 = vmatprep.subr.mxu0 0.0
        %2149 = vmatpush1.msra.mxu0 %v412
        %2150 = vmatprep.subr.mxu0 0.0
        %2151 = vmatpush1.msra.mxu0 %v411
        %2152 = vmatprep.subr.mxu0 0.0
        %2153 = vmatpush1.msra.mxu0 %v410
        %2154 = vmatprep.subr.mxu0 0.0
        %2155 = vmatpush1.msra.mxu0 %v409
        %2156 = vmatprep.subr.mxu0 0.0
        %2157 = vmatpush1.msra.mxu0 %v408
        %2158 = vmatprep.subr.mxu0 0.0
        %2159 = vmatpush1.msra.mxu0 %v407
        %2160 = vmatprep.subr.mxu0 0.0
        %2161 = vmatpush2.msra.mxu0 0.0
        %2162 = vmatprep.subr.mxu0 0.0
        %2163 = vmatpush2.msra.mxu0 0.0
        %2164 = vmatprep.subr.mxu0 0.0
        %2165 = vmatpush2.msra.mxu0 0.0
        %2166 = vmatprep.subr.mxu0 0.0
        %2167 = vmatpush2.msra.mxu0 0.0
        %2168 = vmatprep.subr.mxu0 0.0
        %2169 = vmatpush2.msra.mxu0 0.0
        %2170 = vmatprep.subr.mxu0 0.0
        %2171 = vmatpush2.msra.mxu0 0.0
        %2172 = vmatprep.subr.mxu0 0.0
        %2173 = vmatpush2.msra.mxu0 0.0
        %2174 = vmatprep.subr.mxu0 0.0
        %2175 = vmatpush2.msra.mxu0 0.0
        %2176 = vmatprep.subr.mxu0 0.0
        %2177 = vmatpush2.msra.mxu0 0.0
        %2178 = vmatprep.subr.mxu0 0.0
        %2179 = vmatpush2.msra.mxu0 0.0
        %2180 = vmatprep.subr.mxu0 0.0
        %2181 = vmatpush2.msra.mxu0 0.0
        %2182 = vmatprep.subr.mxu0 0.0
        %2183 = vmatpush2.msra.mxu0 0.0
        %2184 = vmatprep.subr.mxu0 0.0
        %2185 = vmatpush2.msra.mxu0 0.0
        %2186 = vmatprep.subr.mxu0 0.0
        %2187 = vmatpush2.msra.mxu0 0.0
        %2188 = vmatprep.subr.mxu0 0.0
        %2189 = vmatpush2.msra.mxu0 0.0
        %2190 = vmatprep.subr.mxu0 0.0
        %2191 = vmatpush2.msra.mxu0 0.0
        %2192 = vmatprep.mubr.f32.mxu0 0.0
        %2193 = vmatmul.mubr.f32.gmra.mxu0 %v2049
        %v2194 = vpop.f32.mrf.mxu0
        %v2195 = vadd.f32 %v2120, %v2194
        %v2196 = vpop.f32.mrf.mxu0
        %2197 = vmatprep.mubr.f32.mxu0 0.0
        %2198 = vmatmul.mubr.f32.gmra.mxu0 %v2052
        %v2199 = vpop.f32.mrf.mxu0
        %v2200 = vadd.f32 %v2125, %v2199
        %v2201 = vpop.f32.mrf.mxu0
        %2202 = vdwg.mxu0
        %v2203 = vmul.f32 %v2047, %v2047
        %v2204 = vmul.f32 %v2048, %v2048
        %v2205 = vmul.f32 %v2049, %v2049
        %v2206 = vmul.f32 %v2050, %v2050
        %v2207 = vmul.f32 %v2051, %v2051
        %v2208 = vmul.f32 %v2052, %v2052
        %2209 = vmatprep.subr.mxu0 0.0
        %2210 = vmatpush1.msra.mxu0 %v390
        %2211 = vmatprep.subr.mxu0 0.0
        %2212 = vmatpush1.msra.mxu0 %v389
        %2213 = vmatprep.subr.mxu0 0.0
        %2214 = vmatpush1.msra.mxu0 %v388
        %2215 = vmatprep.subr.mxu0 0.0
        %2216 = vmatpush1.msra.mxu0 %v387
        %2217 = vmatprep.subr.mxu0 0.0
        %2218 = vmatpush1.msra.mxu0 %v386
        %2219 = vmatprep.subr.mxu0 0.0
        %2220 = vmatpush1.msra.mxu0 %v385
        %2221 = vmatprep.subr.mxu0 0.0
        %2222 = vmatpush1.msra.mxu0 %v384
        %2223 = vmatprep.subr.mxu0 0.0
        %2224 = vmatpush1.msra.mxu0 %v383
        %2225 = vmatprep.subr.mxu0 0.0
        %2226 = vmatpush1.msra.mxu0 %v382
        %2227 = vmatprep.subr.mxu0 0.0
        %2228 = vmatpush1.msra.mxu0 %v381
        %2229 = vmatprep.subr.mxu0 0.0
        %2230 = vmatpush1.msra.mxu0 %v380
        %2231 = vmatprep.subr.mxu0 0.0
        %2232 = vmatpush1.msra.mxu0 %v379
        %2233 = vmatprep.subr.mxu0 0.0
        %2234 = vmatpush1.msra.mxu0 %v378
        %2235 = vmatprep.subr.mxu0 0.0
        %2236 = vmatpush1.msra.mxu0 %v377
        %2237 = vmatprep.subr.mxu0 0.0
        %2238 = vmatpush1.msra.mxu0 %v376
        %2239 = vmatprep.subr.mxu0 0.0
        %2240 = vmatpush1.msra.mxu0 %v375
        %2241 = vmatprep.subr.mxu0 0.0
        %2242 = vmatpush2.msra.mxu0 %v406
        %2243 = vmatprep.subr.mxu0 0.0
        %2244 = vmatpush2.msra.mxu0 %v405
        %2245 = vmatprep.subr.mxu0 0.0
        %2246 = vmatpush2.msra.mxu0 %v404
        %2247 = vmatprep.subr.mxu0 0.0
        %2248 = vmatpush2.msra.mxu0 %v403
        %2249 = vmatprep.subr.mxu0 0.0
        %2250 = vmatpush2.msra.mxu0 %v402
        %2251 = vmatprep.subr.mxu0 0.0
        %2252 = vmatpush2.msra.mxu0 %v401
        %2253 = vmatprep.subr.mxu0 0.0
        %2254 = vmatpush2.msra.mxu0 %v400
        %2255 = vmatprep.subr.mxu0 0.0
        %2256 = vmatpush2.msra.mxu0 %v399
        %2257 = vmatprep.subr.mxu0 0.0
        %2258 = vmatpush2.msra.mxu0 %v398
        %2259 = vmatprep.subr.mxu0 0.0
        %2260 = vmatpush2.msra.mxu0 %v397
        %2261 = vmatprep.subr.mxu0 0.0
        %2262 = vmatpush2.msra.mxu0 %v396
        %2263 = vmatprep.subr.mxu0 0.0
        %2264 = vmatpush2.msra.mxu0 %v395
        %2265 = vmatprep.subr.mxu0 0.0
        %2266 = vmatpush2.msra.mxu0 %v394
        %2267 = vmatprep.subr.mxu0 0.0
        %2268 = vmatpush2.msra.mxu0 %v393
        %2269 = vmatprep.subr.mxu0 0.0
        %2270 = vmatpush2.msra.mxu0 %v392
        %2271 = vmatprep.subr.mxu0 0.0
        %2272 = vmatpush2.msra.mxu0 %v391
        %2273 = vmatprep.mubr.f32.mxu0 %v2204
        %2274 = vmatmul.mubr.f32.gmra.mxu0 %v2203
        %v2275 = vpop.f32.mrf.mxu0
        %v2276 = vadd.f32 0.0, %v2275
        %v2277 = vpop.f32.mrf.mxu0
        %2278 = vmatprep.mubr.f32.mxu0 %v2207
        %2279 = vmatmul.mubr.f32.gmra.mxu0 %v2206
        %v2280 = vpop.f32.mrf.mxu0
        %v2281 = vadd.f32 0.0, %v2280
        %v2282 = vpop.f32.mrf.mxu0
        %2283 = vdwg.mxu0
        %2284 = vmatprep.subr.mxu0 0.0
        %2285 = vmatpush1.msra.mxu0 %v422
        %2286 = vmatprep.subr.mxu0 0.0
        %2287 = vmatpush1.msra.mxu0 %v421
        %2288 = vmatprep.subr.mxu0 0.0
        %2289 = vmatpush1.msra.mxu0 %v420
        %2290 = vmatprep.subr.mxu0 0.0
        %2291 = vmatpush1.msra.mxu0 %v419
        %2292 = vmatprep.subr.mxu0 0.0
        %2293 = vmatpush1.msra.mxu0 %v418
        %2294 = vmatprep.subr.mxu0 0.0
        %2295 = vmatpush1.msra.mxu0 %v417
        %2296 = vmatprep.subr.mxu0 0.0
        %2297 = vmatpush1.msra.mxu0 %v416
        %2298 = vmatprep.subr.mxu0 0.0
        %2299 = vmatpush1.msra.mxu0 %v415
        %2300 = vmatprep.subr.mxu0 0.0
        %2301 = vmatpush1.msra.mxu0 %v414
        %2302 = vmatprep.subr.mxu0 0.0
        %2303 = vmatpush1.msra.mxu0 %v413
        %2304 = vmatprep.subr.mxu0 0.0
        %2305 = vmatpush1.msra.mxu0 %v412
        %2306 = vmatprep.subr.mxu0 0.0
        %2307 = vmatpush1.msra.mxu0 %v411
        %2308 = vmatprep.subr.mxu0 0.0
        %2309 = vmatpush1.msra.mxu0 %v410
        %2310 = vmatprep.subr.mxu0 0.0
        %2311 = vmatpush1.msra.mxu0 %v409
        %2312 = vmatprep.subr.mxu0 0.0
        %2313 = vmatpush1.msra.mxu0 %v408
        %2314 = vmatprep.subr.mxu0 0.0
        %2315 = vmatpush1.msra.mxu0 %v407
        %2316 = vmatprep.subr.mxu0 0.0
        %2317 = vmatpush2.msra.mxu0 0.0
        %2318 = vmatprep.subr.mxu0 0.0
        %2319 = vmatpush2.msra.mxu0 0.0
        %2320 = vmatprep.subr.mxu0 0.0
        %2321 = vmatpush2.msra.mxu0 0.0
        %2322 = vmatprep.subr.mxu0 0.0
        %2323 = vmatpush2.msra.mxu0 0.0
        %2324 = vmatprep.subr.mxu0 0.0
        %2325 = vmatpush2.msra.mxu0 0.0
        %2326 = vmatprep.subr.mxu0 0.0
        %2327 = vmatpush2.msra.mxu0 0.0
        %2328 = vmatprep.subr.mxu0 0.0
        %2329 = vmatpush2.msra.mxu0 0.0
        %2330 = vmatprep.subr.mxu0 0.0
        %2331 = vmatpush2.msra.mxu0 0.0
        %2332 = vmatprep.subr.mxu0 0.0
        %2333 = vmatpush2.msra.mxu0 0.0
        %2334 = vmatprep.subr.mxu0 0.0
        %2335 = vmatpush2.msra.mxu0 0.0
        %2336 = vmatprep.subr.mxu0 0.0
        %2337 = vmatpush2.msra.mxu0 0.0
        %2338 = vmatprep.subr.mxu0 0.0
        %2339 = vmatpush2.msra.mxu0 0.0
        %2340 = vmatprep.subr.mxu0 0.0
        %2341 = vmatpush2.msra.mxu0 0.0
        %2342 = vmatprep.subr.mxu0 0.0
        %2343 = vmatpush2.msra.mxu0 0.0
        %2344 = vmatprep.subr.mxu0 0.0
        %2345 = vmatpush2.msra.mxu0 0.0
        %2346 = vmatprep.subr.mxu0 0.0
        %2347 = vmatpush2.msra.mxu0 0.0
        %2348 = vmatprep.mubr.f32.mxu0 0.0
        %2349 = vmatmul.mubr.f32.gmra.mxu0 %v2205
        %v2350 = vpop.f32.mrf.mxu0
        %v2351 = vadd.f32 %v2276, %v2350
        %v2352 = vpop.f32.mrf.mxu0
        %2353 = vmatprep.mubr.f32.mxu0 0.0
        %2354 = vmatmul.mubr.f32.gmra.mxu0 %v2208
        %v2355 = vpop.f32.mrf.mxu0
        %v2356 = vadd.f32 %v2281, %v2355
        %v2357 = vpop.f32.mrf.mxu0
        %2358 = vdwg.mxu0
        %v2359 = vmul.f32 %v2195, 0.0078125
        %v2360 = vmul.f32 %v2200, 0.0078125
        %v2361 = vmul.f32 %v2351, 0.0078125
        %v2362 = vmul.f32 %v2356, 0.0078125
        %v2363 = vmul.f32 %v2359, %v2359
        %v2364 = vmul.f32 %v2360, %v2360
        %v2365 = vsub.f32 %v2361, %v2363
        %v2366 = vsub.f32 %v2362, %v2364
        %v2367 = vadd.f32 %v2365, 1e-05
        %v2368 = vadd.f32 %v2366, 1e-05
        %v2369 = vrsqrt.pop %v2367
        %v2370 = vrsqrt.pop %v2368
        %2372 = vset.pattern.permute.xlu0 0
        %2373 = vperm.xlu0 %2372, %v2359
        %v2374 = vpop.permute.xlu0 %2373
        %2377 = vset.pattern.permute.xlu0 0
        %2378 = vperm.xlu0 %2377, %v2360
        %v2379 = vpop.permute.xlu0 %2378
        %v2381 = vsub.f32 %v2047, %v2374
        %v2382 = vsub.f32 %v2048, %v2374
        %v2383 = vsub.f32 %v2049, %v2374
        %v2384 = vsub.f32 %v2050, %v2379
        %v2385 = vsub.f32 %v2051, %v2379
        %v2386 = vsub.f32 %v2052, %v2379
        %2388 = vset.pattern.permute.xlu0 0
        %2389 = vperm.xlu0 %2388, %v2369
        %v2390 = vpop.permute.xlu0 %2389
        %2393 = vset.pattern.permute.xlu0 0
        %2394 = vperm.xlu0 %2393, %v2370
        %v2395 = vpop.permute.xlu0 %2394
        %v2397 = vmul.f32 %v2381, %v2390
        %v2398 = vmul.f32 %v2382, %v2390
        %v2399 = vmul.f32 %v2383, %v2390
        %v2400 = vmul.f32 %v2384, %v2395
        %v2401 = vmul.f32 %v2385, %v2395
        %v2402 = vmul.f32 %v2386, %v2395
        %v2403 = vmax.f32 %v2397, 0.0
        %v2404 = vmax.f32 %v2398, 0.0
        %v2405 = vmax.f32 %v2399, 0.0
        %v2406 = vmax.f32 %v2400, 0.0
        %v2407 = vmax.f32 %v2401, 0.0
        %v2408 = vmax.f32 %v2402, 0.0
        %v2410 = vlaneseq
        %v2411 = vshrl.u32 %v2410, 7
        %v2412 = vsub.s32 0, %v2411
        %v2413 = vrot.slane %v374, %v2412
        %v2414 = vlaneseq
        %v2415 = vshrl.u32 %v2414, 7
        %v2416 = vsub.s32 1, %v2415
        %v2417 = vrot.slane %v374, %v2416
        %v2418 = vlaneseq
        %v2419 = vshrl.u32 %v2418, 7
        %v2420 = vsub.s32 2, %v2419
        %v2421 = vrot.slane %v374, %v2420
        %v2425 = vmul.f32 %v2403, %v2413
        %v2426 = vmul.f32 %v2404, %v2417
        %v2427 = vmul.f32 %v2405, %v2421
        %v2428 = vmul.f32 %v2406, %v2413
        %v2429 = vmul.f32 %v2407, %v2417
        %v2430 = vmul.f32 %v2408, %v2421
        %2431 = vrot.lane.b32.xlu0 %v2425, 17
        %v2432 = vpop.permute.xlu0 %2431
        %2433 = vrot.lane.b32.xlu0 %v2428, 17
        %v2434 = vpop.permute.xlu0 %2433
        %2435 = vrot.lane.b32.xlu0 %v2426, 17
        %v2436 = vpop.permute.xlu0 %2435
        %2437 = vrot.lane.b32.xlu0 %v2429, 17
        %v2438 = vpop.permute.xlu0 %2437
        %2439 = vrot.lane.b32.xlu0 %v2427, 17
        %v2440 = vpop.permute.xlu0 %2439
        %2441 = vrot.lane.b32.xlu0 %v2430, 17
        %v2442 = vpop.permute.xlu0 %2441
        %v2443 = vsel %vm435, %v2436, %v2440
        %v2444 = vsel %vm435, %v2438, %v2442
        %v2445 = vsel %vm435, %v2432, %v2436
        %v2446 = vsel %vm435, %v2434, %v2438
        %v2447 = vsel %vm435, %v2440, %v2432
        %v2448 = vsel %vm435, %v2442, %v2434
        %2449 = vrot.lane.b32.xlu0 %v2425, 16
        %v2450 = vpop.permute.xlu0 %2449
        %2451 = vrot.lane.b32.xlu0 %v2428, 16
        %v2452 = vpop.permute.xlu0 %2451
        %2453 = vrot.lane.b32.xlu0 %v2426, 16
        %v2454 = vpop.permute.xlu0 %2453
        %2455 = vrot.lane.b32.xlu0 %v2429, 16
        %v2456 = vpop.permute.xlu0 %2455
        %2457 = vrot.lane.b32.xlu0 %v2427, 16
        %v2458 = vpop.permute.xlu0 %2457
        %2459 = vrot.lane.b32.xlu0 %v2430, 16
        %v2460 = vpop.permute.xlu0 %2459
        %v2461 = vsel %vm445, %v2454, %v2458
        %v2462 = vsel %vm445, %v2456, %v2460
        %v2463 = vsel %vm445, %v2450, %v2454
        %v2464 = vsel %vm445, %v2452, %v2456
        %v2465 = vsel %vm445, %v2458, %v2450
        %v2466 = vsel %vm445, %v2460, %v2452
        %vm2467 = vcmask 130048
        %v2469 = vsel %vm2467, %v334, 0
        %v2472 = vsel %vm2467, %v335, 0
        %v2475 = vsel %vm2467, %v336, 0
        %v2478 = vsel %vm2467, %v337, 0
        %2480 = vmatprep.subr.mxu0 0.0
        %2481 = vmatpush1.msra.mxu0 0.0
        %2482 = vmatprep.subr.mxu0 0.0
        %2483 = vmatpush1.msra.mxu0 0.0
        %2484 = vmatprep.subr.mxu0 0.0
        %2485 = vmatpush1.msra.mxu0 0.0
        %2486 = vmatprep.subr.mxu0 0.0
        %2487 = vmatpush1.msra.mxu0 0.0
        %2488 = vmatprep.subr.mxu0 0.0
        %2489 = vmatpush1.msra.mxu0 0.0
        %2490 = vmatprep.subr.mxu0 0.0
        %2491 = vmatpush1.msra.mxu0 0.0
        %2492 = vmatprep.subr.mxu0 0.0
        %2493 = vmatpush1.msra.mxu0 0.0
        %2494 = vmatprep.subr.mxu0 0.0
        %2495 = vmatpush1.msra.mxu0 0.0
        %2496 = vmatprep.subr.mxu0 0.0
        %2497 = vmatpush1.msra.mxu0 0.0
        %2498 = vmatprep.subr.mxu0 0.0
        %2499 = vmatpush1.msra.mxu0 0.0
        %2500 = vmatprep.subr.mxu0 0.0
        %2501 = vmatpush1.msra.mxu0 0.0
        %2502 = vmatprep.subr.mxu0 0.0
        %2503 = vmatpush1.msra.mxu0 0.0
        %2504 = vmatprep.subr.mxu0 0.0
        %2505 = vmatpush1.msra.mxu0 0.0
        %2506 = vmatprep.subr.mxu0 0.0
        %2507 = vmatpush1.msra.mxu0 0.0
        %2508 = vmatprep.subr.mxu0 %v2464
        %2509 = vmatpush1.msra.mxu0 %v2466
        %2510 = vmatprep.subr.mxu0 %v2463
        %2511 = vmatpush1.msra.mxu0 %v2465
        %2512 = vmatprep.subr.mxu0 0.0
        %2513 = vmatpush2.msra.mxu0 0.0
        %2514 = vmatprep.subr.mxu0 0.0
        %2515 = vmatpush2.msra.mxu0 0.0
        %2516 = vmatprep.subr.mxu0 0.0
        %2517 = vmatpush2.msra.mxu0 0.0
        %2518 = vmatprep.subr.mxu0 0.0
        %2519 = vmatpush2.msra.mxu0 0.0
        %2520 = vmatprep.subr.mxu0 0.0
        %2521 = vmatpush2.msra.mxu0 0.0
        %2522 = vmatprep.subr.mxu0 0.0
        %2523 = vmatpush2.msra.mxu0 0.0
        %2524 = vmatprep.subr.mxu0 0.0
        %2525 = vmatpush2.msra.mxu0 0.0
        %2526 = vmatprep.subr.mxu0 0.0
        %2527 = vmatpush2.msra.mxu0 0.0
        %2528 = vmatprep.subr.mxu0 0.0
        %2529 = vmatpush2.msra.mxu0 0.0
        %2530 = vmatprep.subr.mxu0 0.0
        %2531 = vmatpush2.msra.mxu0 0.0
        %2532 = vmatprep.subr.mxu0 0.0
        %2533 = vmatpush2.msra.mxu0 0.0
        %2534 = vmatprep.subr.mxu0 0.0
        %2535 = vmatpush2.msra.mxu0 0.0
        %2536 = vmatprep.subr.mxu0 0.0
        %2537 = vmatpush2.msra.mxu0 0.0
        %2538 = vmatprep.subr.mxu0 0.0
        %2539 = vmatpush2.msra.mxu0 0.0
        %2540 = vmatprep.subr.mxu0 0.0
        %2541 = vmatpush2.msra.mxu0 0.0
        %2542 = vmatprep.subr.mxu0 0.0
        %2543 = vmatpush2.msra.mxu0 0.0
        %2544 = vmatprep.mubr.f32.mxu0 0.0
        %2545 = vmatmul.mubr.f32.gmra.mxu0 %v2469
        %v2546 = vpop.f32.mrf.mxu0
        %v2547 = vadd.f32 0.0, %v2546
        %v2548 = vpop.f32.mrf.mxu0
        %v2549 = vadd.f32 0.0, %v2548
        %2550 = vmatprep.mubr.f32.mxu0 0.0
        %2551 = vmatmul.mubr.f32.gmra.mxu0 %v2472
        %v2552 = vpop.f32.mrf.mxu0
        %v2553 = vadd.f32 0.0, %v2552
        %v2554 = vpop.f32.mrf.mxu0
        %v2555 = vadd.f32 0.0, %v2554
        %2556 = vmatprep.mubr.f32.mxu0 0.0
        %2557 = vmatmul.mubr.f32.gmra.mxu0 %v2475
        %v2558 = vpop.f32.mrf.mxu0
        %v2559 = vadd.f32 0.0, %v2558
        %v2560 = vpop.f32.mrf.mxu0
        %v2561 = vadd.f32 0.0, %v2560
        %2562 = vmatprep.mubr.f32.mxu0 0.0
        %2563 = vmatmul.mubr.f32.gmra.mxu0 %v2478
        %v2564 = vpop.f32.mrf.mxu0
        %v2565 = vadd.f32 0.0, %v2564
        %v2566 = vpop.f32.mrf.mxu0
        %v2567 = vadd.f32 0.0, %v2566
        %2568 = vdwg.mxu0
        %2569 = vmatprep.subr.mxu0 0.0
        %2570 = vmatpush1.msra.mxu0 0.0
        %2571 = vmatprep.subr.mxu0 0.0
        %2572 = vmatpush1.msra.mxu0 0.0
        %2573 = vmatprep.subr.mxu0 0.0
        %2574 = vmatpush1.msra.mxu0 0.0
        %2575 = vmatprep.subr.mxu0 0.0
        %2576 = vmatpush1.msra.mxu0 0.0
        %2577 = vmatprep.subr.mxu0 0.0
        %2578 = vmatpush1.msra.mxu0 0.0
        %2579 = vmatprep.subr.mxu0 0.0
        %2580 = vmatpush1.msra.mxu0 0.0
        %2581 = vmatprep.subr.mxu0 0.0
        %2582 = vmatpush1.msra.mxu0 0.0
        %2583 = vmatprep.subr.mxu0 0.0
        %2584 = vmatpush1.msra.mxu0 0.0
        %2585 = vmatprep.subr.mxu0 0.0
        %2586 = vmatpush1.msra.mxu0 0.0
        %2587 = vmatprep.subr.mxu0 0.0
        %2588 = vmatpush1.msra.mxu0 0.0
        %2589 = vmatprep.subr.mxu0 0.0
        %2590 = vmatpush1.msra.mxu0 0.0
        %2591 = vmatprep.subr.mxu0 0.0
        %2592 = vmatpush1.msra.mxu0 0.0
        %2593 = vmatprep.subr.mxu0 0.0
        %2594 = vmatpush1.msra.mxu0 0.0
        %2595 = vmatprep.subr.mxu0 0.0
        %2596 = vmatpush1.msra.mxu0 0.0
        %2597 = vmatprep.subr.mxu0 0.0
        %2598 = vmatpush1.msra.mxu0 %v2462
        %2599 = vmatprep.subr.mxu0 0.0
        %2600 = vmatpush1.msra.mxu0 %v2461
        %2601 = vmatprep.subr.mxu0 0.0
        %2602 = vmatpush2.msra.mxu0 0.0
        %2603 = vmatprep.subr.mxu0 0.0
        %2604 = vmatpush2.msra.mxu0 0.0
        %2605 = vmatprep.subr.mxu0 0.0
        %2606 = vmatpush2.msra.mxu0 0.0
        %2607 = vmatprep.subr.mxu0 0.0
        %2608 = vmatpush2.msra.mxu0 0.0
        %2609 = vmatprep.subr.mxu0 0.0
        %2610 = vmatpush2.msra.mxu0 0.0
        %2611 = vmatprep.subr.mxu0 0.0
        %2612 = vmatpush2.msra.mxu0 0.0
        %2613 = vmatprep.subr.mxu0 0.0
        %2614 = vmatpush2.msra.mxu0 0.0
        %2615 = vmatprep.subr.mxu0 0.0
        %2616 = vmatpush2.msra.mxu0 0.0
        %2617 = vmatprep.subr.mxu0 0.0
        %2618 = vmatpush2.msra.mxu0 0.0
        %2619 = vmatprep.subr.mxu0 0.0
        %2620 = vmatpush2.msra.mxu0 0.0
        %2621 = vmatprep.subr.mxu0 0.0
        %2622 = vmatpush2.msra.mxu0 0.0
        %2623 = vmatprep.subr.mxu0 0.0
        %2624 = vmatpush2.msra.mxu0 0.0
        %2625 = vmatprep.subr.mxu0 0.0
        %2626 = vmatpush2.msra.mxu0 0.0
        %2627 = vmatprep.subr.mxu0 0.0
        %2628 = vmatpush2.msra.mxu0 0.0
        %2629 = vmatprep.subr.mxu0 0.0
        %2630 = vmatpush2.msra.mxu0 0.0
        %2631 = vmatprep.subr.mxu0 0.0
        %2632 = vmatpush2.msra.mxu0 0.0
        %2633 = vmatprep.mubr.f32.mxu0 0.0
        %2634 = vmatmul.mubr.f32.gmra.mxu0 %v2469
        %v2635 = vpop.f32.mrf.mxu0
        %v2636 = vadd.f32 0.0, %v2635
        %v2637 = vpop.f32.mrf.mxu0
        %2638 = vmatprep.mubr.f32.mxu0 0.0
        %2639 = vmatmul.mubr.f32.gmra.mxu0 %v2472
        %v2640 = vpop.f32.mrf.mxu0
        %v2641 = vadd.f32 0.0, %v2640
        %v2642 = vpop.f32.mrf.mxu0
        %2643 = vmatprep.mubr.f32.mxu0 0.0
        %2644 = vmatmul.mubr.f32.gmra.mxu0 %v2475
        %v2645 = vpop.f32.mrf.mxu0
        %v2646 = vadd.f32 0.0, %v2645
        %v2647 = vpop.f32.mrf.mxu0
        %2648 = vmatprep.mubr.f32.mxu0 0.0
        %2649 = vmatmul.mubr.f32.gmra.mxu0 %v2478
        %v2650 = vpop.f32.mrf.mxu0
        %v2651 = vadd.f32 0.0, %v2650
        %v2652 = vpop.f32.mrf.mxu0
        %2653 = vdwg.mxu0
        %v2655 = vsel %vm2467, %v330, 0
        %v2658 = vsel %vm2467, %v331, 0
        %v2661 = vsel %vm2467, %v332, 0
        %v2664 = vsel %vm2467, %v333, 0
        %2666 = vmatprep.subr.mxu0 0.0
        %2667 = vmatpush1.msra.mxu0 0.0
        %2668 = vmatprep.subr.mxu0 0.0
        %2669 = vmatpush1.msra.mxu0 0.0
        %2670 = vmatprep.subr.mxu0 0.0
        %2671 = vmatpush1.msra.mxu0 0.0
        %2672 = vmatprep.subr.mxu0 0.0
        %2673 = vmatpush1.msra.mxu0 0.0
        %2674 = vmatprep.subr.mxu0 0.0
        %2675 = vmatpush1.msra.mxu0 0.0
        %2676 = vmatprep.subr.mxu0 0.0
        %2677 = vmatpush1.msra.mxu0 0.0
        %2678 = vmatprep.subr.mxu0 0.0
        %2679 = vmatpush1.msra.mxu0 0.0
        %2680 = vmatprep.subr.mxu0 0.0
        %2681 = vmatpush1.msra.mxu0 0.0
        %2682 = vmatprep.subr.mxu0 0.0
        %2683 = vmatpush1.msra.mxu0 0.0
        %2684 = vmatprep.subr.mxu0 0.0
        %2685 = vmatpush1.msra.mxu0 0.0
        %2686 = vmatprep.subr.mxu0 0.0
        %2687 = vmatpush1.msra.mxu0 0.0
        %2688 = vmatprep.subr.mxu0 0.0
        %2689 = vmatpush1.msra.mxu0 0.0
        %2690 = vmatprep.subr.mxu0 0.0
        %2691 = vmatpush1.msra.mxu0 0.0
        %2692 = vmatprep.subr.mxu0 0.0
        %2693 = vmatpush1.msra.mxu0 0.0
        %2694 = vmatprep.subr.mxu0 %v2446
        %2695 = vmatpush1.msra.mxu0 %v2448
        %2696 = vmatprep.subr.mxu0 %v2445
        %2697 = vmatpush1.msra.mxu0 %v2447
        %2698 = vmatprep.subr.mxu0 0.0
        %2699 = vmatpush2.msra.mxu0 0.0
        %2700 = vmatprep.subr.mxu0 0.0
        %2701 = vmatpush2.msra.mxu0 0.0
        %2702 = vmatprep.subr.mxu0 0.0
        %2703 = vmatpush2.msra.mxu0 0.0
        %2704 = vmatprep.subr.mxu0 0.0
        %2705 = vmatpush2.msra.mxu0 0.0
        %2706 = vmatprep.subr.mxu0 0.0
        %2707 = vmatpush2.msra.mxu0 0.0
        %2708 = vmatprep.subr.mxu0 0.0
        %2709 = vmatpush2.msra.mxu0 0.0
        %2710 = vmatprep.subr.mxu0 0.0
        %2711 = vmatpush2.msra.mxu0 0.0
        %2712 = vmatprep.subr.mxu0 0.0
        %2713 = vmatpush2.msra.mxu0 0.0
        %2714 = vmatprep.subr.mxu0 0.0
        %2715 = vmatpush2.msra.mxu0 0.0
        %2716 = vmatprep.subr.mxu0 0.0
        %2717 = vmatpush2.msra.mxu0 0.0
        %2718 = vmatprep.subr.mxu0 0.0
        %2719 = vmatpush2.msra.mxu0 0.0
        %2720 = vmatprep.subr.mxu0 0.0
        %2721 = vmatpush2.msra.mxu0 0.0
        %2722 = vmatprep.subr.mxu0 0.0
        %2723 = vmatpush2.msra.mxu0 0.0
        %2724 = vmatprep.subr.mxu0 0.0
        %2725 = vmatpush2.msra.mxu0 0.0
        %2726 = vmatprep.subr.mxu0 0.0
        %2727 = vmatpush2.msra.mxu0 0.0
        %2728 = vmatprep.subr.mxu0 0.0
        %2729 = vmatpush2.msra.mxu0 0.0
        %2730 = vmatprep.mubr.f32.mxu0 0.0
        %2731 = vmatmul.mubr.f32.gmra.mxu0 %v2655
        %v2732 = vpop.f32.mrf.mxu0
        %v2733 = vadd.f32 %v2547, %v2732
        %v2734 = vpop.f32.mrf.mxu0
        %v2735 = vadd.f32 %v2549, %v2734
        %2736 = vmatprep.mubr.f32.mxu0 0.0
        %2737 = vmatmul.mubr.f32.gmra.mxu0 %v2658
        %v2738 = vpop.f32.mrf.mxu0
        %v2739 = vadd.f32 %v2553, %v2738
        %v2740 = vpop.f32.mrf.mxu0
        %v2741 = vadd.f32 %v2555, %v2740
        %2742 = vmatprep.mubr.f32.mxu0 0.0
        %2743 = vmatmul.mubr.f32.gmra.mxu0 %v2661
        %v2744 = vpop.f32.mrf.mxu0
        %v2745 = vadd.f32 %v2559, %v2744
        %v2746 = vpop.f32.mrf.mxu0
        %v2747 = vadd.f32 %v2561, %v2746
        %2748 = vmatprep.mubr.f32.mxu0 0.0
        %2749 = vmatmul.mubr.f32.gmra.mxu0 %v2664
        %v2750 = vpop.f32.mrf.mxu0
        %v2751 = vadd.f32 %v2565, %v2750
        %v2752 = vpop.f32.mrf.mxu0
        %v2753 = vadd.f32 %v2567, %v2752
        %2754 = vdwg.mxu0
        %2755 = vmatprep.subr.mxu0 0.0
        %2756 = vmatpush1.msra.mxu0 0.0
        %2757 = vmatprep.subr.mxu0 0.0
        %2758 = vmatpush1.msra.mxu0 0.0
        %2759 = vmatprep.subr.mxu0 0.0
        %2760 = vmatpush1.msra.mxu0 0.0
        %2761 = vmatprep.subr.mxu0 0.0
        %2762 = vmatpush1.msra.mxu0 0.0
        %2763 = vmatprep.subr.mxu0 0.0
        %2764 = vmatpush1.msra.mxu0 0.0
        %2765 = vmatprep.subr.mxu0 0.0
        %2766 = vmatpush1.msra.mxu0 0.0
        %2767 = vmatprep.subr.mxu0 0.0
        %2768 = vmatpush1.msra.mxu0 0.0
        %2769 = vmatprep.subr.mxu0 0.0
        %2770 = vmatpush1.msra.mxu0 0.0
        %2771 = vmatprep.subr.mxu0 0.0
        %2772 = vmatpush1.msra.mxu0 0.0
        %2773 = vmatprep.subr.mxu0 0.0
        %2774 = vmatpush1.msra.mxu0 0.0
        %2775 = vmatprep.subr.mxu0 0.0
        %2776 = vmatpush1.msra.mxu0 0.0
        %2777 = vmatprep.subr.mxu0 0.0
        %2778 = vmatpush1.msra.mxu0 0.0
        %2779 = vmatprep.subr.mxu0 0.0
        %2780 = vmatpush1.msra.mxu0 0.0
        %2781 = vmatprep.subr.mxu0 0.0
        %2782 = vmatpush1.msra.mxu0 0.0
        %2783 = vmatprep.subr.mxu0 0.0
        %2784 = vmatpush1.msra.mxu0 %v2444
        %2785 = vmatprep.subr.mxu0 0.0
        %2786 = vmatpush1.msra.mxu0 %v2443
        %2787 = vmatprep.subr.mxu0 0.0
        %2788 = vmatpush2.msra.mxu0 0.0
        %2789 = vmatprep.subr.mxu0 0.0
        %2790 = vmatpush2.msra.mxu0 0.0
        %2791 = vmatprep.subr.mxu0 0.0
        %2792 = vmatpush2.msra.mxu0 0.0
        %2793 = vmatprep.subr.mxu0 0.0
        %2794 = vmatpush2.msra.mxu0 0.0
        %2795 = vmatprep.subr.mxu0 0.0
        %2796 = vmatpush2.msra.mxu0 0.0
        %2797 = vmatprep.subr.mxu0 0.0
        %2798 = vmatpush2.msra.mxu0 0.0
        %2799 = vmatprep.subr.mxu0 0.0
        %2800 = vmatpush2.msra.mxu0 0.0
        %2801 = vmatprep.subr.mxu0 0.0
        %2802 = vmatpush2.msra.mxu0 0.0
        %2803 = vmatprep.subr.mxu0 0.0
        %2804 = vmatpush2.msra.mxu0 0.0
        %2805 = vmatprep.subr.mxu0 0.0
        %2806 = vmatpush2.msra.mxu0 0.0
        %2807 = vmatprep.subr.mxu0 0.0
        %2808 = vmatpush2.msra.mxu0 0.0
        %2809 = vmatprep.subr.mxu0 0.0
        %2810 = vmatpush2.msra.mxu0 0.0
        %2811 = vmatprep.subr.mxu0 0.0
        %2812 = vmatpush2.msra.mxu0 0.0
        %2813 = vmatprep.subr.mxu0 0.0
        %2814 = vmatpush2.msra.mxu0 0.0
        %2815 = vmatprep.subr.mxu0 0.0
        %2816 = vmatpush2.msra.mxu0 0.0
        %2817 = vmatprep.subr.mxu0 0.0
        %2818 = vmatpush2.msra.mxu0 0.0
        %2819 = vmatprep.mubr.f32.mxu0 0.0
        %2820 = vmatmul.mubr.f32.gmra.mxu0 %v2655
        %v2821 = vpop.f32.mrf.mxu0
        %v2822 = vadd.f32 %v2636, %v2821
        %v2823 = vpop.f32.mrf.mxu0
        %2824 = vmatprep.mubr.f32.mxu0 0.0
        %2825 = vmatmul.mubr.f32.gmra.mxu0 %v2658
        %v2826 = vpop.f32.mrf.mxu0
        %v2827 = vadd.f32 %v2641, %v2826
        %v2828 = vpop.f32.mrf.mxu0
        %2829 = vmatprep.mubr.f32.mxu0 0.0
        %2830 = vmatmul.mubr.f32.gmra.mxu0 %v2661
        %v2831 = vpop.f32.mrf.mxu0
        %v2832 = vadd.f32 %v2646, %v2831
        %v2833 = vpop.f32.mrf.mxu0
        %2834 = vmatprep.mubr.f32.mxu0 0.0
        %2835 = vmatmul.mubr.f32.gmra.mxu0 %v2664
        %v2836 = vpop.f32.mrf.mxu0
        %v2837 = vadd.f32 %v2651, %v2836
        %v2838 = vpop.f32.mrf.mxu0
        %2839 = vdwg.mxu0
        %2840 = vrot.lane.b32.xlu0 %v2425, 15
        %v2841 = vpop.permute.xlu0 %2840
        %2842 = vrot.lane.b32.xlu0 %v2428, 15
        %v2843 = vpop.permute.xlu0 %2842
        %2844 = vrot.lane.b32.xlu0 %v2426, 15
        %v2845 = vpop.permute.xlu0 %2844
        %2846 = vrot.lane.b32.xlu0 %v2429, 15
        %v2847 = vpop.permute.xlu0 %2846
        %2848 = vrot.lane.b32.xlu0 %v2427, 15
        %v2849 = vpop.permute.xlu0 %2848
        %2850 = vrot.lane.b32.xlu0 %v2430, 15
        %v2851 = vpop.permute.xlu0 %2850
        %v2852 = vsel %vm791, %v2845, %v2849
        %v2853 = vsel %vm791, %v2847, %v2851
        %v2854 = vsel %vm791, %v2841, %v2845
        %v2855 = vsel %vm791, %v2843, %v2847
        %v2856 = vsel %vm791, %v2849, %v2841
        %v2857 = vsel %vm791, %v2851, %v2843
        %v2859 = vsel %vm2467, %v338, 0
        %v2862 = vsel %vm2467, %v339, 0
        %v2865 = vsel %vm2467, %v340, 0
        %v2868 = vsel %vm2467, %v341, 0
        %2870 = vmatprep.subr.mxu0 0.0
        %2871 = vmatpush1.msra.mxu0 0.0
        %2872 = vmatprep.subr.mxu0 0.0
        %2873 = vmatpush1.msra.mxu0 0.0
        %2874 = vmatprep.subr.mxu0 0.0
        %2875 = vmatpush1.msra.mxu0 0.0
        %2876 = vmatprep.subr.mxu0 0.0
        %2877 = vmatpush1.msra.mxu0 0.0
        %2878 = vmatprep.subr.mxu0 0.0
        %2879 = vmatpush1.msra.mxu0 0.0
        %2880 = vmatprep.subr.mxu0 0.0
        %2881 = vmatpush1.msra.mxu0 0.0
        %2882 = vmatprep.subr.mxu0 0.0
        %2883 = vmatpush1.msra.mxu0 0.0
        %2884 = vmatprep.subr.mxu0 0.0
        %2885 = vmatpush1.msra.mxu0 0.0
        %2886 = vmatprep.subr.mxu0 0.0
        %2887 = vmatpush1.msra.mxu0 0.0
        %2888 = vmatprep.subr.mxu0 0.0
        %2889 = vmatpush1.msra.mxu0 0.0
        %2890 = vmatprep.subr.mxu0 0.0
        %2891 = vmatpush1.msra.mxu0 0.0
        %2892 = vmatprep.subr.mxu0 0.0
        %2893 = vmatpush1.msra.mxu0 0.0
        %2894 = vmatprep.subr.mxu0 0.0
        %2895 = vmatpush1.msra.mxu0 0.0
        %2896 = vmatprep.subr.mxu0 0.0
        %2897 = vmatpush1.msra.mxu0 0.0
        %2898 = vmatprep.subr.mxu0 %v2855
        %2899 = vmatpush1.msra.mxu0 %v2857
        %2900 = vmatprep.subr.mxu0 %v2854
        %2901 = vmatpush1.msra.mxu0 %v2856
        %2902 = vmatprep.subr.mxu0 0.0
        %2903 = vmatpush2.msra.mxu0 0.0
        %2904 = vmatprep.subr.mxu0 0.0
        %2905 = vmatpush2.msra.mxu0 0.0
        %2906 = vmatprep.subr.mxu0 0.0
        %2907 = vmatpush2.msra.mxu0 0.0
        %2908 = vmatprep.subr.mxu0 0.0
        %2909 = vmatpush2.msra.mxu0 0.0
        %2910 = vmatprep.subr.mxu0 0.0
        %2911 = vmatpush2.msra.mxu0 0.0
        %2912 = vmatprep.subr.mxu0 0.0
        %2913 = vmatpush2.msra.mxu0 0.0
        %2914 = vmatprep.subr.mxu0 0.0
        %2915 = vmatpush2.msra.mxu0 0.0
        %2916 = vmatprep.subr.mxu0 0.0
        %2917 = vmatpush2.msra.mxu0 0.0
        %2918 = vmatprep.subr.mxu0 0.0
        %2919 = vmatpush2.msra.mxu0 0.0
        %2920 = vmatprep.subr.mxu0 0.0
        %2921 = vmatpush2.msra.mxu0 0.0
        %2922 = vmatprep.subr.mxu0 0.0
        %2923 = vmatpush2.msra.mxu0 0.0
        %2924 = vmatprep.subr.mxu0 0.0
        %2925 = vmatpush2.msra.mxu0 0.0
        %2926 = vmatprep.subr.mxu0 0.0
        %2927 = vmatpush2.msra.mxu0 0.0
        %2928 = vmatprep.subr.mxu0 0.0
        %2929 = vmatpush2.msra.mxu0 0.0
        %2930 = vmatprep.subr.mxu0 0.0
        %2931 = vmatpush2.msra.mxu0 0.0
        %2932 = vmatprep.subr.mxu0 0.0
        %2933 = vmatpush2.msra.mxu0 0.0
        %2934 = vmatprep.mubr.f32.mxu0 0.0
        %2935 = vmatmul.mubr.f32.gmra.mxu0 %v2859
        %v2936 = vpop.f32.mrf.mxu0
        %v2937 = vadd.f32 0.0, %v2936
        %v2938 = vpop.f32.mrf.mxu0
        %v2939 = vadd.f32 0.0, %v2938
        %2940 = vmatprep.mubr.f32.mxu0 0.0
        %2941 = vmatmul.mubr.f32.gmra.mxu0 %v2862
        %v2942 = vpop.f32.mrf.mxu0
        %v2943 = vadd.f32 0.0, %v2942
        %v2944 = vpop.f32.mrf.mxu0
        %v2945 = vadd.f32 0.0, %v2944
        %2946 = vmatprep.mubr.f32.mxu0 0.0
        %2947 = vmatmul.mubr.f32.gmra.mxu0 %v2865
        %v2948 = vpop.f32.mrf.mxu0
        %v2949 = vadd.f32 0.0, %v2948
        %v2950 = vpop.f32.mrf.mxu0
        %v2951 = vadd.f32 0.0, %v2950
        %2952 = vmatprep.mubr.f32.mxu0 0.0
        %2953 = vmatmul.mubr.f32.gmra.mxu0 %v2868
        %v2954 = vpop.f32.mrf.mxu0
        %v2955 = vadd.f32 0.0, %v2954
        %v2956 = vpop.f32.mrf.mxu0
        %v2957 = vadd.f32 0.0, %v2956
        %2958 = vdwg.mxu0
        %2959 = vmatprep.subr.mxu0 0.0
        %2960 = vmatpush1.msra.mxu0 0.0
        %2961 = vmatprep.subr.mxu0 0.0
        %2962 = vmatpush1.msra.mxu0 0.0
        %2963 = vmatprep.subr.mxu0 0.0
        %2964 = vmatpush1.msra.mxu0 0.0
        %2965 = vmatprep.subr.mxu0 0.0
        %2966 = vmatpush1.msra.mxu0 0.0
        %2967 = vmatprep.subr.mxu0 0.0
        %2968 = vmatpush1.msra.mxu0 0.0
        %2969 = vmatprep.subr.mxu0 0.0
        %2970 = vmatpush1.msra.mxu0 0.0
        %2971 = vmatprep.subr.mxu0 0.0
        %2972 = vmatpush1.msra.mxu0 0.0
        %2973 = vmatprep.subr.mxu0 0.0
        %2974 = vmatpush1.msra.mxu0 0.0
        %2975 = vmatprep.subr.mxu0 0.0
        %2976 = vmatpush1.msra.mxu0 0.0
        %2977 = vmatprep.subr.mxu0 0.0
        %2978 = vmatpush1.msra.mxu0 0.0
        %2979 = vmatprep.subr.mxu0 0.0
        %2980 = vmatpush1.msra.mxu0 0.0
        %2981 = vmatprep.subr.mxu0 0.0
        %2982 = vmatpush1.msra.mxu0 0.0
        %2983 = vmatprep.subr.mxu0 0.0
        %2984 = vmatpush1.msra.mxu0 0.0
        %2985 = vmatprep.subr.mxu0 0.0
        %2986 = vmatpush1.msra.mxu0 0.0
        %2987 = vmatprep.subr.mxu0 0.0
        %2988 = vmatpush1.msra.mxu0 %v2853
        %2989 = vmatprep.subr.mxu0 0.0
        %2990 = vmatpush1.msra.mxu0 %v2852
        %2991 = vmatprep.subr.mxu0 0.0
        %2992 = vmatpush2.msra.mxu0 0.0
        %2993 = vmatprep.subr.mxu0 0.0
        %2994 = vmatpush2.msra.mxu0 0.0
        %2995 = vmatprep.subr.mxu0 0.0
        %2996 = vmatpush2.msra.mxu0 0.0
        %2997 = vmatprep.subr.mxu0 0.0
        %2998 = vmatpush2.msra.mxu0 0.0
        %2999 = vmatprep.subr.mxu0 0.0
        %3000 = vmatpush2.msra.mxu0 0.0
        %3001 = vmatprep.subr.mxu0 0.0
        %3002 = vmatpush2.msra.mxu0 0.0
        %3003 = vmatprep.subr.mxu0 0.0
        %3004 = vmatpush2.msra.mxu0 0.0
        %3005 = vmatprep.subr.mxu0 0.0
        %3006 = vmatpush2.msra.mxu0 0.0
        %3007 = vmatprep.subr.mxu0 0.0
        %3008 = vmatpush2.msra.mxu0 0.0
        %3009 = vmatprep.subr.mxu0 0.0
        %3010 = vmatpush2.msra.mxu0 0.0
        %3011 = vmatprep.subr.mxu0 0.0
        %3012 = vmatpush2.msra.mxu0 0.0
        %3013 = vmatprep.subr.mxu0 0.0
        %3014 = vmatpush2.msra.mxu0 0.0
        %3015 = vmatprep.subr.mxu0 0.0
        %3016 = vmatpush2.msra.mxu0 0.0
        %3017 = vmatprep.subr.mxu0 0.0
        %3018 = vmatpush2.msra.mxu0 0.0
        %3019 = vmatprep.subr.mxu0 0.0
        %3020 = vmatpush2.msra.mxu0 0.0
        %3021 = vmatprep.subr.mxu0 0.0
        %3022 = vmatpush2.msra.mxu0 0.0
        %3023 = vmatprep.mubr.f32.mxu0 0.0
        %3024 = vmatmul.mubr.f32.gmra.mxu0 %v2859
        %v3025 = vpop.f32.mrf.mxu0
        %v3026 = vadd.f32 0.0, %v3025
        %v3027 = vpop.f32.mrf.mxu0
        %3028 = vmatprep.mubr.f32.mxu0 0.0
        %3029 = vmatmul.mubr.f32.gmra.mxu0 %v2862
        %v3030 = vpop.f32.mrf.mxu0
        %v3031 = vadd.f32 0.0, %v3030
        %v3032 = vpop.f32.mrf.mxu0
        %3033 = vmatprep.mubr.f32.mxu0 0.0
        %3034 = vmatmul.mubr.f32.gmra.mxu0 %v2865
        %v3035 = vpop.f32.mrf.mxu0
        %v3036 = vadd.f32 0.0, %v3035
        %v3037 = vpop.f32.mrf.mxu0
        %3038 = vmatprep.mubr.f32.mxu0 0.0
        %3039 = vmatmul.mubr.f32.gmra.mxu0 %v2868
        %v3040 = vpop.f32.mrf.mxu0
        %v3041 = vadd.f32 0.0, %v3040
        %v3042 = vpop.f32.mrf.mxu0
        %3043 = vdwg.mxu0
        %v3044 = vadd.f32 %v2733, %v2937
        %v3045 = vadd.f32 %v2735, %v2939
        %v3046 = vadd.f32 %v2822, %v3026
        %v3047 = vadd.f32 %v2739, %v2943
        %v3048 = vadd.f32 %v2741, %v2945
        %v3049 = vadd.f32 %v2827, %v3031
        %v3050 = vadd.f32 %v2745, %v2949
        %v3051 = vadd.f32 %v2747, %v2951
        %v3052 = vadd.f32 %v2832, %v3036
        %v3053 = vadd.f32 %v2751, %v2955
        %v3054 = vadd.f32 %v2753, %v2957
        %v3055 = vadd.f32 %v2837, %v3041
        %3056 = vrot.lane.b32.xlu0 %v2425, 1
        %v3057 = vpop.permute.xlu0 %3056
        %3058 = vrot.lane.b32.xlu0 %v2428, 1
        %v3059 = vpop.permute.xlu0 %3058
        %3060 = vrot.lane.b32.xlu0 %v2426, 1
        %v3061 = vpop.permute.xlu0 %3060
        %3062 = vrot.lane.b32.xlu0 %v2429, 1
        %v3063 = vpop.permute.xlu0 %3062
        %3064 = vrot.lane.b32.xlu0 %v2427, 1
        %v3065 = vpop.permute.xlu0 %3064
        %3066 = vrot.lane.b32.xlu0 %v2430, 1
        %v3067 = vpop.permute.xlu0 %3066
        %v3068 = vsel %vm974, %v3061, %v3065
        %v3069 = vsel %vm974, %v3063, %v3067
        %v3070 = vsel %vm974, %v3057, %v3061
        %v3071 = vsel %vm974, %v3059, %v3063
        %v3072 = vsel %vm974, %v3065, %v3057
        %v3073 = vsel %vm974, %v3067, %v3059
        %v3075 = vsel %vm2467, %v342, 0
        %v3078 = vsel %vm2467, %v343, 0
        %v3081 = vsel %vm2467, %v344, 0
        %v3084 = vsel %vm2467, %v345, 0
        %3086 = vmatprep.subr.mxu0 0.0
        %3087 = vmatpush1.msra.mxu0 0.0
        %3088 = vmatprep.subr.mxu0 0.0
        %3089 = vmatpush1.msra.mxu0 0.0
        %3090 = vmatprep.subr.mxu0 0.0
        %3091 = vmatpush1.msra.mxu0 0.0
        %3092 = vmatprep.subr.mxu0 0.0
        %3093 = vmatpush1.msra.mxu0 0.0
        %3094 = vmatprep.subr.mxu0 0.0
        %3095 = vmatpush1.msra.mxu0 0.0
        %3096 = vmatprep.subr.mxu0 0.0
        %3097 = vmatpush1.msra.mxu0 0.0
        %3098 = vmatprep.subr.mxu0 0.0
        %3099 = vmatpush1.msra.mxu0 0.0
        %3100 = vmatprep.subr.mxu0 0.0
        %3101 = vmatpush1.msra.mxu0 0.0
        %3102 = vmatprep.subr.mxu0 0.0
        %3103 = vmatpush1.msra.mxu0 0.0
        %3104 = vmatprep.subr.mxu0 0.0
        %3105 = vmatpush1.msra.mxu0 0.0
        %3106 = vmatprep.subr.mxu0 0.0
        %3107 = vmatpush1.msra.mxu0 0.0
        %3108 = vmatprep.subr.mxu0 0.0
        %3109 = vmatpush1.msra.mxu0 0.0
        %3110 = vmatprep.subr.mxu0 0.0
        %3111 = vmatpush1.msra.mxu0 0.0
        %3112 = vmatprep.subr.mxu0 0.0
        %3113 = vmatpush1.msra.mxu0 0.0
        %3114 = vmatprep.subr.mxu0 %v3071
        %3115 = vmatpush1.msra.mxu0 %v3073
        %3116 = vmatprep.subr.mxu0 %v3070
        %3117 = vmatpush1.msra.mxu0 %v3072
        %3118 = vmatprep.subr.mxu0 0.0
        %3119 = vmatpush2.msra.mxu0 0.0
        %3120 = vmatprep.subr.mxu0 0.0
        %3121 = vmatpush2.msra.mxu0 0.0
        %3122 = vmatprep.subr.mxu0 0.0
        %3123 = vmatpush2.msra.mxu0 0.0
        %3124 = vmatprep.subr.mxu0 0.0
        %3125 = vmatpush2.msra.mxu0 0.0
        %3126 = vmatprep.subr.mxu0 0.0
        %3127 = vmatpush2.msra.mxu0 0.0
        %3128 = vmatprep.subr.mxu0 0.0
        %3129 = vmatpush2.msra.mxu0 0.0
        %3130 = vmatprep.subr.mxu0 0.0
        %3131 = vmatpush2.msra.mxu0 0.0
        %3132 = vmatprep.subr.mxu0 0.0
        %3133 = vmatpush2.msra.mxu0 0.0
        %3134 = vmatprep.subr.mxu0 0.0
        %3135 = vmatpush2.msra.mxu0 0.0
        %3136 = vmatprep.subr.mxu0 0.0
        %3137 = vmatpush2.msra.mxu0 0.0
        %3138 = vmatprep.subr.mxu0 0.0
        %3139 = vmatpush2.msra.mxu0 0.0
        %3140 = vmatprep.subr.mxu0 0.0
        %3141 = vmatpush2.msra.mxu0 0.0
        %3142 = vmatprep.subr.mxu0 0.0
        %3143 = vmatpush2.msra.mxu0 0.0
        %3144 = vmatprep.subr.mxu0 0.0
        %3145 = vmatpush2.msra.mxu0 0.0
        %3146 = vmatprep.subr.mxu0 0.0
        %3147 = vmatpush2.msra.mxu0 0.0
        %3148 = vmatprep.subr.mxu0 0.0
        %3149 = vmatpush2.msra.mxu0 0.0
        %3150 = vmatprep.mubr.f32.mxu0 0.0
        %3151 = vmatmul.mubr.f32.gmra.mxu0 %v3075
        %v3152 = vpop.f32.mrf.mxu0
        %v3153 = vadd.f32 0.0, %v3152
        %v3154 = vpop.f32.mrf.mxu0
        %v3155 = vadd.f32 0.0, %v3154
        %3156 = vmatprep.mubr.f32.mxu0 0.0
        %3157 = vmatmul.mubr.f32.gmra.mxu0 %v3078
        %v3158 = vpop.f32.mrf.mxu0
        %v3159 = vadd.f32 0.0, %v3158
        %v3160 = vpop.f32.mrf.mxu0
        %v3161 = vadd.f32 0.0, %v3160
        %3162 = vmatprep.mubr.f32.mxu0 0.0
        %3163 = vmatmul.mubr.f32.gmra.mxu0 %v3081
        %v3164 = vpop.f32.mrf.mxu0
        %v3165 = vadd.f32 0.0, %v3164
        %v3166 = vpop.f32.mrf.mxu0
        %v3167 = vadd.f32 0.0, %v3166
        %3168 = vmatprep.mubr.f32.mxu0 0.0
        %3169 = vmatmul.mubr.f32.gmra.mxu0 %v3084
        %v3170 = vpop.f32.mrf.mxu0
        %v3171 = vadd.f32 0.0, %v3170
        %v3172 = vpop.f32.mrf.mxu0
        %v3173 = vadd.f32 0.0, %v3172
        %3174 = vdwg.mxu0
        %3175 = vmatprep.subr.mxu0 0.0
        %3176 = vmatpush1.msra.mxu0 0.0
        %3177 = vmatprep.subr.mxu0 0.0
        %3178 = vmatpush1.msra.mxu0 0.0
        %3179 = vmatprep.subr.mxu0 0.0
        %3180 = vmatpush1.msra.mxu0 0.0
        %3181 = vmatprep.subr.mxu0 0.0
        %3182 = vmatpush1.msra.mxu0 0.0
        %3183 = vmatprep.subr.mxu0 0.0
        %3184 = vmatpush1.msra.mxu0 0.0
        %3185 = vmatprep.subr.mxu0 0.0
        %3186 = vmatpush1.msra.mxu0 0.0
        %3187 = vmatprep.subr.mxu0 0.0
        %3188 = vmatpush1.msra.mxu0 0.0
        %3189 = vmatprep.subr.mxu0 0.0
        %3190 = vmatpush1.msra.mxu0 0.0
        %3191 = vmatprep.subr.mxu0 0.0
        %3192 = vmatpush1.msra.mxu0 0.0
        %3193 = vmatprep.subr.mxu0 0.0
        %3194 = vmatpush1.msra.mxu0 0.0
        %3195 = vmatprep.subr.mxu0 0.0
        %3196 = vmatpush1.msra.mxu0 0.0
        %3197 = vmatprep.subr.mxu0 0.0
        %3198 = vmatpush1.msra.mxu0 0.0
        %3199 = vmatprep.subr.mxu0 0.0
        %3200 = vmatpush1.msra.mxu0 0.0
        %3201 = vmatprep.subr.mxu0 0.0
        %3202 = vmatpush1.msra.mxu0 0.0
        %3203 = vmatprep.subr.mxu0 0.0
        %3204 = vmatpush1.msra.mxu0 %v3069
        %3205 = vmatprep.subr.mxu0 0.0
        %3206 = vmatpush1.msra.mxu0 %v3068
        %3207 = vmatprep.subr.mxu0 0.0
        %3208 = vmatpush2.msra.mxu0 0.0
        %3209 = vmatprep.subr.mxu0 0.0
        %3210 = vmatpush2.msra.mxu0 0.0
        %3211 = vmatprep.subr.mxu0 0.0
        %3212 = vmatpush2.msra.mxu0 0.0
        %3213 = vmatprep.subr.mxu0 0.0
        %3214 = vmatpush2.msra.mxu0 0.0
        %3215 = vmatprep.subr.mxu0 0.0
        %3216 = vmatpush2.msra.mxu0 0.0
        %3217 = vmatprep.subr.mxu0 0.0
        %3218 = vmatpush2.msra.mxu0 0.0
        %3219 = vmatprep.subr.mxu0 0.0
        %3220 = vmatpush2.msra.mxu0 0.0
        %3221 = vmatprep.subr.mxu0 0.0
        %3222 = vmatpush2.msra.mxu0 0.0
        %3223 = vmatprep.subr.mxu0 0.0
        %3224 = vmatpush2.msra.mxu0 0.0
        %3225 = vmatprep.subr.mxu0 0.0
        %3226 = vmatpush2.msra.mxu0 0.0
        %3227 = vmatprep.subr.mxu0 0.0
        %3228 = vmatpush2.msra.mxu0 0.0
        %3229 = vmatprep.subr.mxu0 0.0
        %3230 = vmatpush2.msra.mxu0 0.0
        %3231 = vmatprep.subr.mxu0 0.0
        %3232 = vmatpush2.msra.mxu0 0.0
        %3233 = vmatprep.subr.mxu0 0.0
        %3234 = vmatpush2.msra.mxu0 0.0
        %3235 = vmatprep.subr.mxu0 0.0
        %3236 = vmatpush2.msra.mxu0 0.0
        %3237 = vmatprep.subr.mxu0 0.0
        %3238 = vmatpush2.msra.mxu0 0.0
        %3239 = vmatprep.mubr.f32.mxu0 0.0
        %3240 = vmatmul.mubr.f32.gmra.mxu0 %v3075
        %v3241 = vpop.f32.mrf.mxu0
        %v3242 = vadd.f32 0.0, %v3241
        %v3243 = vpop.f32.mrf.mxu0
        %3244 = vmatprep.mubr.f32.mxu0 0.0
        %3245 = vmatmul.mubr.f32.gmra.mxu0 %v3078
        %v3246 = vpop.f32.mrf.mxu0
        %v3247 = vadd.f32 0.0, %v3246
        %v3248 = vpop.f32.mrf.mxu0
        %3249 = vmatprep.mubr.f32.mxu0 0.0
        %3250 = vmatmul.mubr.f32.gmra.mxu0 %v3081
        %v3251 = vpop.f32.mrf.mxu0
        %v3252 = vadd.f32 0.0, %v3251
        %v3253 = vpop.f32.mrf.mxu0
        %3254 = vmatprep.mubr.f32.mxu0 0.0
        %3255 = vmatmul.mubr.f32.gmra.mxu0 %v3084
        %v3256 = vpop.f32.mrf.mxu0
        %v3257 = vadd.f32 0.0, %v3256
        %v3258 = vpop.f32.mrf.mxu0
        %3259 = vdwg.mxu0
        %v3260 = vadd.f32 %v3044, %v3153
        %v3261 = vadd.f32 %v3045, %v3155
        %v3262 = vadd.f32 %v3046, %v3242
        %v3263 = vadd.f32 %v3047, %v3159
        %v3264 = vadd.f32 %v3048, %v3161
        %v3265 = vadd.f32 %v3049, %v3247
        %v3266 = vadd.f32 %v3050, %v3165
        %v3267 = vadd.f32 %v3051, %v3167
        %v3268 = vadd.f32 %v3052, %v3252
        %v3269 = vadd.f32 %v3053, %v3171
        %v3270 = vadd.f32 %v3054, %v3173
        %v3271 = vadd.f32 %v3055, %v3257
        %v3273 = vsel %vm2467, %v346, 0
        %v3276 = vsel %vm2467, %v347, 0
        %v3279 = vsel %vm2467, %v348, 0
        %v3282 = vsel %vm2467, %v349, 0
        %3284 = vmatprep.subr.mxu0 0.0
        %3285 = vmatpush1.msra.mxu0 0.0
        %3286 = vmatprep.subr.mxu0 0.0
        %3287 = vmatpush1.msra.mxu0 0.0
        %3288 = vmatprep.subr.mxu0 0.0
        %3289 = vmatpush1.msra.mxu0 0.0
        %3290 = vmatprep.subr.mxu0 0.0
        %3291 = vmatpush1.msra.mxu0 0.0
        %3292 = vmatprep.subr.mxu0 0.0
        %3293 = vmatpush1.msra.mxu0 0.0
        %3294 = vmatprep.subr.mxu0 0.0
        %3295 = vmatpush1.msra.mxu0 0.0
        %3296 = vmatprep.subr.mxu0 0.0
        %3297 = vmatpush1.msra.mxu0 0.0
        %3298 = vmatprep.subr.mxu0 0.0
        %3299 = vmatpush1.msra.mxu0 0.0
        %3300 = vmatprep.subr.mxu0 0.0
        %3301 = vmatpush1.msra.mxu0 0.0
        %3302 = vmatprep.subr.mxu0 0.0
        %3303 = vmatpush1.msra.mxu0 0.0
        %3304 = vmatprep.subr.mxu0 0.0
        %3305 = vmatpush1.msra.mxu0 0.0
        %3306 = vmatprep.subr.mxu0 0.0
        %3307 = vmatpush1.msra.mxu0 0.0
        %3308 = vmatprep.subr.mxu0 0.0
        %3309 = vmatpush1.msra.mxu0 0.0
        %3310 = vmatprep.subr.mxu0 0.0
        %3311 = vmatpush1.msra.mxu0 0.0
        %3312 = vmatprep.subr.mxu0 %v2429
        %3313 = vmatpush1.msra.mxu0 %v2428
        %3314 = vmatprep.subr.mxu0 %v2426
        %3315 = vmatpush1.msra.mxu0 %v2425
        %3316 = vmatprep.subr.mxu0 0.0
        %3317 = vmatpush2.msra.mxu0 0.0
        %3318 = vmatprep.subr.mxu0 0.0
        %3319 = vmatpush2.msra.mxu0 0.0
        %3320 = vmatprep.subr.mxu0 0.0
        %3321 = vmatpush2.msra.mxu0 0.0
        %3322 = vmatprep.subr.mxu0 0.0
        %3323 = vmatpush2.msra.mxu0 0.0
        %3324 = vmatprep.subr.mxu0 0.0
        %3325 = vmatpush2.msra.mxu0 0.0
        %3326 = vmatprep.subr.mxu0 0.0
        %3327 = vmatpush2.msra.mxu0 0.0
        %3328 = vmatprep.subr.mxu0 0.0
        %3329 = vmatpush2.msra.mxu0 0.0
        %3330 = vmatprep.subr.mxu0 0.0
        %3331 = vmatpush2.msra.mxu0 0.0
        %3332 = vmatprep.subr.mxu0 0.0
        %3333 = vmatpush2.msra.mxu0 0.0
        %3334 = vmatprep.subr.mxu0 0.0
        %3335 = vmatpush2.msra.mxu0 0.0
        %3336 = vmatprep.subr.mxu0 0.0
        %3337 = vmatpush2.msra.mxu0 0.0
        %3338 = vmatprep.subr.mxu0 0.0
        %3339 = vmatpush2.msra.mxu0 0.0
        %3340 = vmatprep.subr.mxu0 0.0
        %3341 = vmatpush2.msra.mxu0 0.0
        %3342 = vmatprep.subr.mxu0 0.0
        %3343 = vmatpush2.msra.mxu0 0.0
        %3344 = vmatprep.subr.mxu0 0.0
        %3345 = vmatpush2.msra.mxu0 0.0
        %3346 = vmatprep.subr.mxu0 0.0
        %3347 = vmatpush2.msra.mxu0 0.0
        %3348 = vmatprep.mubr.f32.mxu0 0.0
        %3349 = vmatmul.mubr.f32.gmra.mxu0 %v3273
        %v3350 = vpop.f32.mrf.mxu0
        %v3351 = vadd.f32 0.0, %v3350
        %v3352 = vpop.f32.mrf.mxu0
        %v3353 = vadd.f32 0.0, %v3352
        %3354 = vmatprep.mubr.f32.mxu0 0.0
        %3355 = vmatmul.mubr.f32.gmra.mxu0 %v3276
        %v3356 = vpop.f32.mrf.mxu0
        %v3357 = vadd.f32 0.0, %v3356
        %v3358 = vpop.f32.mrf.mxu0
        %v3359 = vadd.f32 0.0, %v3358
        %3360 = vmatprep.mubr.f32.mxu0 0.0
        %3361 = vmatmul.mubr.f32.gmra.mxu0 %v3279
        %v3362 = vpop.f32.mrf.mxu0
        %v3363 = vadd.f32 0.0, %v3362
        %v3364 = vpop.f32.mrf.mxu0
        %v3365 = vadd.f32 0.0, %v3364
        %3366 = vmatprep.mubr.f32.mxu0 0.0
        %3367 = vmatmul.mubr.f32.gmra.mxu0 %v3282
        %v3368 = vpop.f32.mrf.mxu0
        %v3369 = vadd.f32 0.0, %v3368
        %v3370 = vpop.f32.mrf.mxu0
        %v3371 = vadd.f32 0.0, %v3370
        %3372 = vdwg.mxu0
        %3373 = vmatprep.subr.mxu0 0.0
        %3374 = vmatpush1.msra.mxu0 0.0
        %3375 = vmatprep.subr.mxu0 0.0
        %3376 = vmatpush1.msra.mxu0 0.0
        %3377 = vmatprep.subr.mxu0 0.0
        %3378 = vmatpush1.msra.mxu0 0.0
        %3379 = vmatprep.subr.mxu0 0.0
        %3380 = vmatpush1.msra.mxu0 0.0
        %3381 = vmatprep.subr.mxu0 0.0
        %3382 = vmatpush1.msra.mxu0 0.0
        %3383 = vmatprep.subr.mxu0 0.0
        %3384 = vmatpush1.msra.mxu0 0.0
        %3385 = vmatprep.subr.mxu0 0.0
        %3386 = vmatpush1.msra.mxu0 0.0
        %3387 = vmatprep.subr.mxu0 0.0
        %3388 = vmatpush1.msra.mxu0 0.0
        %3389 = vmatprep.subr.mxu0 0.0
        %3390 = vmatpush1.msra.mxu0 0.0
        %3391 = vmatprep.subr.mxu0 0.0
        %3392 = vmatpush1.msra.mxu0 0.0
        %3393 = vmatprep.subr.mxu0 0.0
        %3394 = vmatpush1.msra.mxu0 0.0
        %3395 = vmatprep.subr.mxu0 0.0
        %3396 = vmatpush1.msra.mxu0 0.0
        %3397 = vmatprep.subr.mxu0 0.0
        %3398 = vmatpush1.msra.mxu0 0.0
        %3399 = vmatprep.subr.mxu0 0.0
        %3400 = vmatpush1.msra.mxu0 0.0
        %3401 = vmatprep.subr.mxu0 0.0
        %3402 = vmatpush1.msra.mxu0 %v2430
        %3403 = vmatprep.subr.mxu0 0.0
        %3404 = vmatpush1.msra.mxu0 %v2427
        %3405 = vmatprep.subr.mxu0 0.0
        %3406 = vmatpush2.msra.mxu0 0.0
        %3407 = vmatprep.subr.mxu0 0.0
        %3408 = vmatpush2.msra.mxu0 0.0
        %3409 = vmatprep.subr.mxu0 0.0
        %3410 = vmatpush2.msra.mxu0 0.0
        %3411 = vmatprep.subr.mxu0 0.0
        %3412 = vmatpush2.msra.mxu0 0.0
        %3413 = vmatprep.subr.mxu0 0.0
        %3414 = vmatpush2.msra.mxu0 0.0
        %3415 = vmatprep.subr.mxu0 0.0
        %3416 = vmatpush2.msra.mxu0 0.0
        %3417 = vmatprep.subr.mxu0 0.0
        %3418 = vmatpush2.msra.mxu0 0.0
        %3419 = vmatprep.subr.mxu0 0.0
        %3420 = vmatpush2.msra.mxu0 0.0
        %3421 = vmatprep.subr.mxu0 0.0
        %3422 = vmatpush2.msra.mxu0 0.0
        %3423 = vmatprep.subr.mxu0 0.0
        %3424 = vmatpush2.msra.mxu0 0.0
        %3425 = vmatprep.subr.mxu0 0.0
        %3426 = vmatpush2.msra.mxu0 0.0
        %3427 = vmatprep.subr.mxu0 0.0
        %3428 = vmatpush2.msra.mxu0 0.0
        %3429 = vmatprep.subr.mxu0 0.0
        %3430 = vmatpush2.msra.mxu0 0.0
        %3431 = vmatprep.subr.mxu0 0.0
        %3432 = vmatpush2.msra.mxu0 0.0
        %3433 = vmatprep.subr.mxu0 0.0
        %3434 = vmatpush2.msra.mxu0 0.0
        %3435 = vmatprep.subr.mxu0 0.0
        %3436 = vmatpush2.msra.mxu0 0.0
        %3437 = vmatprep.mubr.f32.mxu0 0.0
        %3438 = vmatmul.mubr.f32.gmra.mxu0 %v3273
        %v3439 = vpop.f32.mrf.mxu0
        %v3440 = vadd.f32 0.0, %v3439
        %v3441 = vpop.f32.mrf.mxu0
        %3442 = vmatprep.mubr.f32.mxu0 0.0
        %3443 = vmatmul.mubr.f32.gmra.mxu0 %v3276
        %v3444 = vpop.f32.mrf.mxu0
        %v3445 = vadd.f32 0.0, %v3444
        %v3446 = vpop.f32.mrf.mxu0
        %3447 = vmatprep.mubr.f32.mxu0 0.0
        %3448 = vmatmul.mubr.f32.gmra.mxu0 %v3279
        %v3449 = vpop.f32.mrf.mxu0
        %v3450 = vadd.f32 0.0, %v3449
        %v3451 = vpop.f32.mrf.mxu0
        %3452 = vmatprep.mubr.f32.mxu0 0.0
        %3453 = vmatmul.mubr.f32.gmra.mxu0 %v3282
        %v3454 = vpop.f32.mrf.mxu0
        %v3455 = vadd.f32 0.0, %v3454
        %v3456 = vpop.f32.mrf.mxu0
        %3457 = vdwg.mxu0
        %v3458 = vadd.f32 %v3260, %v3351
        %v3459 = vadd.f32 %v3261, %v3353
        %v3460 = vadd.f32 %v3262, %v3440
        %v3461 = vadd.f32 %v3263, %v3357
        %v3462 = vadd.f32 %v3264, %v3359
        %v3463 = vadd.f32 %v3265, %v3445
        %v3464 = vadd.f32 %v3266, %v3363
        %v3465 = vadd.f32 %v3267, %v3365
        %v3466 = vadd.f32 %v3268, %v3450
        %v3467 = vadd.f32 %v3269, %v3369
        %v3468 = vadd.f32 %v3270, %v3371
        %v3469 = vadd.f32 %v3271, %v3455
        %3470 = vrot.lane.b32.xlu0 %v2425, 127
        %v3471 = vpop.permute.xlu0 %3470
        %3472 = vrot.lane.b32.xlu0 %v2428, 127
        %v3473 = vpop.permute.xlu0 %3472
        %3474 = vrot.lane.b32.xlu0 %v2426, 127
        %v3475 = vpop.permute.xlu0 %3474
        %3476 = vrot.lane.b32.xlu0 %v2429, 127
        %v3477 = vpop.permute.xlu0 %3476
        %3478 = vrot.lane.b32.xlu0 %v2427, 127
        %v3479 = vpop.permute.xlu0 %3478
        %3480 = vrot.lane.b32.xlu0 %v2430, 127
        %v3481 = vpop.permute.xlu0 %3480
        %v3482 = vsel %vm1327, %v3475, %v3479
        %v3483 = vsel %vm1327, %v3477, %v3481
        %v3484 = vsel %vm1327, %v3471, %v3475
        %v3485 = vsel %vm1327, %v3473, %v3477
        %v3486 = vsel %vm1327, %v3479, %v3471
        %v3487 = vsel %vm1327, %v3481, %v3473
        %v3489 = vsel %vm2467, %v350, 0
        %v3492 = vsel %vm2467, %v351, 0
        %v3495 = vsel %vm2467, %v352, 0
        %v3498 = vsel %vm2467, %v353, 0
        %3500 = vmatprep.subr.mxu0 0.0
        %3501 = vmatpush1.msra.mxu0 0.0
        %3502 = vmatprep.subr.mxu0 0.0
        %3503 = vmatpush1.msra.mxu0 0.0
        %3504 = vmatprep.subr.mxu0 0.0
        %3505 = vmatpush1.msra.mxu0 0.0
        %3506 = vmatprep.subr.mxu0 0.0
        %3507 = vmatpush1.msra.mxu0 0.0
        %3508 = vmatprep.subr.mxu0 0.0
        %3509 = vmatpush1.msra.mxu0 0.0
        %3510 = vmatprep.subr.mxu0 0.0
        %3511 = vmatpush1.msra.mxu0 0.0
        %3512 = vmatprep.subr.mxu0 0.0
        %3513 = vmatpush1.msra.mxu0 0.0
        %3514 = vmatprep.subr.mxu0 0.0
        %3515 = vmatpush1.msra.mxu0 0.0
        %3516 = vmatprep.subr.mxu0 0.0
        %3517 = vmatpush1.msra.mxu0 0.0
        %3518 = vmatprep.subr.mxu0 0.0
        %3519 = vmatpush1.msra.mxu0 0.0
        %3520 = vmatprep.subr.mxu0 0.0
        %3521 = vmatpush1.msra.mxu0 0.0
        %3522 = vmatprep.subr.mxu0 0.0
        %3523 = vmatpush1.msra.mxu0 0.0
        %3524 = vmatprep.subr.mxu0 0.0
        %3525 = vmatpush1.msra.mxu0 0.0
        %3526 = vmatprep.subr.mxu0 0.0
        %3527 = vmatpush1.msra.mxu0 0.0
        %3528 = vmatprep.subr.mxu0 %v3483
        %3529 = vmatpush1.msra.mxu0 %v3485
        %3530 = vmatprep.subr.mxu0 %v3482
        %3531 = vmatpush1.msra.mxu0 %v3484
        %3532 = vmatprep.subr.mxu0 0.0
        %3533 = vmatpush2.msra.mxu0 0.0
        %3534 = vmatprep.subr.mxu0 0.0
        %3535 = vmatpush2.msra.mxu0 0.0
        %3536 = vmatprep.subr.mxu0 0.0
        %3537 = vmatpush2.msra.mxu0 0.0
        %3538 = vmatprep.subr.mxu0 0.0
        %3539 = vmatpush2.msra.mxu0 0.0
        %3540 = vmatprep.subr.mxu0 0.0
        %3541 = vmatpush2.msra.mxu0 0.0
        %3542 = vmatprep.subr.mxu0 0.0
        %3543 = vmatpush2.msra.mxu0 0.0
        %3544 = vmatprep.subr.mxu0 0.0
        %3545 = vmatpush2.msra.mxu0 0.0
        %3546 = vmatprep.subr.mxu0 0.0
        %3547 = vmatpush2.msra.mxu0 0.0
        %3548 = vmatprep.subr.mxu0 0.0
        %3549 = vmatpush2.msra.mxu0 0.0
        %3550 = vmatprep.subr.mxu0 0.0
        %3551 = vmatpush2.msra.mxu0 0.0
        %3552 = vmatprep.subr.mxu0 0.0
        %3553 = vmatpush2.msra.mxu0 0.0
        %3554 = vmatprep.subr.mxu0 0.0
        %3555 = vmatpush2.msra.mxu0 0.0
        %3556 = vmatprep.subr.mxu0 0.0
        %3557 = vmatpush2.msra.mxu0 0.0
        %3558 = vmatprep.subr.mxu0 0.0
        %3559 = vmatpush2.msra.mxu0 0.0
        %3560 = vmatprep.subr.mxu0 0.0
        %3561 = vmatpush2.msra.mxu0 0.0
        %3562 = vmatprep.subr.mxu0 0.0
        %3563 = vmatpush2.msra.mxu0 0.0
        %3564 = vmatprep.mubr.f32.mxu0 0.0
        %3565 = vmatmul.mubr.f32.gmra.mxu0 %v3489
        %v3566 = vpop.f32.mrf.mxu0
        %v3567 = vadd.f32 0.0, %v3566
        %v3568 = vpop.f32.mrf.mxu0
        %v3569 = vadd.f32 0.0, %v3568
        %3570 = vmatprep.mubr.f32.mxu0 0.0
        %3571 = vmatmul.mubr.f32.gmra.mxu0 %v3492
        %v3572 = vpop.f32.mrf.mxu0
        %v3573 = vadd.f32 0.0, %v3572
        %v3574 = vpop.f32.mrf.mxu0
        %v3575 = vadd.f32 0.0, %v3574
        %3576 = vmatprep.mubr.f32.mxu0 0.0
        %3577 = vmatmul.mubr.f32.gmra.mxu0 %v3495
        %v3578 = vpop.f32.mrf.mxu0
        %v3579 = vadd.f32 0.0, %v3578
        %v3580 = vpop.f32.mrf.mxu0
        %v3581 = vadd.f32 0.0, %v3580
        %3582 = vmatprep.mubr.f32.mxu0 0.0
        %3583 = vmatmul.mubr.f32.gmra.mxu0 %v3498
        %v3584 = vpop.f32.mrf.mxu0
        %v3585 = vadd.f32 0.0, %v3584
        %v3586 = vpop.f32.mrf.mxu0
        %v3587 = vadd.f32 0.0, %v3586
        %3588 = vdwg.mxu0
        %3589 = vmatprep.subr.mxu0 0.0
        %3590 = vmatpush1.msra.mxu0 0.0
        %3591 = vmatprep.subr.mxu0 0.0
        %3592 = vmatpush1.msra.mxu0 0.0
        %3593 = vmatprep.subr.mxu0 0.0
        %3594 = vmatpush1.msra.mxu0 0.0
        %3595 = vmatprep.subr.mxu0 0.0
        %3596 = vmatpush1.msra.mxu0 0.0
        %3597 = vmatprep.subr.mxu0 0.0
        %3598 = vmatpush1.msra.mxu0 0.0
        %3599 = vmatprep.subr.mxu0 0.0
        %3600 = vmatpush1.msra.mxu0 0.0
        %3601 = vmatprep.subr.mxu0 0.0
        %3602 = vmatpush1.msra.mxu0 0.0
        %3603 = vmatprep.subr.mxu0 0.0
        %3604 = vmatpush1.msra.mxu0 0.0
        %3605 = vmatprep.subr.mxu0 0.0
        %3606 = vmatpush1.msra.mxu0 0.0
        %3607 = vmatprep.subr.mxu0 0.0
        %3608 = vmatpush1.msra.mxu0 0.0
        %3609 = vmatprep.subr.mxu0 0.0
        %3610 = vmatpush1.msra.mxu0 0.0
        %3611 = vmatprep.subr.mxu0 0.0
        %3612 = vmatpush1.msra.mxu0 0.0
        %3613 = vmatprep.subr.mxu0 0.0
        %3614 = vmatpush1.msra.mxu0 0.0
        %3615 = vmatprep.subr.mxu0 0.0
        %3616 = vmatpush1.msra.mxu0 0.0
        %3617 = vmatprep.subr.mxu0 0.0
        %3618 = vmatpush1.msra.mxu0 %v3487
        %3619 = vmatprep.subr.mxu0 0.0
        %3620 = vmatpush1.msra.mxu0 %v3486
        %3621 = vmatprep.subr.mxu0 0.0
        %3622 = vmatpush2.msra.mxu0 0.0
        %3623 = vmatprep.subr.mxu0 0.0
        %3624 = vmatpush2.msra.mxu0 0.0
        %3625 = vmatprep.subr.mxu0 0.0
        %3626 = vmatpush2.msra.mxu0 0.0
        %3627 = vmatprep.subr.mxu0 0.0
        %3628 = vmatpush2.msra.mxu0 0.0
        %3629 = vmatprep.subr.mxu0 0.0
        %3630 = vmatpush2.msra.mxu0 0.0
        %3631 = vmatprep.subr.mxu0 0.0
        %3632 = vmatpush2.msra.mxu0 0.0
        %3633 = vmatprep.subr.mxu0 0.0
        %3634 = vmatpush2.msra.mxu0 0.0
        %3635 = vmatprep.subr.mxu0 0.0
        %3636 = vmatpush2.msra.mxu0 0.0
        %3637 = vmatprep.subr.mxu0 0.0
        %3638 = vmatpush2.msra.mxu0 0.0
        %3639 = vmatprep.subr.mxu0 0.0
        %3640 = vmatpush2.msra.mxu0 0.0
        %3641 = vmatprep.subr.mxu0 0.0
        %3642 = vmatpush2.msra.mxu0 0.0
        %3643 = vmatprep.subr.mxu0 0.0
        %3644 = vmatpush2.msra.mxu0 0.0
        %3645 = vmatprep.subr.mxu0 0.0
        %3646 = vmatpush2.msra.mxu0 0.0
        %3647 = vmatprep.subr.mxu0 0.0
        %3648 = vmatpush2.msra.mxu0 0.0
        %3649 = vmatprep.subr.mxu0 0.0
        %3650 = vmatpush2.msra.mxu0 0.0
        %3651 = vmatprep.subr.mxu0 0.0
        %3652 = vmatpush2.msra.mxu0 0.0
        %3653 = vmatprep.mubr.f32.mxu0 0.0
        %3654 = vmatmul.mubr.f32.gmra.mxu0 %v3489
        %v3655 = vpop.f32.mrf.mxu0
        %v3656 = vadd.f32 0.0, %v3655
        %v3657 = vpop.f32.mrf.mxu0
        %3658 = vmatprep.mubr.f32.mxu0 0.0
        %3659 = vmatmul.mubr.f32.gmra.mxu0 %v3492
        %v3660 = vpop.f32.mrf.mxu0
        %v3661 = vadd.f32 0.0, %v3660
        %v3662 = vpop.f32.mrf.mxu0
        %3663 = vmatprep.mubr.f32.mxu0 0.0
        %3664 = vmatmul.mubr.f32.gmra.mxu0 %v3495
        %v3665 = vpop.f32.mrf.mxu0
        %v3666 = vadd.f32 0.0, %v3665
        %v3667 = vpop.f32.mrf.mxu0
        %3668 = vmatprep.mubr.f32.mxu0 0.0
        %3669 = vmatmul.mubr.f32.gmra.mxu0 %v3498
        %v3670 = vpop.f32.mrf.mxu0
        %v3671 = vadd.f32 0.0, %v3670
        %v3672 = vpop.f32.mrf.mxu0
        %3673 = vdwg.mxu0
        %v3674 = vadd.f32 %v3458, %v3567
        %v3675 = vadd.f32 %v3459, %v3569
        %v3676 = vadd.f32 %v3460, %v3656
        %v3677 = vadd.f32 %v3461, %v3573
        %v3678 = vadd.f32 %v3462, %v3575
        %v3679 = vadd.f32 %v3463, %v3661
        %v3680 = vadd.f32 %v3464, %v3579
        %v3681 = vadd.f32 %v3465, %v3581
        %v3682 = vadd.f32 %v3466, %v3666
        %v3683 = vadd.f32 %v3467, %v3585
        %v3684 = vadd.f32 %v3468, %v3587
        %v3685 = vadd.f32 %v3469, %v3671
        %3686 = vrot.lane.b32.xlu0 %v2425, 113
        %v3687 = vpop.permute.xlu0 %3686
        %3688 = vrot.lane.b32.xlu0 %v2428, 113
        %v3689 = vpop.permute.xlu0 %3688
        %3690 = vrot.lane.b32.xlu0 %v2426, 113
        %v3691 = vpop.permute.xlu0 %3690
        %3692 = vrot.lane.b32.xlu0 %v2429, 113
        %v3693 = vpop.permute.xlu0 %3692
        %3694 = vrot.lane.b32.xlu0 %v2427, 113
        %v3695 = vpop.permute.xlu0 %3694
        %3696 = vrot.lane.b32.xlu0 %v2430, 113
        %v3697 = vpop.permute.xlu0 %3696
        %v3698 = vsel %vm1510, %v3691, %v3695
        %v3699 = vsel %vm1510, %v3693, %v3697
        %v3700 = vsel %vm1510, %v3687, %v3691
        %v3701 = vsel %vm1510, %v3689, %v3693
        %v3702 = vsel %vm1510, %v3695, %v3687
        %v3703 = vsel %vm1510, %v3697, %v3689
        %v3705 = vsel %vm2467, %v354, 0
        %v3708 = vsel %vm2467, %v355, 0
        %v3711 = vsel %vm2467, %v356, 0
        %v3714 = vsel %vm2467, %v357, 0
        %3716 = vmatprep.subr.mxu0 0.0
        %3717 = vmatpush1.msra.mxu0 0.0
        %3718 = vmatprep.subr.mxu0 0.0
        %3719 = vmatpush1.msra.mxu0 0.0
        %3720 = vmatprep.subr.mxu0 0.0
        %3721 = vmatpush1.msra.mxu0 0.0
        %3722 = vmatprep.subr.mxu0 0.0
        %3723 = vmatpush1.msra.mxu0 0.0
        %3724 = vmatprep.subr.mxu0 0.0
        %3725 = vmatpush1.msra.mxu0 0.0
        %3726 = vmatprep.subr.mxu0 0.0
        %3727 = vmatpush1.msra.mxu0 0.0
        %3728 = vmatprep.subr.mxu0 0.0
        %3729 = vmatpush1.msra.mxu0 0.0
        %3730 = vmatprep.subr.mxu0 0.0
        %3731 = vmatpush1.msra.mxu0 0.0
        %3732 = vmatprep.subr.mxu0 0.0
        %3733 = vmatpush1.msra.mxu0 0.0
        %3734 = vmatprep.subr.mxu0 0.0
        %3735 = vmatpush1.msra.mxu0 0.0
        %3736 = vmatprep.subr.mxu0 0.0
        %3737 = vmatpush1.msra.mxu0 0.0
        %3738 = vmatprep.subr.mxu0 0.0
        %3739 = vmatpush1.msra.mxu0 0.0
        %3740 = vmatprep.subr.mxu0 0.0
        %3741 = vmatpush1.msra.mxu0 0.0
        %3742 = vmatprep.subr.mxu0 0.0
        %3743 = vmatpush1.msra.mxu0 0.0
        %3744 = vmatprep.subr.mxu0 %v3699
        %3745 = vmatpush1.msra.mxu0 %v3701
        %3746 = vmatprep.subr.mxu0 %v3698
        %3747 = vmatpush1.msra.mxu0 %v3700
        %3748 = vmatprep.subr.mxu0 0.0
        %3749 = vmatpush2.msra.mxu0 0.0
        %3750 = vmatprep.subr.mxu0 0.0
        %3751 = vmatpush2.msra.mxu0 0.0
        %3752 = vmatprep.subr.mxu0 0.0
        %3753 = vmatpush2.msra.mxu0 0.0
        %3754 = vmatprep.subr.mxu0 0.0
        %3755 = vmatpush2.msra.mxu0 0.0
        %3756 = vmatprep.subr.mxu0 0.0
        %3757 = vmatpush2.msra.mxu0 0.0
        %3758 = vmatprep.subr.mxu0 0.0
        %3759 = vmatpush2.msra.mxu0 0.0
        %3760 = vmatprep.subr.mxu0 0.0
        %3761 = vmatpush2.msra.mxu0 0.0
        %3762 = vmatprep.subr.mxu0 0.0
        %3763 = vmatpush2.msra.mxu0 0.0
        %3764 = vmatprep.subr.mxu0 0.0
        %3765 = vmatpush2.msra.mxu0 0.0
        %3766 = vmatprep.subr.mxu0 0.0
        %3767 = vmatpush2.msra.mxu0 0.0
        %3768 = vmatprep.subr.mxu0 0.0
        %3769 = vmatpush2.msra.mxu0 0.0
        %3770 = vmatprep.subr.mxu0 0.0
        %3771 = vmatpush2.msra.mxu0 0.0
        %3772 = vmatprep.subr.mxu0 0.0
        %3773 = vmatpush2.msra.mxu0 0.0
        %3774 = vmatprep.subr.mxu0 0.0
        %3775 = vmatpush2.msra.mxu0 0.0
        %3776 = vmatprep.subr.mxu0 0.0
        %3777 = vmatpush2.msra.mxu0 0.0
        %3778 = vmatprep.subr.mxu0 0.0
        %3779 = vmatpush2.msra.mxu0 0.0
        %3780 = vmatprep.mubr.f32.mxu0 0.0
        %3781 = vmatmul.mubr.f32.gmra.mxu0 %v3705
        %v3782 = vpop.f32.mrf.mxu0
        %v3783 = vadd.f32 0.0, %v3782
        %v3784 = vpop.f32.mrf.mxu0
        %v3785 = vadd.f32 0.0, %v3784
        %3786 = vmatprep.mubr.f32.mxu0 0.0
        %3787 = vmatmul.mubr.f32.gmra.mxu0 %v3708
        %v3788 = vpop.f32.mrf.mxu0
        %v3789 = vadd.f32 0.0, %v3788
        %v3790 = vpop.f32.mrf.mxu0
        %v3791 = vadd.f32 0.0, %v3790
        %3792 = vmatprep.mubr.f32.mxu0 0.0
        %3793 = vmatmul.mubr.f32.gmra.mxu0 %v3711
        %v3794 = vpop.f32.mrf.mxu0
        %v3795 = vadd.f32 0.0, %v3794
        %v3796 = vpop.f32.mrf.mxu0
        %v3797 = vadd.f32 0.0, %v3796
        %3798 = vmatprep.mubr.f32.mxu0 0.0
        %3799 = vmatmul.mubr.f32.gmra.mxu0 %v3714
        %v3800 = vpop.f32.mrf.mxu0
        %v3801 = vadd.f32 0.0, %v3800
        %v3802 = vpop.f32.mrf.mxu0
        %v3803 = vadd.f32 0.0, %v3802
        %3804 = vdwg.mxu0
        %3805 = vmatprep.subr.mxu0 0.0
        %3806 = vmatpush1.msra.mxu0 0.0
        %3807 = vmatprep.subr.mxu0 0.0
        %3808 = vmatpush1.msra.mxu0 0.0
        %3809 = vmatprep.subr.mxu0 0.0
        %3810 = vmatpush1.msra.mxu0 0.0
        %3811 = vmatprep.subr.mxu0 0.0
        %3812 = vmatpush1.msra.mxu0 0.0
        %3813 = vmatprep.subr.mxu0 0.0
        %3814 = vmatpush1.msra.mxu0 0.0
        %3815 = vmatprep.subr.mxu0 0.0
        %3816 = vmatpush1.msra.mxu0 0.0
        %3817 = vmatprep.subr.mxu0 0.0
        %3818 = vmatpush1.msra.mxu0 0.0
        %3819 = vmatprep.subr.mxu0 0.0
        %3820 = vmatpush1.msra.mxu0 0.0
        %3821 = vmatprep.subr.mxu0 0.0
        %3822 = vmatpush1.msra.mxu0 0.0
        %3823 = vmatprep.subr.mxu0 0.0
        %3824 = vmatpush1.msra.mxu0 0.0
        %3825 = vmatprep.subr.mxu0 0.0
        %3826 = vmatpush1.msra.mxu0 0.0
        %3827 = vmatprep.subr.mxu0 0.0
        %3828 = vmatpush1.msra.mxu0 0.0
        %3829 = vmatprep.subr.mxu0 0.0
        %3830 = vmatpush1.msra.mxu0 0.0
        %3831 = vmatprep.subr.mxu0 0.0
        %3832 = vmatpush1.msra.mxu0 0.0
        %3833 = vmatprep.subr.mxu0 0.0
        %3834 = vmatpush1.msra.mxu0 %v3703
        %3835 = vmatprep.subr.mxu0 0.0
        %3836 = vmatpush1.msra.mxu0 %v3702
        %3837 = vmatprep.subr.mxu0 0.0
        %3838 = vmatpush2.msra.mxu0 0.0
        %3839 = vmatprep.subr.mxu0 0.0
        %3840 = vmatpush2.msra.mxu0 0.0
        %3841 = vmatprep.subr.mxu0 0.0
        %3842 = vmatpush2.msra.mxu0 0.0
        %3843 = vmatprep.subr.mxu0 0.0
        %3844 = vmatpush2.msra.mxu0 0.0
        %3845 = vmatprep.subr.mxu0 0.0
        %3846 = vmatpush2.msra.mxu0 0.0
        %3847 = vmatprep.subr.mxu0 0.0
        %3848 = vmatpush2.msra.mxu0 0.0
        %3849 = vmatprep.subr.mxu0 0.0
        %3850 = vmatpush2.msra.mxu0 0.0
        %3851 = vmatprep.subr.mxu0 0.0
        %3852 = vmatpush2.msra.mxu0 0.0
        %3853 = vmatprep.subr.mxu0 0.0
        %3854 = vmatpush2.msra.mxu0 0.0
        %3855 = vmatprep.subr.mxu0 0.0
        %3856 = vmatpush2.msra.mxu0 0.0
        %3857 = vmatprep.subr.mxu0 0.0
        %3858 = vmatpush2.msra.mxu0 0.0
        %3859 = vmatprep.subr.mxu0 0.0
        %3860 = vmatpush2.msra.mxu0 0.0
        %3861 = vmatprep.subr.mxu0 0.0
        %3862 = vmatpush2.msra.mxu0 0.0
        %3863 = vmatprep.subr.mxu0 0.0
        %3864 = vmatpush2.msra.mxu0 0.0
        %3865 = vmatprep.subr.mxu0 0.0
        %3866 = vmatpush2.msra.mxu0 0.0
        %3867 = vmatprep.subr.mxu0 0.0
        %3868 = vmatpush2.msra.mxu0 0.0
        %3869 = vmatprep.mubr.f32.mxu0 0.0
        %3870 = vmatmul.mubr.f32.gmra.mxu0 %v3705
        %v3871 = vpop.f32.mrf.mxu0
        %v3872 = vadd.f32 0.0, %v3871
        %v3873 = vpop.f32.mrf.mxu0
        %3874 = vmatprep.mubr.f32.mxu0 0.0
        %3875 = vmatmul.mubr.f32.gmra.mxu0 %v3708
        %v3876 = vpop.f32.mrf.mxu0
        %v3877 = vadd.f32 0.0, %v3876
        %v3878 = vpop.f32.mrf.mxu0
        %3879 = vmatprep.mubr.f32.mxu0 0.0
        %3880 = vmatmul.mubr.f32.gmra.mxu0 %v3711
        %v3881 = vpop.f32.mrf.mxu0
        %v3882 = vadd.f32 0.0, %v3881
        %v3883 = vpop.f32.mrf.mxu0
        %3884 = vmatprep.mubr.f32.mxu0 0.0
        %3885 = vmatmul.mubr.f32.gmra.mxu0 %v3714
        %v3886 = vpop.f32.mrf.mxu0
        %v3887 = vadd.f32 0.0, %v3886
        %v3888 = vpop.f32.mrf.mxu0
        %3889 = vdwg.mxu0
        %v3890 = vadd.f32 %v3674, %v3783
        %v3891 = vadd.f32 %v3675, %v3785
        %v3892 = vadd.f32 %v3676, %v3872
        %v3893 = vadd.f32 %v3677, %v3789
        %v3894 = vadd.f32 %v3678, %v3791
        %v3895 = vadd.f32 %v3679, %v3877
        %v3896 = vadd.f32 %v3680, %v3795
        %v3897 = vadd.f32 %v3681, %v3797
        %v3898 = vadd.f32 %v3682, %v3882
        %v3899 = vadd.f32 %v3683, %v3801
        %v3900 = vadd.f32 %v3684, %v3803
        %v3901 = vadd.f32 %v3685, %v3887
        %3902 = vrot.lane.b32.xlu0 %v2425, 112
        %v3903 = vpop.permute.xlu0 %3902
        %3904 = vrot.lane.b32.xlu0 %v2428, 112
        %v3905 = vpop.permute.xlu0 %3904
        %3906 = vrot.lane.b32.xlu0 %v2426, 112
        %v3907 = vpop.permute.xlu0 %3906
        %3908 = vrot.lane.b32.xlu0 %v2429, 112
        %v3909 = vpop.permute.xlu0 %3908
        %3910 = vrot.lane.b32.xlu0 %v2427, 112
        %v3911 = vpop.permute.xlu0 %3910
        %3912 = vrot.lane.b32.xlu0 %v2430, 112
        %v3913 = vpop.permute.xlu0 %3912
        %v3914 = vsel %vm1693, %v3907, %v3911
        %v3915 = vsel %vm1693, %v3909, %v3913
        %v3916 = vsel %vm1693, %v3903, %v3907
        %v3917 = vsel %vm1693, %v3905, %v3909
        %v3918 = vsel %vm1693, %v3911, %v3903
        %v3919 = vsel %vm1693, %v3913, %v3905
        %v3921 = vsel %vm2467, %v358, 0
        %v3924 = vsel %vm2467, %v359, 0
        %v3927 = vsel %vm2467, %v360, 0
        %v3930 = vsel %vm2467, %v361, 0
        %3932 = vmatprep.subr.mxu0 0.0
        %3933 = vmatpush1.msra.mxu0 0.0
        %3934 = vmatprep.subr.mxu0 0.0
        %3935 = vmatpush1.msra.mxu0 0.0
        %3936 = vmatprep.subr.mxu0 0.0
        %3937 = vmatpush1.msra.mxu0 0.0
        %3938 = vmatprep.subr.mxu0 0.0
        %3939 = vmatpush1.msra.mxu0 0.0
        %3940 = vmatprep.subr.mxu0 0.0
        %3941 = vmatpush1.msra.mxu0 0.0
        %3942 = vmatprep.subr.mxu0 0.0
        %3943 = vmatpush1.msra.mxu0 0.0
        %3944 = vmatprep.subr.mxu0 0.0
        %3945 = vmatpush1.msra.mxu0 0.0
        %3946 = vmatprep.subr.mxu0 0.0
        %3947 = vmatpush1.msra.mxu0 0.0
        %3948 = vmatprep.subr.mxu0 0.0
        %3949 = vmatpush1.msra.mxu0 0.0
        %3950 = vmatprep.subr.mxu0 0.0
        %3951 = vmatpush1.msra.mxu0 0.0
        %3952 = vmatprep.subr.mxu0 0.0
        %3953 = vmatpush1.msra.mxu0 0.0
        %3954 = vmatprep.subr.mxu0 0.0
        %3955 = vmatpush1.msra.mxu0 0.0
        %3956 = vmatprep.subr.mxu0 0.0
        %3957 = vmatpush1.msra.mxu0 0.0
        %3958 = vmatprep.subr.mxu0 0.0
        %3959 = vmatpush1.msra.mxu0 0.0
        %3960 = vmatprep.subr.mxu0 %v3915
        %3961 = vmatpush1.msra.mxu0 %v3917
        %3962 = vmatprep.subr.mxu0 %v3914
        %3963 = vmatpush1.msra.mxu0 %v3916
        %3964 = vmatprep.subr.mxu0 0.0
        %3965 = vmatpush2.msra.mxu0 0.0
        %3966 = vmatprep.subr.mxu0 0.0
        %3967 = vmatpush2.msra.mxu0 0.0
        %3968 = vmatprep.subr.mxu0 0.0
        %3969 = vmatpush2.msra.mxu0 0.0
        %3970 = vmatprep.subr.mxu0 0.0
        %3971 = vmatpush2.msra.mxu0 0.0
        %3972 = vmatprep.subr.mxu0 0.0
        %3973 = vmatpush2.msra.mxu0 0.0
        %3974 = vmatprep.subr.mxu0 0.0
        %3975 = vmatpush2.msra.mxu0 0.0
        %3976 = vmatprep.subr.mxu0 0.0
        %3977 = vmatpush2.msra.mxu0 0.0
        %3978 = vmatprep.subr.mxu0 0.0
        %3979 = vmatpush2.msra.mxu0 0.0
        %3980 = vmatprep.subr.mxu0 0.0
        %3981 = vmatpush2.msra.mxu0 0.0
        %3982 = vmatprep.subr.mxu0 0.0
        %3983 = vmatpush2.msra.mxu0 0.0
        %3984 = vmatprep.subr.mxu0 0.0
        %3985 = vmatpush2.msra.mxu0 0.0
        %3986 = vmatprep.subr.mxu0 0.0
        %3987 = vmatpush2.msra.mxu0 0.0
        %3988 = vmatprep.subr.mxu0 0.0
        %3989 = vmatpush2.msra.mxu0 0.0
        %3990 = vmatprep.subr.mxu0 0.0
        %3991 = vmatpush2.msra.mxu0 0.0
        %3992 = vmatprep.subr.mxu0 0.0
        %3993 = vmatpush2.msra.mxu0 0.0
        %3994 = vmatprep.subr.mxu0 0.0
        %3995 = vmatpush2.msra.mxu0 0.0
        %3996 = vmatprep.mubr.f32.mxu0 0.0
        %3997 = vmatmul.mubr.f32.gmra.mxu0 %v3921
        %v3998 = vpop.f32.mrf.mxu0
        %v3999 = vadd.f32 0.0, %v3998
        %v4000 = vpop.f32.mrf.mxu0
        %v4001 = vadd.f32 0.0, %v4000
        %4002 = vmatprep.mubr.f32.mxu0 0.0
        %4003 = vmatmul.mubr.f32.gmra.mxu0 %v3924
        %v4004 = vpop.f32.mrf.mxu0
        %v4005 = vadd.f32 0.0, %v4004
        %v4006 = vpop.f32.mrf.mxu0
        %v4007 = vadd.f32 0.0, %v4006
        %4008 = vmatprep.mubr.f32.mxu0 0.0
        %4009 = vmatmul.mubr.f32.gmra.mxu0 %v3927
        %v4010 = vpop.f32.mrf.mxu0
        %v4011 = vadd.f32 0.0, %v4010
        %v4012 = vpop.f32.mrf.mxu0
        %v4013 = vadd.f32 0.0, %v4012
        %4014 = vmatprep.mubr.f32.mxu0 0.0
        %4015 = vmatmul.mubr.f32.gmra.mxu0 %v3930
        %v4016 = vpop.f32.mrf.mxu0
        %v4017 = vadd.f32 0.0, %v4016
        %v4018 = vpop.f32.mrf.mxu0
        %v4019 = vadd.f32 0.0, %v4018
        %4020 = vdwg.mxu0
        %4021 = vmatprep.subr.mxu0 0.0
        %4022 = vmatpush1.msra.mxu0 0.0
        %4023 = vmatprep.subr.mxu0 0.0
        %4024 = vmatpush1.msra.mxu0 0.0
        %4025 = vmatprep.subr.mxu0 0.0
        %4026 = vmatpush1.msra.mxu0 0.0
        %4027 = vmatprep.subr.mxu0 0.0
        %4028 = vmatpush1.msra.mxu0 0.0
        %4029 = vmatprep.subr.mxu0 0.0
        %4030 = vmatpush1.msra.mxu0 0.0
        %4031 = vmatprep.subr.mxu0 0.0
        %4032 = vmatpush1.msra.mxu0 0.0
        %4033 = vmatprep.subr.mxu0 0.0
        %4034 = vmatpush1.msra.mxu0 0.0
        %4035 = vmatprep.subr.mxu0 0.0
        %4036 = vmatpush1.msra.mxu0 0.0
        %4037 = vmatprep.subr.mxu0 0.0
        %4038 = vmatpush1.msra.mxu0 0.0
        %4039 = vmatprep.subr.mxu0 0.0
        %4040 = vmatpush1.msra.mxu0 0.0
        %4041 = vmatprep.subr.mxu0 0.0
        %4042 = vmatpush1.msra.mxu0 0.0
        %4043 = vmatprep.subr.mxu0 0.0
        %4044 = vmatpush1.msra.mxu0 0.0
        %4045 = vmatprep.subr.mxu0 0.0
        %4046 = vmatpush1.msra.mxu0 0.0
        %4047 = vmatprep.subr.mxu0 0.0
        %4048 = vmatpush1.msra.mxu0 0.0
        %4049 = vmatprep.subr.mxu0 0.0
        %4050 = vmatpush1.msra.mxu0 %v3919
        %4051 = vmatprep.subr.mxu0 0.0
        %4052 = vmatpush1.msra.mxu0 %v3918
        %4053 = vmatprep.subr.mxu0 0.0
        %4054 = vmatpush2.msra.mxu0 0.0
        %4055 = vmatprep.subr.mxu0 0.0
        %4056 = vmatpush2.msra.mxu0 0.0
        %4057 = vmatprep.subr.mxu0 0.0
        %4058 = vmatpush2.msra.mxu0 0.0
        %4059 = vmatprep.subr.mxu0 0.0
        %4060 = vmatpush2.msra.mxu0 0.0
        %4061 = vmatprep.subr.mxu0 0.0
        %4062 = vmatpush2.msra.mxu0 0.0
        %4063 = vmatprep.subr.mxu0 0.0
        %4064 = vmatpush2.msra.mxu0 0.0
        %4065 = vmatprep.subr.mxu0 0.0
        %4066 = vmatpush2.msra.mxu0 0.0
        %4067 = vmatprep.subr.mxu0 0.0
        %4068 = vmatpush2.msra.mxu0 0.0
        %4069 = vmatprep.subr.mxu0 0.0
        %4070 = vmatpush2.msra.mxu0 0.0
        %4071 = vmatprep.subr.mxu0 0.0
        %4072 = vmatpush2.msra.mxu0 0.0
        %4073 = vmatprep.subr.mxu0 0.0
        %4074 = vmatpush2.msra.mxu0 0.0
        %4075 = vmatprep.subr.mxu0 0.0
        %4076 = vmatpush2.msra.mxu0 0.0
        %4077 = vmatprep.subr.mxu0 0.0
        %4078 = vmatpush2.msra.mxu0 0.0
        %4079 = vmatprep.subr.mxu0 0.0
        %4080 = vmatpush2.msra.mxu0 0.0
        %4081 = vmatprep.subr.mxu0 0.0
        %4082 = vmatpush2.msra.mxu0 0.0
        %4083 = vmatprep.subr.mxu0 0.0
        %4084 = vmatpush2.msra.mxu0 0.0
        %4085 = vmatprep.mubr.f32.mxu0 0.0
        %4086 = vmatmul.mubr.f32.gmra.mxu0 %v3921
        %v4087 = vpop.f32.mrf.mxu0
        %v4088 = vadd.f32 0.0, %v4087
        %v4089 = vpop.f32.mrf.mxu0
        %4090 = vmatprep.mubr.f32.mxu0 0.0
        %4091 = vmatmul.mubr.f32.gmra.mxu0 %v3924
        %v4092 = vpop.f32.mrf.mxu0
        %v4093 = vadd.f32 0.0, %v4092
        %v4094 = vpop.f32.mrf.mxu0
        %4095 = vmatprep.mubr.f32.mxu0 0.0
        %4096 = vmatmul.mubr.f32.gmra.mxu0 %v3927
        %v4097 = vpop.f32.mrf.mxu0
        %v4098 = vadd.f32 0.0, %v4097
        %v4099 = vpop.f32.mrf.mxu0
        %4100 = vmatprep.mubr.f32.mxu0 0.0
        %4101 = vmatmul.mubr.f32.gmra.mxu0 %v3930
        %v4102 = vpop.f32.mrf.mxu0
        %v4103 = vadd.f32 0.0, %v4102
        %v4104 = vpop.f32.mrf.mxu0
        %4105 = vdwg.mxu0
        %v4106 = vadd.f32 %v3890, %v3999
        %v4107 = vadd.f32 %v3891, %v4001
        %v4108 = vadd.f32 %v3892, %v4088
        %v4109 = vadd.f32 %v3893, %v4005
        %v4110 = vadd.f32 %v3894, %v4007
        %v4111 = vadd.f32 %v3895, %v4093
        %v4112 = vadd.f32 %v3896, %v4011
        %v4113 = vadd.f32 %v3897, %v4013
        %v4114 = vadd.f32 %v3898, %v4098
        %v4115 = vadd.f32 %v3899, %v4017
        %v4116 = vadd.f32 %v3900, %v4019
        %v4117 = vadd.f32 %v3901, %v4103
        %4118 = vrot.lane.b32.xlu0 %v2425, 111
        %v4119 = vpop.permute.xlu0 %4118
        %4120 = vrot.lane.b32.xlu0 %v2428, 111
        %v4121 = vpop.permute.xlu0 %4120
        %4122 = vrot.lane.b32.xlu0 %v2426, 111
        %v4123 = vpop.permute.xlu0 %4122
        %4124 = vrot.lane.b32.xlu0 %v2429, 111
        %v4125 = vpop.permute.xlu0 %4124
        %4126 = vrot.lane.b32.xlu0 %v2427, 111
        %v4127 = vpop.permute.xlu0 %4126
        %4128 = vrot.lane.b32.xlu0 %v2430, 111
        %v4129 = vpop.permute.xlu0 %4128
        %v4130 = vsel %vm1876, %v4123, %v4127
        %v4131 = vsel %vm1876, %v4125, %v4129
        %v4132 = vsel %vm1876, %v4119, %v4123
        %v4133 = vsel %vm1876, %v4121, %v4125
        %v4134 = vsel %vm1876, %v4127, %v4119
        %v4135 = vsel %vm1876, %v4129, %v4121
        %v4137 = vsel %vm2467, %v362, 0
        %v4140 = vsel %vm2467, %v363, 0
        %v4143 = vsel %vm2467, %v364, 0
        %v4146 = vsel %vm2467, %v365, 0
        %4148 = vmatprep.subr.mxu0 0.0
        %4149 = vmatpush1.msra.mxu0 0.0
        %4150 = vmatprep.subr.mxu0 0.0
        %4151 = vmatpush1.msra.mxu0 0.0
        %4152 = vmatprep.subr.mxu0 0.0
        %4153 = vmatpush1.msra.mxu0 0.0
        %4154 = vmatprep.subr.mxu0 0.0
        %4155 = vmatpush1.msra.mxu0 0.0
        %4156 = vmatprep.subr.mxu0 0.0
        %4157 = vmatpush1.msra.mxu0 0.0
        %4158 = vmatprep.subr.mxu0 0.0
        %4159 = vmatpush1.msra.mxu0 0.0
        %4160 = vmatprep.subr.mxu0 0.0
        %4161 = vmatpush1.msra.mxu0 0.0
        %4162 = vmatprep.subr.mxu0 0.0
        %4163 = vmatpush1.msra.mxu0 0.0
        %4164 = vmatprep.subr.mxu0 0.0
        %4165 = vmatpush1.msra.mxu0 0.0
        %4166 = vmatprep.subr.mxu0 0.0
        %4167 = vmatpush1.msra.mxu0 0.0
        %4168 = vmatprep.subr.mxu0 0.0
        %4169 = vmatpush1.msra.mxu0 0.0
        %4170 = vmatprep.subr.mxu0 0.0
        %4171 = vmatpush1.msra.mxu0 0.0
        %4172 = vmatprep.subr.mxu0 0.0
        %4173 = vmatpush1.msra.mxu0 0.0
        %4174 = vmatprep.subr.mxu0 0.0
        %4175 = vmatpush1.msra.mxu0 0.0
        %4176 = vmatprep.subr.mxu0 %v4131
        %4177 = vmatpush1.msra.mxu0 %v4133
        %4178 = vmatprep.subr.mxu0 %v4130
        %4179 = vmatpush1.msra.mxu0 %v4132
        %4180 = vmatprep.subr.mxu0 0.0
        %4181 = vmatpush2.msra.mxu0 0.0
        %4182 = vmatprep.subr.mxu0 0.0
        %4183 = vmatpush2.msra.mxu0 0.0
        %4184 = vmatprep.subr.mxu0 0.0
        %4185 = vmatpush2.msra.mxu0 0.0
        %4186 = vmatprep.subr.mxu0 0.0
        %4187 = vmatpush2.msra.mxu0 0.0
        %4188 = vmatprep.subr.mxu0 0.0
        %4189 = vmatpush2.msra.mxu0 0.0
        %4190 = vmatprep.subr.mxu0 0.0
        %4191 = vmatpush2.msra.mxu0 0.0
        %4192 = vmatprep.subr.mxu0 0.0
        %4193 = vmatpush2.msra.mxu0 0.0
        %4194 = vmatprep.subr.mxu0 0.0
        %4195 = vmatpush2.msra.mxu0 0.0
        %4196 = vmatprep.subr.mxu0 0.0
        %4197 = vmatpush2.msra.mxu0 0.0
        %4198 = vmatprep.subr.mxu0 0.0
        %4199 = vmatpush2.msra.mxu0 0.0
        %4200 = vmatprep.subr.mxu0 0.0
        %4201 = vmatpush2.msra.mxu0 0.0
        %4202 = vmatprep.subr.mxu0 0.0
        %4203 = vmatpush2.msra.mxu0 0.0
        %4204 = vmatprep.subr.mxu0 0.0
        %4205 = vmatpush2.msra.mxu0 0.0
        %4206 = vmatprep.subr.mxu0 0.0
        %4207 = vmatpush2.msra.mxu0 0.0
        %4208 = vmatprep.subr.mxu0 0.0
        %4209 = vmatpush2.msra.mxu0 0.0
        %4210 = vmatprep.subr.mxu0 0.0
        %4211 = vmatpush2.msra.mxu0 0.0
        %4212 = vmatprep.mubr.f32.mxu0 0.0
        %4213 = vmatmul.mubr.f32.gmra.mxu0 %v4137
        %v4214 = vpop.f32.mrf.mxu0
        %v4215 = vadd.f32 0.0, %v4214
        %v4216 = vpop.f32.mrf.mxu0
        %v4217 = vadd.f32 0.0, %v4216
        %4218 = vmatprep.mubr.f32.mxu0 0.0
        %4219 = vmatmul.mubr.f32.gmra.mxu0 %v4140
        %v4220 = vpop.f32.mrf.mxu0
        %v4221 = vadd.f32 0.0, %v4220
        %v4222 = vpop.f32.mrf.mxu0
        %v4223 = vadd.f32 0.0, %v4222
        %4224 = vmatprep.mubr.f32.mxu0 0.0
        %4225 = vmatmul.mubr.f32.gmra.mxu0 %v4143
        %v4226 = vpop.f32.mrf.mxu0
        %v4227 = vadd.f32 0.0, %v4226
        %v4228 = vpop.f32.mrf.mxu0
        %v4229 = vadd.f32 0.0, %v4228
        %4230 = vmatprep.mubr.f32.mxu0 0.0
        %4231 = vmatmul.mubr.f32.gmra.mxu0 %v4146
        %v4232 = vpop.f32.mrf.mxu0
        %v4233 = vadd.f32 0.0, %v4232
        %v4234 = vpop.f32.mrf.mxu0
        %v4235 = vadd.f32 0.0, %v4234
        %4236 = vdwg.mxu0
        %4237 = vmatprep.subr.mxu0 0.0
        %4238 = vmatpush1.msra.mxu0 0.0
        %4239 = vmatprep.subr.mxu0 0.0
        %4240 = vmatpush1.msra.mxu0 0.0
        %4241 = vmatprep.subr.mxu0 0.0
        %4242 = vmatpush1.msra.mxu0 0.0
        %4243 = vmatprep.subr.mxu0 0.0
        %4244 = vmatpush1.msra.mxu0 0.0
        %4245 = vmatprep.subr.mxu0 0.0
        %4246 = vmatpush1.msra.mxu0 0.0
        %4247 = vmatprep.subr.mxu0 0.0
        %4248 = vmatpush1.msra.mxu0 0.0
        %4249 = vmatprep.subr.mxu0 0.0
        %4250 = vmatpush1.msra.mxu0 0.0
        %4251 = vmatprep.subr.mxu0 0.0
        %4252 = vmatpush1.msra.mxu0 0.0
        %4253 = vmatprep.subr.mxu0 0.0
        %4254 = vmatpush1.msra.mxu0 0.0
        %4255 = vmatprep.subr.mxu0 0.0
        %4256 = vmatpush1.msra.mxu0 0.0
        %4257 = vmatprep.subr.mxu0 0.0
        %4258 = vmatpush1.msra.mxu0 0.0
        %4259 = vmatprep.subr.mxu0 0.0
        %4260 = vmatpush1.msra.mxu0 0.0
        %4261 = vmatprep.subr.mxu0 0.0
        %4262 = vmatpush1.msra.mxu0 0.0
        %4263 = vmatprep.subr.mxu0 0.0
        %4264 = vmatpush1.msra.mxu0 0.0
        %4265 = vmatprep.subr.mxu0 0.0
        %4266 = vmatpush1.msra.mxu0 %v4135
        %4267 = vmatprep.subr.mxu0 0.0
        %4268 = vmatpush1.msra.mxu0 %v4134
        %4269 = vmatprep.subr.mxu0 0.0
        %4270 = vmatpush2.msra.mxu0 0.0
        %4271 = vmatprep.subr.mxu0 0.0
        %4272 = vmatpush2.msra.mxu0 0.0
        %4273 = vmatprep.subr.mxu0 0.0
        %4274 = vmatpush2.msra.mxu0 0.0
        %4275 = vmatprep.subr.mxu0 0.0
        %4276 = vmatpush2.msra.mxu0 0.0
        %4277 = vmatprep.subr.mxu0 0.0
        %4278 = vmatpush2.msra.mxu0 0.0
        %4279 = vmatprep.subr.mxu0 0.0
        %4280 = vmatpush2.msra.mxu0 0.0
        %4281 = vmatprep.subr.mxu0 0.0
        %4282 = vmatpush2.msra.mxu0 0.0
        %4283 = vmatprep.subr.mxu0 0.0
        %4284 = vmatpush2.msra.mxu0 0.0
        %4285 = vmatprep.subr.mxu0 0.0
        %4286 = vmatpush2.msra.mxu0 0.0
        %4287 = vmatprep.subr.mxu0 0.0
        %4288 = vmatpush2.msra.mxu0 0.0
        %4289 = vmatprep.subr.mxu0 0.0
        %4290 = vmatpush2.msra.mxu0 0.0
        %4291 = vmatprep.subr.mxu0 0.0
        %4292 = vmatpush2.msra.mxu0 0.0
        %4293 = vmatprep.subr.mxu0 0.0
        %4294 = vmatpush2.msra.mxu0 0.0
        %4295 = vmatprep.subr.mxu0 0.0
        %4296 = vmatpush2.msra.mxu0 0.0
        %4297 = vmatprep.subr.mxu0 0.0
        %4298 = vmatpush2.msra.mxu0 0.0
        %4299 = vmatprep.subr.mxu0 0.0
        %4300 = vmatpush2.msra.mxu0 0.0
        %4301 = vmatprep.mubr.f32.mxu0 0.0
        %4302 = vmatmul.mubr.f32.gmra.mxu0 %v4137
        %v4303 = vpop.f32.mrf.mxu0
        %v4304 = vadd.f32 0.0, %v4303
        %v4305 = vpop.f32.mrf.mxu0
        %4306 = vmatprep.mubr.f32.mxu0 0.0
        %4307 = vmatmul.mubr.f32.gmra.mxu0 %v4140
        %v4308 = vpop.f32.mrf.mxu0
        %v4309 = vadd.f32 0.0, %v4308
        %v4310 = vpop.f32.mrf.mxu0
        %4311 = vmatprep.mubr.f32.mxu0 0.0
        %4312 = vmatmul.mubr.f32.gmra.mxu0 %v4143
        %v4313 = vpop.f32.mrf.mxu0
        %v4314 = vadd.f32 0.0, %v4313
        %v4315 = vpop.f32.mrf.mxu0
        %4316 = vmatprep.mubr.f32.mxu0 0.0
        %4317 = vmatmul.mubr.f32.gmra.mxu0 %v4146
        %v4318 = vpop.f32.mrf.mxu0
        %v4319 = vadd.f32 0.0, %v4318
        %v4320 = vpop.f32.mrf.mxu0
        %4321 = vdwg.mxu0
        %v4322 = vadd.f32 %v4106, %v4215
        %v4323 = vadd.f32 %v4107, %v4217
        %v4324 = vadd.f32 %v4108, %v4304
        %v4325 = vadd.f32 %v4109, %v4221
        %v4326 = vadd.f32 %v4110, %v4223
        %v4327 = vadd.f32 %v4111, %v4309
        %v4328 = vadd.f32 %v4112, %v4227
        %v4329 = vadd.f32 %v4113, %v4229
        %v4330 = vadd.f32 %v4114, %v4314
        %v4331 = vadd.f32 %v4115, %v4233
        %v4332 = vadd.f32 %v4116, %v4235
        %v4333 = vadd.f32 %v4117, %v4319
        %v4334 = vadd.s32 %v434, 128
        %v4335 = vadd.s32 %v434, 256
        %4337 = vset.pattern.permute.xlu0 0
        %4338 = vperm.xlu0 %4337, %v366
        %v4339 = vpop.permute.xlu0 %4338
        %4342 = vset.pattern.permute.xlu0 0
        %4343 = vperm.xlu0 %4342, %v367
        %v4344 = vpop.permute.xlu0 %4343
        %4347 = vset.pattern.permute.xlu0 0
        %4348 = vperm.xlu0 %4347, %v368
        %v4349 = vpop.permute.xlu0 %4348
        %4352 = vset.pattern.permute.xlu0 0
        %4353 = vperm.xlu0 %4352, %v369
        %v4354 = vpop.permute.xlu0 %4353
        %4357 = vset.pattern.permute.xlu0 0
        %4358 = vperm.xlu0 %4357, %v370
        %v4359 = vpop.permute.xlu0 %4358
        %4362 = vset.pattern.permute.xlu0 0
        %4363 = vperm.xlu0 %4362, %v371
        %v4364 = vpop.permute.xlu0 %4363
        %4367 = vset.pattern.permute.xlu0 0
        %4368 = vperm.xlu0 %4367, %v372
        %v4369 = vpop.permute.xlu0 %4368
        %4372 = vset.pattern.permute.xlu0 0
        %4373 = vperm.xlu0 %4372, %v373
        %v4374 = vpop.permute.xlu0 %4373
        %vm4376 = vcmp.ge.s32.totalorder %v434, 160
        %vm4377 = vcmp.ge.s32.totalorder %v4334, 160
        %vm4378 = vcmp.ge.s32.totalorder %v4335, 160
        %v4379 = vsel %vm4376, 1, 0
        %v4380 = vsel %vm4377, 1, 0
        %v4381 = vsel %vm4378, 1, 0
        %vm4382 = vcmp.eq.s32.totalorder %v4379, 1
        %vm4383 = vcmp.eq.s32.totalorder %v4380, 1
        %vm4384 = vcmp.eq.s32.totalorder %v4381, 1
        %4385 = vset.pattern.permute.xlu0 1
        %4386 = vperm.xlu0 %4385, %v366
        %v4387 = vpop.permute.xlu0 %4386
        %4389 = vset.pattern.permute.xlu0 1
        %4390 = vperm.xlu0 %4389, %v367
        %v4391 = vpop.permute.xlu0 %4390
        %4393 = vset.pattern.permute.xlu0 1
        %4394 = vperm.xlu0 %4393, %v368
        %v4395 = vpop.permute.xlu0 %4394
        %4397 = vset.pattern.permute.xlu0 1
        %4398 = vperm.xlu0 %4397, %v369
        %v4399 = vpop.permute.xlu0 %4398
        %v4401 = vsel %vm4382, %v4387, %v4339
        %v4402 = vsel %vm4383, %v4387, %v4339
        %v4403 = vsel %vm4384, %v4387, %v4339
        %v4404 = vsel %vm4382, %v4391, %v4344
        %v4405 = vsel %vm4383, %v4391, %v4344
        %v4406 = vsel %vm4384, %v4391, %v4344
        %v4407 = vsel %vm4382, %v4395, %v4349
        %v4408 = vsel %vm4383, %v4395, %v4349
        %v4409 = vsel %vm4384, %v4395, %v4349
        %v4410 = vsel %vm4382, %v4399, %v4354
        %v4411 = vsel %vm4383, %v4399, %v4354
        %v4412 = vsel %vm4384, %v4399, %v4354
        %4413 = vset.pattern.permute.xlu0 1
        %4414 = vperm.xlu0 %4413, %v370
        %v4415 = vpop.permute.xlu0 %4414
        %4417 = vset.pattern.permute.xlu0 1
        %4418 = vperm.xlu0 %4417, %v371
        %v4419 = vpop.permute.xlu0 %4418
        %4421 = vset.pattern.permute.xlu0 1
        %4422 = vperm.xlu0 %4421, %v372
        %v4423 = vpop.permute.xlu0 %4422
        %4425 = vset.pattern.permute.xlu0 1
        %4426 = vperm.xlu0 %4425, %v373
        %v4427 = vpop.permute.xlu0 %4426
        %v4429 = vsel %vm4382, %v4415, %v4359
        %v4430 = vsel %vm4383, %v4415, %v4359
        %v4431 = vsel %vm4384, %v4415, %v4359
        %v4432 = vsel %vm4382, %v4419, %v4364
        %v4433 = vsel %vm4383, %v4419, %v4364
        %v4434 = vsel %vm4384, %v4419, %v4364
        %v4435 = vsel %vm4382, %v4423, %v4369
        %v4436 = vsel %vm4383, %v4423, %v4369
        %v4437 = vsel %vm4384, %v4423, %v4369
        %v4438 = vsel %vm4382, %v4427, %v4374
        %v4439 = vsel %vm4383, %v4427, %v4374
        %v4440 = vsel %vm4384, %v4427, %v4374
        %v4441 = vmul.f32 %v4322, %v4401
        %v4442 = vmul.f32 %v4323, %v4402
        %v4443 = vmul.f32 %v4324, %v4403
        %v4444 = vmul.f32 %v4325, %v4404
        %v4445 = vmul.f32 %v4326, %v4405
        %v4446 = vmul.f32 %v4327, %v4406
        %v4447 = vmul.f32 %v4328, %v4407
        %v4448 = vmul.f32 %v4329, %v4408
        %v4449 = vmul.f32 %v4330, %v4409
        %v4450 = vmul.f32 %v4331, %v4410
        %v4451 = vmul.f32 %v4332, %v4411
        %v4452 = vmul.f32 %v4333, %v4412
        %v4453 = vadd.f32 %v4441, %v4429
        %v4454 = vadd.f32 %v4442, %v4430
        %v4455 = vadd.f32 %v4443, %v4431
        %v4456 = vadd.f32 %v4444, %v4432
        %v4457 = vadd.f32 %v4445, %v4433
        %v4458 = vadd.f32 %v4446, %v4434
        %v4459 = vadd.f32 %v4447, %v4435
        %v4460 = vadd.f32 %v4448, %v4436
        %v4461 = vadd.f32 %v4449, %v4437
        %v4462 = vadd.f32 %v4450, %v4438
        %v4463 = vadd.f32 %v4451, %v4439
        %v4464 = vadd.f32 %v4452, %v4440
        %4465 = vmatprep.subr.mxu0 0.0
        %4466 = vmatpush1.msra.mxu0 %v390
        %4467 = vmatprep.subr.mxu0 0.0
        %4468 = vmatpush1.msra.mxu0 %v389
        %4469 = vmatprep.subr.mxu0 0.0
        %4470 = vmatpush1.msra.mxu0 %v388
        %4471 = vmatprep.subr.mxu0 0.0
        %4472 = vmatpush1.msra.mxu0 %v387
        %4473 = vmatprep.subr.mxu0 0.0
        %4474 = vmatpush1.msra.mxu0 %v386
        %4475 = vmatprep.subr.mxu0 0.0
        %4476 = vmatpush1.msra.mxu0 %v385
        %4477 = vmatprep.subr.mxu0 0.0
        %4478 = vmatpush1.msra.mxu0 %v384
        %4479 = vmatprep.subr.mxu0 0.0
        %4480 = vmatpush1.msra.mxu0 %v383
        %4481 = vmatprep.subr.mxu0 0.0
        %4482 = vmatpush1.msra.mxu0 %v382
        %4483 = vmatprep.subr.mxu0 0.0
        %4484 = vmatpush1.msra.mxu0 %v381
        %4485 = vmatprep.subr.mxu0 0.0
        %4486 = vmatpush1.msra.mxu0 %v380
        %4487 = vmatprep.subr.mxu0 0.0
        %4488 = vmatpush1.msra.mxu0 %v379
        %4489 = vmatprep.subr.mxu0 0.0
        %4490 = vmatpush1.msra.mxu0 %v378
        %4491 = vmatprep.subr.mxu0 0.0
        %4492 = vmatpush1.msra.mxu0 %v377
        %4493 = vmatprep.subr.mxu0 0.0
        %4494 = vmatpush1.msra.mxu0 %v376
        %4495 = vmatprep.subr.mxu0 0.0
        %4496 = vmatpush1.msra.mxu0 %v375
        %4497 = vmatprep.subr.mxu0 0.0
        %4498 = vmatpush2.msra.mxu0 %v406
        %4499 = vmatprep.subr.mxu0 0.0
        %4500 = vmatpush2.msra.mxu0 %v405
        %4501 = vmatprep.subr.mxu0 0.0
        %4502 = vmatpush2.msra.mxu0 %v404
        %4503 = vmatprep.subr.mxu0 0.0
        %4504 = vmatpush2.msra.mxu0 %v403
        %4505 = vmatprep.subr.mxu0 0.0
        %4506 = vmatpush2.msra.mxu0 %v402
        %4507 = vmatprep.subr.mxu0 0.0
        %4508 = vmatpush2.msra.mxu0 %v401
        %4509 = vmatprep.subr.mxu0 0.0
        %4510 = vmatpush2.msra.mxu0 %v400
        %4511 = vmatprep.subr.mxu0 0.0
        %4512 = vmatpush2.msra.mxu0 %v399
        %4513 = vmatprep.subr.mxu0 0.0
        %4514 = vmatpush2.msra.mxu0 %v398
        %4515 = vmatprep.subr.mxu0 0.0
        %4516 = vmatpush2.msra.mxu0 %v397
        %4517 = vmatprep.subr.mxu0 0.0
        %4518 = vmatpush2.msra.mxu0 %v396
        %4519 = vmatprep.subr.mxu0 0.0
        %4520 = vmatpush2.msra.mxu0 %v395
        %4521 = vmatprep.subr.mxu0 0.0
        %4522 = vmatpush2.msra.mxu0 %v394
        %4523 = vmatprep.subr.mxu0 0.0
        %4524 = vmatpush2.msra.mxu0 %v393
        %4525 = vmatprep.subr.mxu0 0.0
        %4526 = vmatpush2.msra.mxu0 %v392
        %4527 = vmatprep.subr.mxu0 0.0
        %4528 = vmatpush2.msra.mxu0 %v391
        %4529 = vmatprep.mubr.f32.mxu0 %v4454
        %4530 = vmatmul.mubr.f32.gmra.mxu0 %v4453
        %v4531 = vpop.f32.mrf.mxu0
        %v4532 = vadd.f32 0.0, %v4531
        %v4533 = vpop.f32.mrf.mxu0
        %4534 = vmatprep.mubr.f32.mxu0 %v4457
        %4535 = vmatmul.mubr.f32.gmra.mxu0 %v4456
        %v4536 = vpop.f32.mrf.mxu0
        %v4537 = vadd.f32 0.0, %v4536
        %v4538 = vpop.f32.mrf.mxu0
        %4539 = vmatprep.mubr.f32.mxu0 %v4460
        %4540 = vmatmul.mubr.f32.gmra.mxu0 %v4459
        %v4541 = vpop.f32.mrf.mxu0
        %v4542 = vadd.f32 0.0, %v4541
        %v4543 = vpop.f32.mrf.mxu0
        %4544 = vmatprep.mubr.f32.mxu0 %v4463
        %4545 = vmatmul.mubr.f32.gmra.mxu0 %v4462
        %v4546 = vpop.f32.mrf.mxu0
        %v4547 = vadd.f32 0.0, %v4546
        %v4548 = vpop.f32.mrf.mxu0
        %4549 = vdwg.mxu0
        %4550 = vmatprep.subr.mxu0 0.0
        %4551 = vmatpush1.msra.mxu0 %v422
        %4552 = vmatprep.subr.mxu0 0.0
        %4553 = vmatpush1.msra.mxu0 %v421
        %4554 = vmatprep.subr.mxu0 0.0
        %4555 = vmatpush1.msra.mxu0 %v420
        %4556 = vmatprep.subr.mxu0 0.0
        %4557 = vmatpush1.msra.mxu0 %v419
        %4558 = vmatprep.subr.mxu0 0.0
        %4559 = vmatpush1.msra.mxu0 %v418
        %4560 = vmatprep.subr.mxu0 0.0
        %4561 = vmatpush1.msra.mxu0 %v417
        %4562 = vmatprep.subr.mxu0 0.0
        %4563 = vmatpush1.msra.mxu0 %v416
        %4564 = vmatprep.subr.mxu0 0.0
        %4565 = vmatpush1.msra.mxu0 %v415
        %4566 = vmatprep.subr.mxu0 0.0
        %4567 = vmatpush1.msra.mxu0 %v414
        %4568 = vmatprep.subr.mxu0 0.0
        %4569 = vmatpush1.msra.mxu0 %v413
        %4570 = vmatprep.subr.mxu0 0.0
        %4571 = vmatpush1.msra.mxu0 %v412
        %4572 = vmatprep.subr.mxu0 0.0
        %4573 = vmatpush1.msra.mxu0 %v411
        %4574 = vmatprep.subr.mxu0 0.0
        %4575 = vmatpush1.msra.mxu0 %v410
        %4576 = vmatprep.subr.mxu0 0.0
        %4577 = vmatpush1.msra.mxu0 %v409
        %4578 = vmatprep.subr.mxu0 0.0
        %4579 = vmatpush1.msra.mxu0 %v408
        %4580 = vmatprep.subr.mxu0 0.0
        %4581 = vmatpush1.msra.mxu0 %v407
        %4582 = vmatprep.subr.mxu0 0.0
        %4583 = vmatpush2.msra.mxu0 0.0
        %4584 = vmatprep.subr.mxu0 0.0
        %4585 = vmatpush2.msra.mxu0 0.0
        %4586 = vmatprep.subr.mxu0 0.0
        %4587 = vmatpush2.msra.mxu0 0.0
        %4588 = vmatprep.subr.mxu0 0.0
        %4589 = vmatpush2.msra.mxu0 0.0
        %4590 = vmatprep.subr.mxu0 0.0
        %4591 = vmatpush2.msra.mxu0 0.0
        %4592 = vmatprep.subr.mxu0 0.0
        %4593 = vmatpush2.msra.mxu0 0.0
        %4594 = vmatprep.subr.mxu0 0.0
        %4595 = vmatpush2.msra.mxu0 0.0
        %4596 = vmatprep.subr.mxu0 0.0
        %4597 = vmatpush2.msra.mxu0 0.0
        %4598 = vmatprep.subr.mxu0 0.0
        %4599 = vmatpush2.msra.mxu0 0.0
        %4600 = vmatprep.subr.mxu0 0.0
        %4601 = vmatpush2.msra.mxu0 0.0
        %4602 = vmatprep.subr.mxu0 0.0
        %4603 = vmatpush2.msra.mxu0 0.0
        %4604 = vmatprep.subr.mxu0 0.0
        %4605 = vmatpush2.msra.mxu0 0.0
        %4606 = vmatprep.subr.mxu0 0.0
        %4607 = vmatpush2.msra.mxu0 0.0
        %4608 = vmatprep.subr.mxu0 0.0
        %4609 = vmatpush2.msra.mxu0 0.0
        %4610 = vmatprep.subr.mxu0 0.0
        %4611 = vmatpush2.msra.mxu0 0.0
        %4612 = vmatprep.subr.mxu0 0.0
        %4613 = vmatpush2.msra.mxu0 0.0
        %4614 = vmatprep.mubr.f32.mxu0 0.0
        %4615 = vmatmul.mubr.f32.gmra.mxu0 %v4455
        %v4616 = vpop.f32.mrf.mxu0
        %v4617 = vadd.f32 %v4532, %v4616
        %v4618 = vpop.f32.mrf.mxu0
        %4619 = vmatprep.mubr.f32.mxu0 0.0
        %4620 = vmatmul.mubr.f32.gmra.mxu0 %v4458
        %v4621 = vpop.f32.mrf.mxu0
        %v4622 = vadd.f32 %v4537, %v4621
        %v4623 = vpop.f32.mrf.mxu0
        %4624 = vmatprep.mubr.f32.mxu0 0.0
        %4625 = vmatmul.mubr.f32.gmra.mxu0 %v4461
        %v4626 = vpop.f32.mrf.mxu0
        %v4627 = vadd.f32 %v4542, %v4626
        %v4628 = vpop.f32.mrf.mxu0
        %4629 = vmatprep.mubr.f32.mxu0 0.0
        %4630 = vmatmul.mubr.f32.gmra.mxu0 %v4464
        %v4631 = vpop.f32.mrf.mxu0
        %v4632 = vadd.f32 %v4547, %v4631
        %v4633 = vpop.f32.mrf.mxu0
        %4634 = vdwg.mxu0
        %v4635 = vmul.f32 %v4453, %v4453
        %v4636 = vmul.f32 %v4454, %v4454
        %v4637 = vmul.f32 %v4455, %v4455
        %v4638 = vmul.f32 %v4456, %v4456
        %v4639 = vmul.f32 %v4457, %v4457
        %v4640 = vmul.f32 %v4458, %v4458
        %v4641 = vmul.f32 %v4459, %v4459
        %v4642 = vmul.f32 %v4460, %v4460
        %v4643 = vmul.f32 %v4461, %v4461
        %v4644 = vmul.f32 %v4462, %v4462
        %v4645 = vmul.f32 %v4463, %v4463
        %v4646 = vmul.f32 %v4464, %v4464
        %4647 = vmatprep.subr.mxu0 0.0
        %4648 = vmatpush1.msra.mxu0 %v390
        %4649 = vmatprep.subr.mxu0 0.0
        %4650 = vmatpush1.msra.mxu0 %v389
        %4651 = vmatprep.subr.mxu0 0.0
        %4652 = vmatpush1.msra.mxu0 %v388
        %4653 = vmatprep.subr.mxu0 0.0
        %4654 = vmatpush1.msra.mxu0 %v387
        %4655 = vmatprep.subr.mxu0 0.0
        %4656 = vmatpush1.msra.mxu0 %v386
        %4657 = vmatprep.subr.mxu0 0.0
        %4658 = vmatpush1.msra.mxu0 %v385
        %4659 = vmatprep.subr.mxu0 0.0
        %4660 = vmatpush1.msra.mxu0 %v384
        %4661 = vmatprep.subr.mxu0 0.0
        %4662 = vmatpush1.msra.mxu0 %v383
        %4663 = vmatprep.subr.mxu0 0.0
        %4664 = vmatpush1.msra.mxu0 %v382
        %4665 = vmatprep.subr.mxu0 0.0
        %4666 = vmatpush1.msra.mxu0 %v381
        %4667 = vmatprep.subr.mxu0 0.0
        %4668 = vmatpush1.msra.mxu0 %v380
        %4669 = vmatprep.subr.mxu0 0.0
        %4670 = vmatpush1.msra.mxu0 %v379
        %4671 = vmatprep.subr.mxu0 0.0
        %4672 = vmatpush1.msra.mxu0 %v378
        %4673 = vmatprep.subr.mxu0 0.0
        %4674 = vmatpush1.msra.mxu0 %v377
        %4675 = vmatprep.subr.mxu0 0.0
        %4676 = vmatpush1.msra.mxu0 %v376
        %4677 = vmatprep.subr.mxu0 0.0
        %4678 = vmatpush1.msra.mxu0 %v375
        %4679 = vmatprep.subr.mxu0 0.0
        %4680 = vmatpush2.msra.mxu0 %v406
        %4681 = vmatprep.subr.mxu0 0.0
        %4682 = vmatpush2.msra.mxu0 %v405
        %4683 = vmatprep.subr.mxu0 0.0
        %4684 = vmatpush2.msra.mxu0 %v404
        %4685 = vmatprep.subr.mxu0 0.0
        %4686 = vmatpush2.msra.mxu0 %v403
        %4687 = vmatprep.subr.mxu0 0.0
        %4688 = vmatpush2.msra.mxu0 %v402
        %4689 = vmatprep.subr.mxu0 0.0
        %4690 = vmatpush2.msra.mxu0 %v401
        %4691 = vmatprep.subr.mxu0 0.0
        %4692 = vmatpush2.msra.mxu0 %v400
        %4693 = vmatprep.subr.mxu0 0.0
        %4694 = vmatpush2.msra.mxu0 %v399
        %4695 = vmatprep.subr.mxu0 0.0
        %4696 = vmatpush2.msra.mxu0 %v398
        %4697 = vmatprep.subr.mxu0 0.0
        %4698 = vmatpush2.msra.mxu0 %v397
        %4699 = vmatprep.subr.mxu0 0.0
        %4700 = vmatpush2.msra.mxu0 %v396
        %4701 = vmatprep.subr.mxu0 0.0
        %4702 = vmatpush2.msra.mxu0 %v395
        %4703 = vmatprep.subr.mxu0 0.0
        %4704 = vmatpush2.msra.mxu0 %v394
        %4705 = vmatprep.subr.mxu0 0.0
        %4706 = vmatpush2.msra.mxu0 %v393
        %4707 = vmatprep.subr.mxu0 0.0
        %4708 = vmatpush2.msra.mxu0 %v392
        %4709 = vmatprep.subr.mxu0 0.0
        %4710 = vmatpush2.msra.mxu0 %v391
        %4711 = vmatprep.mubr.f32.mxu0 %v4636
        %4712 = vmatmul.mubr.f32.gmra.mxu0 %v4635
        %v4713 = vpop.f32.mrf.mxu0
        %v4714 = vadd.f32 0.0, %v4713
        %v4715 = vpop.f32.mrf.mxu0
        %4716 = vmatprep.mubr.f32.mxu0 %v4639
        %4717 = vmatmul.mubr.f32.gmra.mxu0 %v4638
        %v4718 = vpop.f32.mrf.mxu0
        %v4719 = vadd.f32 0.0, %v4718
        %v4720 = vpop.f32.mrf.mxu0
        %4721 = vmatprep.mubr.f32.mxu0 %v4642
        %4722 = vmatmul.mubr.f32.gmra.mxu0 %v4641
        %v4723 = vpop.f32.mrf.mxu0
        %v4724 = vadd.f32 0.0, %v4723
        %v4725 = vpop.f32.mrf.mxu0
        %4726 = vmatprep.mubr.f32.mxu0 %v4645
        %4727 = vmatmul.mubr.f32.gmra.mxu0 %v4644
        %v4728 = vpop.f32.mrf.mxu0
        %v4729 = vadd.f32 0.0, %v4728
        %v4730 = vpop.f32.mrf.mxu0
        %4731 = vdwg.mxu0
        %4732 = vmatprep.subr.mxu0 0.0
        %4733 = vmatpush1.msra.mxu0 %v422
        %4734 = vmatprep.subr.mxu0 0.0
        %4735 = vmatpush1.msra.mxu0 %v421
        %4736 = vmatprep.subr.mxu0 0.0
        %4737 = vmatpush1.msra.mxu0 %v420
        %4738 = vmatprep.subr.mxu0 0.0
        %4739 = vmatpush1.msra.mxu0 %v419
        %4740 = vmatprep.subr.mxu0 0.0
        %4741 = vmatpush1.msra.mxu0 %v418
        %4742 = vmatprep.subr.mxu0 0.0
        %4743 = vmatpush1.msra.mxu0 %v417
        %4744 = vmatprep.subr.mxu0 0.0
        %4745 = vmatpush1.msra.mxu0 %v416
        %4746 = vmatprep.subr.mxu0 0.0
        %4747 = vmatpush1.msra.mxu0 %v415
        %4748 = vmatprep.subr.mxu0 0.0
        %4749 = vmatpush1.msra.mxu0 %v414
        %4750 = vmatprep.subr.mxu0 0.0
        %4751 = vmatpush1.msra.mxu0 %v413
        %4752 = vmatprep.subr.mxu0 0.0
        %4753 = vmatpush1.msra.mxu0 %v412
        %4754 = vmatprep.subr.mxu0 0.0
        %4755 = vmatpush1.msra.mxu0 %v411
        %4756 = vmatprep.subr.mxu0 0.0
        %4757 = vmatpush1.msra.mxu0 %v410
        %4758 = vmatprep.subr.mxu0 0.0
        %4759 = vmatpush1.msra.mxu0 %v409
        %4760 = vmatprep.subr.mxu0 0.0
        %4761 = vmatpush1.msra.mxu0 %v408
        %4762 = vmatprep.subr.mxu0 0.0
        %4763 = vmatpush1.msra.mxu0 %v407
        %4764 = vmatprep.subr.mxu0 0.0
        %4765 = vmatpush2.msra.mxu0 0.0
        %4766 = vmatprep.subr.mxu0 0.0
        %4767 = vmatpush2.msra.mxu0 0.0
        %4768 = vmatprep.subr.mxu0 0.0
        %4769 = vmatpush2.msra.mxu0 0.0
        %4770 = vmatprep.subr.mxu0 0.0
        %4771 = vmatpush2.msra.mxu0 0.0
        %4772 = vmatprep.subr.mxu0 0.0
        %4773 = vmatpush2.msra.mxu0 0.0
        %4774 = vmatprep.subr.mxu0 0.0
        %4775 = vmatpush2.msra.mxu0 0.0
        %4776 = vmatprep.subr.mxu0 0.0
        %4777 = vmatpush2.msra.mxu0 0.0
        %4778 = vmatprep.subr.mxu0 0.0
        %4779 = vmatpush2.msra.mxu0 0.0
        %4780 = vmatprep.subr.mxu0 0.0
        %4781 = vmatpush2.msra.mxu0 0.0
        %4782 = vmatprep.subr.mxu0 0.0
        %4783 = vmatpush2.msra.mxu0 0.0
        %4784 = vmatprep.subr.mxu0 0.0
        %4785 = vmatpush2.msra.mxu0 0.0
        %4786 = vmatprep.subr.mxu0 0.0
        %4787 = vmatpush2.msra.mxu0 0.0
        %4788 = vmatprep.subr.mxu0 0.0
        %4789 = vmatpush2.msra.mxu0 0.0
        %4790 = vmatprep.subr.mxu0 0.0
        %4791 = vmatpush2.msra.mxu0 0.0
        %4792 = vmatprep.subr.mxu0 0.0
        %4793 = vmatpush2.msra.mxu0 0.0
        %4794 = vmatprep.subr.mxu0 0.0
        %4795 = vmatpush2.msra.mxu0 0.0
        %4796 = vmatprep.mubr.f32.mxu0 0.0
        %4797 = vmatmul.mubr.f32.gmra.mxu0 %v4637
        %v4798 = vpop.f32.mrf.mxu0
        %v4799 = vadd.f32 %v4714, %v4798
        %v4800 = vpop.f32.mrf.mxu0
        %4801 = vmatprep.mubr.f32.mxu0 0.0
        %4802 = vmatmul.mubr.f32.gmra.mxu0 %v4640
        %v4803 = vpop.f32.mrf.mxu0
        %v4804 = vadd.f32 %v4719, %v4803
        %v4805 = vpop.f32.mrf.mxu0
        %4806 = vmatprep.mubr.f32.mxu0 0.0
        %4807 = vmatmul.mubr.f32.gmra.mxu0 %v4643
        %v4808 = vpop.f32.mrf.mxu0
        %v4809 = vadd.f32 %v4724, %v4808
        %v4810 = vpop.f32.mrf.mxu0
        %4811 = vmatprep.mubr.f32.mxu0 0.0
        %4812 = vmatmul.mubr.f32.gmra.mxu0 %v4646
        %v4813 = vpop.f32.mrf.mxu0
        %v4814 = vadd.f32 %v4729, %v4813
        %v4815 = vpop.f32.mrf.mxu0
        %4816 = vdwg.mxu0
        %v4817 = vmul.f32 %v4617, 0.0078125
        %v4818 = vmul.f32 %v4622, 0.0078125
        %v4819 = vmul.f32 %v4627, 0.0078125
        %v4820 = vmul.f32 %v4632, 0.0078125
        %v4821 = vmul.f32 %v4799, 0.0078125
        %v4822 = vmul.f32 %v4804, 0.0078125
        %v4823 = vmul.f32 %v4809, 0.0078125
        %v4824 = vmul.f32 %v4814, 0.0078125
        %v4825 = vmul.f32 %v4817, %v4817
        %v4826 = vmul.f32 %v4818, %v4818
        %v4827 = vmul.f32 %v4819, %v4819
        %v4828 = vmul.f32 %v4820, %v4820
        %v4829 = vsub.f32 %v4821, %v4825
        %v4830 = vsub.f32 %v4822, %v4826
        %v4831 = vsub.f32 %v4823, %v4827
        %v4832 = vsub.f32 %v4824, %v4828
        %v4833 = vadd.f32 %v4829, 1e-05
        %v4834 = vadd.f32 %v4830, 1e-05
        %v4835 = vadd.f32 %v4831, 1e-05
        %v4836 = vadd.f32 %v4832, 1e-05
        %v4837 = vrsqrt.pop %v4833
        %v4838 = vrsqrt.pop %v4834
        %v4839 = vrsqrt.pop %v4835
        %v4840 = vrsqrt.pop %v4836
        %4842 = vset.pattern.permute.xlu0 0
        %4843 = vperm.xlu0 %4842, %v4817
        %v4844 = vpop.permute.xlu0 %4843
        %4847 = vset.pattern.permute.xlu0 0
        %4848 = vperm.xlu0 %4847, %v4818
        %v4849 = vpop.permute.xlu0 %4848
        %4852 = vset.pattern.permute.xlu0 0
        %4853 = vperm.xlu0 %4852, %v4819
        %v4854 = vpop.permute.xlu0 %4853
        %4857 = vset.pattern.permute.xlu0 0
        %4858 = vperm.xlu0 %4857, %v4820
        %v4859 = vpop.permute.xlu0 %4858
        %v4861 = vsub.f32 %v4453, %v4844
        %v4862 = vsub.f32 %v4454, %v4844
        %v4863 = vsub.f32 %v4455, %v4844
        %v4864 = vsub.f32 %v4456, %v4849
        %v4865 = vsub.f32 %v4457, %v4849
        %v4866 = vsub.f32 %v4458, %v4849
        %v4867 = vsub.f32 %v4459, %v4854
        %v4868 = vsub.f32 %v4460, %v4854
        %v4869 = vsub.f32 %v4461, %v4854
        %v4870 = vsub.f32 %v4462, %v4859
        %v4871 = vsub.f32 %v4463, %v4859
        %v4872 = vsub.f32 %v4464, %v4859
        %4874 = vset.pattern.permute.xlu0 0
        %4875 = vperm.xlu0 %4874, %v4837
        %v4876 = vpop.permute.xlu0 %4875
        %4879 = vset.pattern.permute.xlu0 0
        %4880 = vperm.xlu0 %4879, %v4838
        %v4881 = vpop.permute.xlu0 %4880
        %4884 = vset.pattern.permute.xlu0 0
        %4885 = vperm.xlu0 %4884, %v4839
        %v4886 = vpop.permute.xlu0 %4885
        %4889 = vset.pattern.permute.xlu0 0
        %4890 = vperm.xlu0 %4889, %v4840
        %v4891 = vpop.permute.xlu0 %4890
        %v4893 = vmul.f32 %v4861, %v4876
        %v4894 = vmul.f32 %v4862, %v4876
        %v4895 = vmul.f32 %v4863, %v4876
        %v4896 = vmul.f32 %v4864, %v4881
        %v4897 = vmul.f32 %v4865, %v4881
        %v4898 = vmul.f32 %v4866, %v4881
        %v4899 = vmul.f32 %v4867, %v4886
        %v4900 = vmul.f32 %v4868, %v4886
        %v4901 = vmul.f32 %v4869, %v4886
        %v4902 = vmul.f32 %v4870, %v4891
        %v4903 = vmul.f32 %v4871, %v4891
        %v4904 = vmul.f32 %v4872, %v4891
        %v4905 = vmax.f32 %v4893, 0.0
        %v4906 = vmax.f32 %v4894, 0.0
        %v4907 = vmax.f32 %v4895, 0.0
        %v4908 = vmax.f32 %v4896, 0.0
        %v4909 = vmax.f32 %v4897, 0.0
        %v4910 = vmax.f32 %v4898, 0.0
        %v4911 = vmax.f32 %v4899, 0.0
        %v4912 = vmax.f32 %v4900, 0.0
        %v4913 = vmax.f32 %v4901, 0.0
        %v4914 = vmax.f32 %v4902, 0.0
        %v4915 = vmax.f32 %v4903, 0.0
        %v4916 = vmax.f32 %v4904, 0.0
        %4917 = vst [vmem:[%s289] sm:$0xff] %v4905
        %4918 = vst [vmem:[%s289 + $0x8] sm:$0xff] %v4906
        %4919 = vst [vmem:[%s289 + $0x10] sm:$0xff] %v4907
        %4920 = vst [vmem:[%s289 + $0x18] sm:$0xff] %v4908
        %4921 = vst [vmem:[%s289 + $0x20] sm:$0xff] %v4909
        %4922 = vst [vmem:[%s289 + $0x28] sm:$0xff] %v4910
        %4923 = vst [vmem:[%s289 + $0x30] sm:$0xff] %v4911
        %4924 = vst [vmem:[%s289 + $0x38] sm:$0xff] %v4912
        %4925 = vst [vmem:[%s289 + $0x40] sm:$0xff] %v4913
        %4926 = vst [vmem:[%s289 + $0x48] sm:$0xff] %v4914
        %4927 = vst [vmem:[%s289 + $0x50] sm:$0xff] %v4915
        %4928 = vst [vmem:[%s289 + $0x58] sm:$0xff] %v4916
        %s4929 = sand.u32 %s174, 1
        %s4930 = scalar_lea.sflag [#allocation3], %s4929
        %s4931 = sand.u32 %s174, 1
        %s4932 = smul.addr %s4931, 96
        %s4933 = scalar_lea.vmem [#allocation2], %s4932
        // Predicated region
        $region45: #{tpu_custom_call.1} parent=43 // pred_check
          %p4934 = pneg %p184
        $region46: #{tpu_custom_call.1} parent=43 // pred_check_branch
          %4936 = sbr.rel (%p4934) target = $region48
        $region47: #{tpu_custom_call.1} parent=43 // pred_region
          %s4938 = ssub.s32 1536, 1536
          %4939 = vsyncadd %s4930, %s4938
          %s4940 = smul.addr %s20, 12
          %s4941 = smul.addr %s4940, 128
          %s4942 = scalar_lea.hbm %s6, %s4941
          %s4943 = sshll.u32 %s4933, 4
          %s4944 = int_to_ptr.vmem [resolvable:$true] %s4943
          %4949 = dma.vmem_to_hbm [thread:$0]  %s4944, 1536, %s4942, %s4930, 384, 384, 24
        $region48: #{tpu_custom_call.1} parent=43 // pred_fallthru
          _
      $region44: #{tpu_custom_call.1} parent=5 // pred_fallthru
        _
      %p4950 = scmp.le.s32.totalorder 2, %s15
      // Predicated region
      $region49: #{tpu_custom_call.1} parent=5 // pred_check
        %p4951 = pneg %p4950
      $region50: #{tpu_custom_call.1} parent=5 // pred_check_branch
        %4953 = sbr.rel (%p4951) target = $region52
      $region51: #{tpu_custom_call.1} parent=5 // pred_region
        %s4954 = ssub.s32 %s15, 2
        // Predicated region
        $region53: #{tpu_custom_call.1} parent=51 // pred_check
          %p4955 = pneg %p190
        $region54: #{tpu_custom_call.1} parent=51 // pred_check_branch
          %4957 = sbr.rel (%p4955) target = $region56
        $region55: #{tpu_custom_call.1} parent=51 // pred_region
          %s4958 = sand.u32 %s175, 1
          %s4959 = scalar_lea.sflag [#allocation3], %s4958
          %s4960 = sand.u32 %s175, 1
          %s4961 = smul.addr %s4960, 96
          %s4962 = scalar_lea.vmem [#allocation2], %s4961
          %4963 = dma.done %s4959, 1536
        $region56: #{tpu_custom_call.1} parent=51 // pred_fallthru
          _
      $region52: #{tpu_custom_call.1} parent=5 // pred_fallthru
        _
    $region6: #{tpu_custom_call.1} parent=1 // loop_footer
      %s19 = sadd.s32 1, %s15
    $region7: #{tpu_custom_call.1} parent=1 // loop_footer_branch
      %14 = sbr.rel target = $region3
    $region8: #{tpu_custom_call.1} parent=1 // loop_exit
      _
    %4964 = vsyncpa [#allocation3], 1
    %s4965 = scalar_lea.sflag [#allocation3], 1
    %4966 = vsyncpa %s4965, 1

</llo_original>
